<compile_context>
chip_gen: v7x
topology: tpu7x:2x2x1
jax: 0.10.0
libtpu: 0.0.40
codegen_flags: <defaults>
</compile_context>

<pallas_src>
import functools

import jax
import jax.numpy as jnp
from jax.experimental import pallas as pl
from jax.experimental.pallas import tpu as pltpu

_MASKED = -1e30  # large finite negative: keeps the online softmax NaN-free


def _round_up(x, m):
    return ((x + m - 1) // m) * m


def _attn_kernel(*refs, num_heads, head_dim, tau, kv_len, kv_len_padded, has_mask):
    # grid = (batch, q_tile, head, k_tile); per step this kernel sees ONE head's tiles:
    #   q_ref: (1, 1, tq, D)   k_ref: (1, 1, D, tk)   v_ref: (1, 1, tk, D)
    #   mask_ref: (1, tq, tk) int8 (optional)
    #   w_ref: (H*D, O) resident, b_ref: (1, O)
    #   o_ref: (1, tq, O), z_ref: (1, tq, H*D)  -- resident across (h, ki)
    #   scratch: m_sc/l_sc (tq, 1) f32, acc_sc (tq, D) f32
    if has_mask:
        (q_ref, k_ref, v_ref, mask_ref, w_ref, b_ref,
         o_ref, z_ref, m_sc, l_sc, acc_sc) = refs
    else:
        (q_ref, k_ref, v_ref, w_ref, b_ref,
         o_ref, z_ref, m_sc, l_sc, acc_sc) = refs
        mask_ref = None

    h = pl.program_id(2)
    ki = pl.program_id(3)
    n_k = pl.num_programs(3)

    @pl.when(ki == 0)
    def _init():
        m_sc[...] = jnp.full(m_sc.shape, _MASKED, jnp.float32)
        l_sc[...] = jnp.zeros(l_sc.shape, jnp.float32)
        acc_sc[...] = jnp.zeros(acc_sc.shape, jnp.float32)

    q = q_ref[0, 0]                     # (tq, D)  bf16
    k = k_ref[0, 0]                     # (D, tk)  bf16 (pre-transposed in wrapper)
    v = v_ref[0, 0]                     # (tk, D)  bf16
    tq, tk = q.shape[0], k.shape[1]

    # Score tile: one canonical MXU matmul, f32 accumulation.
    s = jnp.dot(q, k, preferred_element_type=jnp.float32) * tau      # (tq, tk) f32

    masked = None
    if has_mask:
        masked = mask_ref[0] != 0                                    # padding folded in
    elif kv_len < kv_len_padded:
        # No user mask but K was padded: mask padded key columns in-kernel.
        kcol = ki * tk + jax.lax.broadcasted_iota(jnp.int32, (tq, tk), 1)
        masked = kcol >= kv_len
    if masked is not None:
        s = jnp.where(masked, _MASKED, s)

    # Online softmax update (single exp pass).
    m_prev = m_sc[...]
    m_new = jnp.maximum(m_prev, jnp.max(s, axis=-1, keepdims=True))  # (tq, 1)
    alpha = jnp.exp(m_prev - m_new)
    p = jnp.exp(s - m_new)                                           # (tq, tk)
    if masked is not None:
        p = jnp.where(masked, 0.0, p)   # robust for fully-masked k-tiles
    l_sc[...] = alpha * l_sc[...] + jnp.sum(p, axis=-1, keepdims=True)
    acc_sc[...] = alpha * acc_sc[...] + jnp.dot(
        p.astype(v.dtype), v, preferred_element_type=jnp.float32)    # (tq, D)
    m_sc[...] = m_new

    @pl.when(ki == n_k - 1)
    def _finalize():
        l = l_sc[...]
        l = jnp.where(l == 0.0, 1.0, l)                  # fully-masked rows -> z = 0
        z_h = (acc_sc[...] * pl.reciprocal(l, approx=False)).astype(z_ref.dtype)

        # Write this head's 64-wide column slice into the resident lane-dense z block.
        # Static slices under pl.when -> no dynamic lane offsets, no concat epilogue.
        for hh in range(num_heads):
            @pl.when(h == hh)
            def _(hh=hh):
                z_ref[0, :, hh * head_dim:(hh + 1) * head_dim] = z_h

        # After the last head: fused output projection, one (tq, H*D) x (H*D, O) matmul.
        @pl.when(h == num_heads - 1)
        def _project():
            z_all = z_ref[0]                              # (tq, H*D) lane-dense
            o = jnp.dot(z_all.astype(w_ref.dtype), w_ref[...],
                        preferred_element_type=jnp.float32)
            o_ref[0] = (o + b_ref[...].astype(jnp.float32)).astype(o_ref.dtype)


def multi_attention(q, k, v, w, b, *, tau, mask=None,
                    q_tile=128, k_tile=128, compute_dtype=jnp.bfloat16):
    """Flash-style multi-head attention + fused output projection.

    q: [B, Q, H, D]; k, v: [B, K, H, D]; w: [H, D, O]; b: [O];
    mask: [B, Q, K] bool (True = masked) or None.
    Returns (o [B, Q, O], z [B, Q, H, D], (k, v)).
    """
    assert q_tile % 8 == 0, "q_tile must be a sublane multiple"
    assert k_tile % 128 == 0, "k_tile must be a lane multiple"

    B, Qlen, H, D = q.shape
    Klen = k.shape[1]
    O = w.shape[-1]
    HD = H * D
    out_dtype = q.dtype

    # Pad Q/K up to tile multiples (never fall back to a full-K block): padded keys are
    # masked, padded query rows are sliced off the outputs.
    tq = min(q_tile, _round_up(Qlen, 8))
    Qp = _round_up(Qlen, tq)
    tk = min(k_tile, _round_up(Klen, 128))
    Kp = _round_up(Klen, tk)
    n_q, n_k = Qp // tq, Kp // tk

    # Head-major layouts (and K additionally transposed to (B,H,D,K)) so every tile is a
    # contiguous lane-dense MXU operand; the bf16 cast is fused into the same pass.
    # TODO(synk): emit these layouts from the q/k/v projections to remove this HBM pass.
    qt = jnp.transpose(q.astype(compute_dtype), (0, 2, 1, 3))     # (B, H, Q, D)
    kt = jnp.transpose(k.astype(compute_dtype), (0, 2, 3, 1))     # (B, H, D, K)
    vt = jnp.transpose(v.astype(compute_dtype), (0, 2, 1, 3))     # (B, H, K, D)
    if Qp != Qlen:
        qt = jnp.pad(qt, ((0, 0), (0, 0), (0, Qp - Qlen), (0, 0)))
    if Kp != Klen:
        kt = jnp.pad(kt, ((0, 0), (0, 0), (0, 0), (0, Kp - Klen)))
        vt = jnp.pad(vt, ((0, 0), (0, 0), (0, Kp - Klen), (0, 0)))
    w2 = w.reshape(HD, O).astype(compute_dtype)
    b2 = b.reshape(1, O).astype(jnp.float32)

    has_mask = mask is not None
    inputs = [qt, kt, vt]
    in_specs = [
        pl.BlockSpec((1, 1, tq, D), lambda b_, qi, h, ki: (b_, h, qi, 0)),   # q
        pl.BlockSpec((1, 1, D, tk), lambda b_, qi, h, ki: (b_, h, 0, ki)),   # k^T
        pl.BlockSpec((1, 1, tk, D), lambda b_, qi, h, ki: (b_, h, ki, 0)),   # v
    ]
    if has_mask:
        m8 = jnp.pad(mask.astype(jnp.int8),
                     ((0, 0), (0, Qp - Qlen), (0, Kp - Klen)),
                     constant_values=1)                     # padded keys are masked
        inputs.append(m8)
        in_specs.append(
            pl.BlockSpec((1, tq, tk), lambda b_, qi, h, ki: (b_, qi, ki)))
    inputs += [w2, b2]
    in_specs += [
        pl.BlockSpec((HD, O), lambda b_, qi, h, ki: (0, 0)),                 # W resident
        pl.BlockSpec((1, O), lambda b_, qi, h, ki: (0, 0)),                  # bias
    ]

    out_shapes = (
        jax.ShapeDtypeStruct((B, Qp, O), out_dtype),     # o  (lane-dense, O wide)
        jax.ShapeDtypeStruct((B, Qp, HD), out_dtype),    # z  (lane-dense, H*D wide)
    )
    out_specs = [
        pl.BlockSpec((1, tq, O), lambda b_, qi, h, ki: (b_, qi, 0)),
        pl.BlockSpec((1, tq, HD), lambda b_, qi, h, ki: (b_, qi, 0)),
    ]

    kernel = functools.partial(
        _attn_kernel, num_heads=H, head_dim=D, tau=tau,
        kv_len=Klen, kv_len_padded=Kp, has_mask=has_mask)

    # Per-step VMEM: q/k/v tiles (3 x 16 KiB bf16), mask 16 KiB, resident W 512 KiB,
    # o/z blocks ~256 KiB, scratch ~34 KiB -> well under the default scoped limit on
    # every generation (v7x: 32/64 MiB). For long sequences on v5e/v6e, raise
    # vmem_limit_bytes via CompilerParams and bump q_tile/k_tile to 256-512.
    grid_spec = pltpu.PrefetchScalarGridSpec(
        num_scalar_prefetch=0,
        grid=(B, n_q, H, n_k),
        in_specs=in_specs,
        out_specs=out_specs,
        scratch_shapes=[
            pltpu.VMEM((tq, 1), jnp.float32),   # running max
            pltpu.VMEM((tq, 1), jnp.float32),   # running denominator
            pltpu.VMEM((tq, D), jnp.float32),   # running numerator
        ],
    )

    csize = jnp.dtype(compute_dtype).itemsize
    osize = jnp.dtype(out_dtype).itemsize
    flops = 4 * B * H * Qp * Kp * D + 2 * B * Qp * HD * O
    transcendentals = B * H * Qp * Kp
    bytes_accessed = (
        B * H * Qp * D * csize                      # q (each head tile fetched once)
        + 2 * n_q * B * H * Kp * D * csize          # k + v re-streamed per q-tile
        + (H * B * Qp * Kp if has_mask else 0)      # int8 mask per (h, qi, ki) tile
        + HD * O * csize + O * 4                    # resident W + bias
        + B * Qp * O * osize + B * Qp * HD * osize) # o + z writeback

    o, z2 = pl.pallas_call(
        kernel,
        out_shape=out_shapes,
        grid_spec=grid_spec,
        compiler_params=pltpu.CompilerParams(
            # B * n_q >= 2 keeps both v7x TensorCores busy; h/ki carry the resident
            # accumulators so they must stay "arbitrary".
            dimension_semantics=("parallel", "parallel", "arbitrary", "arbitrary")),
        cost_estimate=pl.CostEstimate(
            flops=flops, transcendentals=transcendentals,
            bytes_accessed=bytes_accessed),
    )(*inputs)

    o = o[:, :Qlen]
    z = z2[:, :Qlen].reshape(B, Qlen, H, D)   # free reshape: column order is (h, d)
    # forward() returns (o, z, (k, v)) — k, v are passed through unchanged.
    return o, z, (k, v)


def _reference(q, k, v, w, b, tau, mask):
    qf, kf, vf, wf, bf = (x.astype(jnp.float32) for x in (q, k, v, w, b))
    s = jnp.einsum('bqhx,bkhx->bhqk', qf, kf) * tau
    if mask is not None:
        s = jnp.where(mask[:, None, :, :], -jnp.inf, s)
    a = jax.nn.softmax(s, axis=-1)
    z = jnp.einsum('bhqk,bkhy->bqhy', a, vf)
    o = jnp.einsum('bqhy,hyo->bqo', z, wf) + bf
    return o, z


if __name__ == "__main__":
    # Module hyperparameters: num_heads=8, o_dim=512 -> head_dim = ceil(512/8) = 64
    num_heads = 8
    o_dim = 512
    head_dim = (o_dim + num_heads - 1) // num_heads
    tau = head_dim ** (-0.5)

    B, Qlen, Klen = 2, 128, 192   # Klen=192 exercises K padding (-> Kp=256, 2 k-tiles)

    key = jax.random.PRNGKey(0)
    kq, kk, kv, kw, kb = jax.random.split(key, 5)

    # bf16 activations end-to-end (native MXU format on v5e/v6e/v7x).
    q = jax.random.normal(kq, (B, Qlen, num_heads, head_dim), jnp.float32).astype(jnp.bfloat16)
    k = jax.random.normal(kk, (B, Klen, num_heads, head_dim), jnp.float32).astype(jnp.bfloat16)
    v = jax.random.normal(kv, (B, Klen, num_heads, head_dim), jnp.float32).astype(jnp.bfloat16)

    # Output projection (nn.Linear(num_heads*head_dim, o_dim, bias=True)),
    # stored as [H, D, O] so that flatten(start_dim=-2) ordering matches.
    w = (jax.random.normal(kw, (num_heads, head_dim, o_dim), jnp.float32) * 0.05
         ).astype(jnp.bfloat16)
    b = jax.random.normal(kb, (o_dim,), jnp.float32) * 0.1

    # Deterministic partial mask for batch 1 (no row fully masked); spans both k-tiles.
    mask = jnp.zeros((B, Qlen, Klen), dtype=bool)
    mask = mask.at[1, :, 5:9].set(True)
    mask = mask.at[1, :, 150:].set(True)

    # Masked path (user mask padded with True for the padded keys).
    o_m, z_m, (k_out, v_out) = multi_attention(q, k, v, w, b, tau=tau, mask=mask)
    # No-mask path (padded keys handled by the in-kernel iota mask).
    o_n, z_n, _ = multi_attention(q, k, v, w, b, tau=tau, mask=None)
    jax.block_until_ready((o_m, z_m, o_n, z_n))

    o_ref_m, z_ref_m = _reference(q, k, v, w, b, tau, mask)
    o_ref_n, z_ref_n = _reference(q, k, v, w, b, tau, None)

    assert jnp.allclose(z_m.astype(jnp.float32), z_ref_m, atol=2e-2, rtol=2e-2), "z (masked) mismatch"
    assert jnp.allclose(o_m.astype(jnp.float32), o_ref_m, atol=2e-2, rtol=2e-2), "o (masked) mismatch"
    assert jnp.allclose(z_n.astype(jnp.float32), z_ref_n, atol=2e-2, rtol=2e-2), "z (no-mask) mismatch"
    assert jnp.allclose(o_n.astype(jnp.float32), o_ref_n, atol=2e-2, rtol=2e-2), "o (no-mask) mismatch"
    assert jnp.allclose(k_out, k) and jnp.allclose(v_out, v)

    print("KERNEL_OK")
</pallas_src>

<mosaic_0001>
module attributes {stable_mosaic.version = 11 : i64} {
  func.func @_attn_kernel(%arg0: i32, %arg1: i32, %arg2: i32, %arg3: i32, %arg4: memref<1x1x128x64xbf16, #tpu.memory_space<vmem>>, %arg5: memref<1x1x64x128xbf16, #tpu.memory_space<vmem>>, %arg6: memref<1x1x128x64xbf16, #tpu.memory_space<vmem>>, %arg7: memref<1x128x128xi8, #tpu.memory_space<vmem>>, %arg8: memref<512x512xbf16, #tpu.memory_space<vmem>>, %arg9: memref<1x512xf32, #tpu.memory_space<vmem>>, %arg10: memref<1x128x512xbf16, #tpu.memory_space<vmem>>, %arg11: memref<1x128x512xbf16, #tpu.memory_space<vmem>>, %arg12: memref<128x1xf32, #tpu.memory_space<vmem>>, %arg13: memref<128x1xf32, #tpu.memory_space<vmem>>, %arg14: memref<128x64xf32, #tpu.memory_space<vmem>>) attributes {dimension_semantics = [#tpu.dimension_semantics<parallel>, #tpu.dimension_semantics<parallel>, #tpu.dimension_semantics<arbitrary>, #tpu.dimension_semantics<arbitrary>], iteration_bounds = array<i64: 2, 1, 8, 2>, scalar_prefetch = 0 : i64, scratch_operands = 3 : i64, tpu.core_type = #tpu.core_type<tc>, window_params = [{transform_indices = @transform_0, window_bounds = array<i64: 1, 1, 128, 64>}, {transform_indices = @transform_1, window_bounds = array<i64: 1, 1, 64, 128>}, {transform_indices = @transform_2, window_bounds = array<i64: 1, 1, 128, 64>}, {transform_indices = @transform_3, window_bounds = array<i64: 1, 128, 128>}, {pipeline_mode = #tpu.pipeline_mode<synchronous>, transform_indices = @transform_4, window_bounds = array<i64: 512, 512>}, {pipeline_mode = #tpu.pipeline_mode<synchronous>, transform_indices = @transform_5, window_bounds = array<i64: 1, 512>}, {transform_indices = @transform_6, window_bounds = array<i64: 1, 128, 512>}, {transform_indices = @transform_7, window_bounds = array<i64: 1, 128, 512>}]} {
    %c0_i32 = arith.constant 0 : i32
    %0 = arith.cmpi eq, %arg3, %c0_i32 : i32
    %1 = arith.extui %0 : i1 to i32
    %c0_i32_0 = arith.constant 0 : i32
    %2 = arith.cmpi ne, %1, %c0_i32_0 : i32
    scf.if %2 {
      %cst_34 = arith.constant -1.000000e+30 : f32
      %46 = vector.broadcast %cst_34 : f32 to vector<128x1xf32>
      %c0_35 = arith.constant 0 : index
      %c0_36 = arith.constant 0 : index
      %47 = vector.load %arg12[%c0_35, %c0_36] : memref<128x1xf32, #tpu.memory_space<vmem>>, vector<128x1xf32>
      tpu.vector_store %arg12[%c0_35, %c0_36], %46 {strides = array<i32>} : memref<128x1xf32, #tpu.memory_space<vmem>>, vector<128x1xf32>,
      %cst_37 = arith.constant 0.000000e+00 : f32
      %48 = vector.broadcast %cst_37 : f32 to vector<128x1xf32>
      %c0_38 = arith.constant 0 : index
      %c0_39 = arith.constant 0 : index
      %49 = vector.load %arg13[%c0_38, %c0_39] : memref<128x1xf32, #tpu.memory_space<vmem>>, vector<128x1xf32>
      tpu.vector_store %arg13[%c0_38, %c0_39], %48 {strides = array<i32>} : memref<128x1xf32, #tpu.memory_space<vmem>>, vector<128x1xf32>,
      %cst_40 = arith.constant 0.000000e+00 : f32
      %50 = vector.broadcast %cst_40 : f32 to vector<128x64xf32>
      %c0_41 = arith.constant 0 : index
      %c0_42 = arith.constant 0 : index
      %51 = vector.load %arg14[%c0_41, %c0_42] : memref<128x64xf32, #tpu.memory_space<vmem>>, vector<128x64xf32>
      tpu.vector_store %arg14[%c0_41, %c0_42], %50 {strides = array<i32>} : memref<128x64xf32, #tpu.memory_space<vmem>>, vector<128x64xf32>,
    } else {
    }
    %c0 = arith.constant 0 : index
    %c0_1 = arith.constant 0 : index
    %c0_2 = arith.constant 0 : index
    %c0_3 = arith.constant 0 : index
    %3 = vector.load %arg4[%c0, %c0_1, %c0_2, %c0_3] : memref<1x1x128x64xbf16, #tpu.memory_space<vmem>>, vector<1x1x128x64xbf16>
    %4 = vector.shape_cast %3 : vector<1x1x128x64xbf16> to vector<128x64xbf16>
    %c0_4 = arith.constant 0 : index
    %c0_5 = arith.constant 0 : index
    %c0_6 = arith.constant 0 : index
    %c0_7 = arith.constant 0 : index
    %5 = vector.load %arg5[%c0_4, %c0_5, %c0_6, %c0_7] : memref<1x1x64x128xbf16, #tpu.memory_space<vmem>>, vector<1x1x64x128xbf16>
    %6 = vector.shape_cast %5 : vector<1x1x64x128xbf16> to vector<64x128xbf16>
    %c0_8 = arith.constant 0 : index
    %c0_9 = arith.constant 0 : index
    %c0_10 = arith.constant 0 : index
    %c0_11 = arith.constant 0 : index
    %7 = vector.load %arg6[%c0_8, %c0_9, %c0_10, %c0_11] : memref<1x1x128x64xbf16, #tpu.memory_space<vmem>>, vector<1x1x128x64xbf16>
    %8 = vector.shape_cast %7 : vector<1x1x128x64xbf16> to vector<128x64xbf16>
    %cst = arith.constant dense<0.000000e+00> : vector<128x128xf32>
    %9 = tpu.matmul %4, %6, %cst {dimension_numbers = #tpu.dot_dimension_numbers<[1], [0], [0], [1], [0, 0, 1, 1], [], []>} : vector<128x64xbf16>, vector<64x128xbf16>, vector<128x128xf32> -> vector<128x128xf32>
    %cst_12 = arith.constant 1.250000e-01 : f32
    %10 = vector.broadcast %cst_12 : f32 to vector<128x128xf32>
    %11 = arith.mulf %9, %10 : vector<128x128xf32>
    %c0_13 = arith.constant 0 : index
    %c0_14 = arith.constant 0 : index
    %c0_15 = arith.constant 0 : index
    %12 = vector.load %arg7[%c0_13, %c0_14, %c0_15] : memref<1x128x128xi8, #tpu.memory_space<vmem>>, vector<1x128x128xi8>
    %13 = vector.shape_cast %12 : vector<1x128x128xi8> to vector<128x128xi8>
    %c0_i8 = arith.constant 0 : i8
    %14 = vector.broadcast %c0_i8 : i8 to vector<128x128xi8>
    %15 = arith.cmpi ne, %13, %14 : vector<128x128xi8>
    %cst_16 = arith.constant -1.000000e+30 : f32
    %16 = vector.broadcast %cst_16 : f32 to vector<128x128xf32>
    %17 = arith.select %15, %16, %11 : vector<128x128xi1>, vector<128x128xf32>
    %c0_17 = arith.constant 0 : index
    %c0_18 = arith.constant 0 : index
    %18 = vector.load %arg12[%c0_17, %c0_18] : memref<128x1xf32, #tpu.memory_space<vmem>>, vector<128x1xf32>
    %cst_19 = arith.constant dense<0xFF800000> : vector<128xf32>
    %19 = vector.multi_reduction <maximumf>, %17, %cst_19 [1] : vector<128x128xf32> to vector<128xf32>
    %20 = vector.shape_cast %19 : vector<128xf32> to vector<128x1xf32>
    %21 = arith.maximumf %18, %20 : vector<128x1xf32>
    %22 = arith.subf %18, %21 : vector<128x1xf32>
    %23 = math.exp %22 : vector<128x1xf32>
    %24 = vector.broadcast %21 : vector<128x1xf32> to vector<128x128xf32>
    %25 = arith.subf %17, %24 : vector<128x128xf32>
    %26 = math.exp %25 : vector<128x128xf32>
    %cst_20 = arith.constant 0.000000e+00 : f32
    %27 = vector.broadcast %cst_20 : f32 to vector<128x128xf32>
    %28 = arith.select %15, %27, %26 : vector<128x128xi1>, vector<128x128xf32>
    %c0_21 = arith.constant 0 : index
    %c0_22 = arith.constant 0 : index
    %29 = vector.load %arg13[%c0_21, %c0_22] : memref<128x1xf32, #tpu.memory_space<vmem>>, vector<128x1xf32>
    %30 = arith.mulf %23, %29 : vector<128x1xf32>
    %cst_23 = arith.constant dense<0.000000e+00> : vector<128xf32>
    %31 = vector.multi_reduction <add>, %28, %cst_23 [1] : vector<128x128xf32> to vector<128xf32>
    %32 = vector.shape_cast %31 : vector<128xf32> to vector<128x1xf32>
    %33 = arith.addf %30, %32 : vector<128x1xf32>
    %c0_24 = arith.constant 0 : index
    %c0_25 = arith.constant 0 : index
    %34 = vector.load %arg13[%c0_24, %c0_25] : memref<128x1xf32, #tpu.memory_space<vmem>>, vector<128x1xf32>
    tpu.vector_store %arg13[%c0_24, %c0_25], %33 {strides = array<i32>} : memref<128x1xf32, #tpu.memory_space<vmem>>, vector<128x1xf32>,
    %c0_26 = arith.constant 0 : index
    %c0_27 = arith.constant 0 : index
    %35 = vector.load %arg14[%c0_26, %c0_27] : memref<128x64xf32, #tpu.memory_space<vmem>>, vector<128x64xf32>
    %36 = vector.broadcast %23 : vector<128x1xf32> to vector<128x64xf32>
    %37 = arith.mulf %36, %35 : vector<128x64xf32>
    %38 = arith.truncf %28 : vector<128x128xf32> to vector<128x128xbf16>
    %cst_28 = arith.constant dense<0.000000e+00> : vector<128x64xf32>
    %39 = tpu.matmul %38, %8, %cst_28 {dimension_numbers = #tpu.dot_dimension_numbers<[1], [0], [0], [1], [0, 0, 1, 1], [], []>} : vector<128x128xbf16>, vector<128x64xbf16>, vector<128x64xf32> -> vector<128x64xf32>
    %40 = arith.addf %37, %39 : vector<128x64xf32>
    %c0_29 = arith.constant 0 : index
    %c0_30 = arith.constant 0 : index
    %41 = vector.load %arg14[%c0_29, %c0_30] : memref<128x64xf32, #tpu.memory_space<vmem>>, vector<128x64xf32>
    tpu.vector_store %arg14[%c0_29, %c0_30], %40 {strides = array<i32>} : memref<128x64xf32, #tpu.memory_space<vmem>>, vector<128x64xf32>,
    %c0_31 = arith.constant 0 : index
    %c0_32 = arith.constant 0 : index
    %42 = vector.load %arg12[%c0_31, %c0_32] : memref<128x1xf32, #tpu.memory_space<vmem>>, vector<128x1xf32>
    tpu.vector_store %arg12[%c0_31, %c0_32], %21 {strides = array<i32>} : memref<128x1xf32, #tpu.memory_space<vmem>>, vector<128x1xf32>,
    %c1_i32 = arith.constant 1 : i32
    %43 = arith.cmpi eq, %arg3, %c1_i32 : i32
    %44 = arith.extui %43 : i1 to i32
    %c0_i32_33 = arith.constant 0 : i32
    %45 = arith.cmpi ne, %44, %c0_i32_33 : i32
    scf.if %45 {
      %c0_34 = arith.constant 0 : index
      %c0_35 = arith.constant 0 : index
      %46 = vector.load %arg13[%c0_34, %c0_35] : memref<128x1xf32, #tpu.memory_space<vmem>>, vector<128x1xf32>
      %cst_36 = arith.constant 0.000000e+00 : f32
      %47 = vector.broadcast %cst_36 : f32 to vector<128x1xf32>
      %48 = arith.cmpf oeq, %46, %47 : vector<128x1xf32>
      %cst_37 = arith.constant 1.000000e+00 : f32
      %49 = vector.broadcast %cst_37 : f32 to vector<128x1xf32>
      %50 = arith.select %48, %49, %46 : vector<128x1xi1>, vector<128x1xf32>
      %c0_38 = arith.constant 0 : index
      %c0_39 = arith.constant 0 : index
      %51 = vector.load %arg14[%c0_38, %c0_39] : memref<128x64xf32, #tpu.memory_space<vmem>>, vector<128x64xf32>
      %52 = tpu.reciprocal %50 : vector<128x1xf32> -> vector<128x1xf32>
      %53 = vector.broadcast %52 : vector<128x1xf32> to vector<128x64xf32>
      %54 = arith.mulf %51, %53 : vector<128x64xf32>
      %55 = arith.truncf %54 : vector<128x64xf32> to vector<128x64xbf16>
      %c0_i32_40 = arith.constant 0 : i32
      %56 = arith.cmpi eq, %arg2, %c0_i32_40 : i32
      %57 = arith.extui %56 : i1 to i32
      %c0_i32_41 = arith.constant 0 : i32
      %58 = arith.cmpi ne, %57, %c0_i32_41 : i32
      scf.if %58 {
        %c0_52 = arith.constant 0 : index
        %c0_53 = arith.constant 0 : index
        %c0_54 = arith.constant 0 : index
        %83 = vector.load %arg11[%c0_52, %c0_53, %c0_54] : memref<1x128x512xbf16, #tpu.memory_space<vmem>>, vector<1x128x64xbf16>
        %84 = vector.shape_cast %83 : vector<1x128x64xbf16> to vector<128x64xbf16>
        %85 = vector.shape_cast %55 : vector<128x64xbf16> to vector<1x128x64xbf16>
        tpu.vector_store %arg11[%c0_52, %c0_53, %c0_54], %85 {strides = array<i32>} : memref<1x128x512xbf16, #tpu.memory_space<vmem>>, vector<1x128x64xbf16>,
      } else {
      }
      %c1_i32_42 = arith.constant 1 : i32
      %59 = arith.cmpi eq, %arg2, %c1_i32_42 : i32
      %60 = arith.extui %59 : i1 to i32
      %c0_i32_43 = arith.constant 0 : i32
      %61 = arith.cmpi ne, %60, %c0_i32_43 : i32
      scf.if %61 {
        %c0_52 = arith.constant 0 : index
        %c0_53 = arith.constant 0 : index
        %c64 = arith.constant 64 : index
        %83 = vector.load %arg11[%c0_52, %c0_53, %c64] : memref<1x128x512xbf16, #tpu.memory_space<vmem>>, vector<1x128x64xbf16>
        %84 = vector.shape_cast %83 : vector<1x128x64xbf16> to vector<128x64xbf16>
        %85 = vector.shape_cast %55 : vector<128x64xbf16> to vector<1x128x64xbf16>
        tpu.vector_store %arg11[%c0_52, %c0_53, %c64], %85 {strides = array<i32>} : memref<1x128x512xbf16, #tpu.memory_space<vmem>>, vector<1x128x64xbf16>,
      } else {
      }
      %c2_i32 = arith.constant 2 : i32
      %62 = arith.cmpi eq, %arg2, %c2_i32 : i32
      %63 = arith.extui %62 : i1 to i32
      %c0_i32_44 = arith.constant 0 : i32
      %64 = arith.cmpi ne, %63, %c0_i32_44 : i32
      scf.if %64 {
        %c0_52 = arith.constant 0 : index
        %c0_53 = arith.constant 0 : index
        %c128 = arith.constant 128 : index
        %83 = vector.load %arg11[%c0_52, %c0_53, %c128] : memref<1x128x512xbf16, #tpu.memory_space<vmem>>, vector<1x128x64xbf16>
        %84 = vector.shape_cast %83 : vector<1x128x64xbf16> to vector<128x64xbf16>
        %85 = vector.shape_cast %55 : vector<128x64xbf16> to vector<1x128x64xbf16>
        tpu.vector_store %arg11[%c0_52, %c0_53, %c128], %85 {strides = array<i32>} : memref<1x128x512xbf16, #tpu.memory_space<vmem>>, vector<1x128x64xbf16>,
      } else {
      }
      %c3_i32 = arith.constant 3 : i32
      %65 = arith.cmpi eq, %arg2, %c3_i32 : i32
      %66 = arith.extui %65 : i1 to i32
      %c0_i32_45 = arith.constant 0 : i32
      %67 = arith.cmpi ne, %66, %c0_i32_45 : i32
      scf.if %67 {
        %c0_52 = arith.constant 0 : index
        %c0_53 = arith.constant 0 : index
        %c192 = arith.constant 192 : index
        %83 = vector.load %arg11[%c0_52, %c0_53, %c192] : memref<1x128x512xbf16, #tpu.memory_space<vmem>>, vector<1x128x64xbf16>
        %84 = vector.shape_cast %83 : vector<1x128x64xbf16> to vector<128x64xbf16>
        %85 = vector.shape_cast %55 : vector<128x64xbf16> to vector<1x128x64xbf16>
        tpu.vector_store %arg11[%c0_52, %c0_53, %c192], %85 {strides = array<i32>} : memref<1x128x512xbf16, #tpu.memory_space<vmem>>, vector<1x128x64xbf16>,
      } else {
      }
      %c4_i32 = arith.constant 4 : i32
      %68 = arith.cmpi eq, %arg2, %c4_i32 : i32
      %69 = arith.extui %68 : i1 to i32
      %c0_i32_46 = arith.constant 0 : i32
      %70 = arith.cmpi ne, %69, %c0_i32_46 : i32
      scf.if %70 {
        %c0_52 = arith.constant 0 : index
        %c0_53 = arith.constant 0 : index
        %c256 = arith.constant 256 : index
        %83 = vector.load %arg11[%c0_52, %c0_53, %c256] : memref<1x128x512xbf16, #tpu.memory_space<vmem>>, vector<1x128x64xbf16>
        %84 = vector.shape_cast %83 : vector<1x128x64xbf16> to vector<128x64xbf16>
        %85 = vector.shape_cast %55 : vector<128x64xbf16> to vector<1x128x64xbf16>
        tpu.vector_store %arg11[%c0_52, %c0_53, %c256], %85 {strides = array<i32>} : memref<1x128x512xbf16, #tpu.memory_space<vmem>>, vector<1x128x64xbf16>,
      } else {
      }
      %c5_i32 = arith.constant 5 : i32
      %71 = arith.cmpi eq, %arg2, %c5_i32 : i32
      %72 = arith.extui %71 : i1 to i32
      %c0_i32_47 = arith.constant 0 : i32
      %73 = arith.cmpi ne, %72, %c0_i32_47 : i32
      scf.if %73 {
        %c0_52 = arith.constant 0 : index
        %c0_53 = arith.constant 0 : index
        %c320 = arith.constant 320 : index
        %83 = vector.load %arg11[%c0_52, %c0_53, %c320] : memref<1x128x512xbf16, #tpu.memory_space<vmem>>, vector<1x128x64xbf16>
        %84 = vector.shape_cast %83 : vector<1x128x64xbf16> to vector<128x64xbf16>
        %85 = vector.shape_cast %55 : vector<128x64xbf16> to vector<1x128x64xbf16>
        tpu.vector_store %arg11[%c0_52, %c0_53, %c320], %85 {strides = array<i32>} : memref<1x128x512xbf16, #tpu.memory_space<vmem>>, vector<1x128x64xbf16>,
      } else {
      }
      %c6_i32 = arith.constant 6 : i32
      %74 = arith.cmpi eq, %arg2, %c6_i32 : i32
      %75 = arith.extui %74 : i1 to i32
      %c0_i32_48 = arith.constant 0 : i32
      %76 = arith.cmpi ne, %75, %c0_i32_48 : i32
      scf.if %76 {
        %c0_52 = arith.constant 0 : index
        %c0_53 = arith.constant 0 : index
        %c384 = arith.constant 384 : index
        %83 = vector.load %arg11[%c0_52, %c0_53, %c384] : memref<1x128x512xbf16, #tpu.memory_space<vmem>>, vector<1x128x64xbf16>
        %84 = vector.shape_cast %83 : vector<1x128x64xbf16> to vector<128x64xbf16>
        %85 = vector.shape_cast %55 : vector<128x64xbf16> to vector<1x128x64xbf16>
        tpu.vector_store %arg11[%c0_52, %c0_53, %c384], %85 {strides = array<i32>} : memref<1x128x512xbf16, #tpu.memory_space<vmem>>, vector<1x128x64xbf16>,
      } else {
      }
      %c7_i32 = arith.constant 7 : i32
      %77 = arith.cmpi eq, %arg2, %c7_i32 : i32
      %78 = arith.extui %77 : i1 to i32
      %c0_i32_49 = arith.constant 0 : i32
      %79 = arith.cmpi ne, %78, %c0_i32_49 : i32
      scf.if %79 {
        %c0_52 = arith.constant 0 : index
        %c0_53 = arith.constant 0 : index
        %c448 = arith.constant 448 : index
        %83 = vector.load %arg11[%c0_52, %c0_53, %c448] : memref<1x128x512xbf16, #tpu.memory_space<vmem>>, vector<1x128x64xbf16>
        %84 = vector.shape_cast %83 : vector<1x128x64xbf16> to vector<128x64xbf16>
        %85 = vector.shape_cast %55 : vector<128x64xbf16> to vector<1x128x64xbf16>
        tpu.vector_store %arg11[%c0_52, %c0_53, %c448], %85 {strides = array<i32>} : memref<1x128x512xbf16, #tpu.memory_space<vmem>>, vector<1x128x64xbf16>,
      } else {
      }
      %c7_i32_50 = arith.constant 7 : i32
      %80 = arith.cmpi eq, %arg2, %c7_i32_50 : i32
      %81 = arith.extui %80 : i1 to i32
      %c0_i32_51 = arith.constant 0 : i32
      %82 = arith.cmpi ne, %81, %c0_i32_51 : i32
      scf.if %82 {
        %c0_52 = arith.constant 0 : index
        %c0_53 = arith.constant 0 : index
        %c0_54 = arith.constant 0 : index
        %83 = vector.load %arg11[%c0_52, %c0_53, %c0_54] : memref<1x128x512xbf16, #tpu.memory_space<vmem>>, vector<1x128x512xbf16>
        %84 = vector.shape_cast %83 : vector<1x128x512xbf16> to vector<128x512xbf16>
        %c0_55 = arith.constant 0 : index
        %c0_56 = arith.constant 0 : index
        %85 = vector.load %arg8[%c0_55, %c0_56] : memref<512x512xbf16, #tpu.memory_space<vmem>>, vector<512x512xbf16>
        %cst_57 = arith.constant dense<0.000000e+00> : vector<128x512xf32>
        %86 = tpu.matmul %84, %85, %cst_57 {dimension_numbers = #tpu.dot_dimension_numbers<[1], [0], [0], [1], [0, 0, 1, 1], [], []>} : vector<128x512xbf16>, vector<512x512xbf16>, vector<128x512xf32> -> vector<128x512xf32>
        %c0_58 = arith.constant 0 : index
        %c0_59 = arith.constant 0 : index
        %87 = vector.load %arg9[%c0_58, %c0_59] : memref<1x512xf32, #tpu.memory_space<vmem>>, vector<1x512xf32>
        %88 = vector.broadcast %87 : vector<1x512xf32> to vector<128x512xf32>
        %89 = arith.addf %86, %88 : vector<128x512xf32>
        %90 = arith.truncf %89 : vector<128x512xf32> to vector<128x512xbf16>
        %c0_60 = arith.constant 0 : index
        %c0_61 = arith.constant 0 : index
        %c0_62 = arith.constant 0 : index
        %91 = vector.load %arg10[%c0_60, %c0_61, %c0_62] : memref<1x128x512xbf16, #tpu.memory_space<vmem>>, vector<1x128x512xbf16>
        %92 = vector.shape_cast %91 : vector<1x128x512xbf16> to vector<128x512xbf16>
        %93 = vector.shape_cast %90 : vector<128x512xbf16> to vector<1x128x512xbf16>
        tpu.vector_store %arg10[%c0_60, %c0_61, %c0_62], %93 {strides = array<i32>} : memref<1x128x512xbf16, #tpu.memory_space<vmem>>, vector<1x128x512xbf16>,
      } else {
      }
    } else {
    }
    return
  }
  func.func @transform_0(%arg0: i32, %arg1: i32, %arg2: i32, %arg3: i32) -> (i32, i32, i32, i32) {
    %c0_i32 = arith.constant 0 : i32
    %c0_i32_0 = arith.constant 0 : i32
    return %arg0, %arg2, %arg1, %c0_i32 : i32, i32, i32, i32
  }
  func.func @transform_1(%arg0: i32, %arg1: i32, %arg2: i32, %arg3: i32) -> (i32, i32, i32, i32) {
    %c0_i32 = arith.constant 0 : i32
    %c0_i32_0 = arith.constant 0 : i32
    return %arg0, %arg2, %c0_i32, %arg3 : i32, i32, i32, i32
  }
  func.func @transform_2(%arg0: i32, %arg1: i32, %arg2: i32, %arg3: i32) -> (i32, i32, i32, i32) {
    %c0_i32 = arith.constant 0 : i32
    %c0_i32_0 = arith.constant 0 : i32
    return %arg0, %arg2, %arg3, %c0_i32 : i32, i32, i32, i32
  }
  func.func @transform_3(%arg0: i32, %arg1: i32, %arg2: i32, %arg3: i32) -> (i32, i32, i32) {
    %c0_i32 = arith.constant 0 : i32
    return %arg0, %arg1, %arg3 : i32, i32, i32
  }
  func.func @transform_4(%arg0: i32, %arg1: i32, %arg2: i32, %arg3: i32) -> (i32, i32) {
    %c0_i32 = arith.constant 0 : i32
    %c0_i32_0 = arith.constant 0 : i32
    %c0_i32_1 = arith.constant 0 : i32
    return %c0_i32, %c0_i32_0 : i32, i32
  }
  func.func @transform_5(%arg0: i32, %arg1: i32, %arg2: i32, %arg3: i32) -> (i32, i32) {
    %c0_i32 = arith.constant 0 : i32
    %c0_i32_0 = arith.constant 0 : i32
    %c0_i32_1 = arith.constant 0 : i32
    return %c0_i32, %c0_i32_0 : i32, i32
  }
  func.func @transform_6(%arg0: i32, %arg1: i32, %arg2: i32, %arg3: i32) -> (i32, i32, i32) {
    %c0_i32 = arith.constant 0 : i32
    %c0_i32_0 = arith.constant 0 : i32
    return %arg0, %arg1, %c0_i32 : i32, i32, i32
  }
  func.func @transform_7(%arg0: i32, %arg1: i32, %arg2: i32, %arg3: i32) -> (i32, i32, i32) {
    %c0_i32 = arith.constant 0 : i32
    %c0_i32_0 = arith.constant 0 : i32
    return %arg0, %arg1, %c0_i32 : i32, i32, i32
  }
}

</mosaic_0001>

<llo_original>
// kernel: tpu_custom_call.1
$region0: #{tpu_custom_call.1}
  #allocation0 [shape = 'u32[]', space=smem, size = 0x4, offset = 0x4, fixed_abs, tag = 'smem constant byte address 0x4 - core index']
  #allocation1 [shape = 'u32[144,128]{1,0:T(1,128)}', space=vmem, size = 0x12000, scoped, tag = 'internal scratch']
  #allocation2 [shape = 'f32[128,1]{1,0:T(8,128)}', space=vmem, size = 0x10000, scoped, tag = 'scratch operand']
  #allocation3 [shape = 'f32[128,1]{1,0:T(8,128)}', space=vmem, size = 0x10000, scoped, tag = 'scratch operand']
  #allocation4 [shape = 'f32[128,64]{1,0:T(8,128)}', space=vmem, size = 0x10000, scoped, tag = 'scratch operand']
  %s0 = inlined_call_operand.vmem [shape: bf16[2,8,128,64], index: 0, kind: input, shape index: {}]
  %s1 = inlined_call_operand.vmem [shape: bf16[2,8,64,256], index: 1, kind: input, shape index: {}]
  %s2 = inlined_call_operand.vmem [shape: bf16[2,8,256,64], index: 2, kind: input, shape index: {}]
  %s3 = inlined_call_operand.vmem [shape: s8[2,128,256], index: 3, kind: input, shape index: {}]
  %s4 = inlined_call_operand.vmem [shape: bf16[512,512], index: 4, kind: input, shape index: {}]
  %s5 = inlined_call_operand.vmem [shape: f32[1,512], index: 5, kind: input, shape index: {}]
  %s6 = inlined_call_operand.hbm [shape: bf16[2,128,512], index: 6, kind: output, shape index: {0}]
  %s7 = inlined_call_operand.hbm [shape: bf16[2,128,512], index: 7, kind: output, shape index: {1}]
  %8 = xla_tuple %s6, %s7
  %s9 = sld [smem:[#allocation0]]
  $region184: #{tpu_custom_call.1} parent=0
    _
  %s11 = ssub.s32 1, %s9
  %s12 = scalar_select 0, %s11, %s9
  $region1: #{tpu_custom_call.1} parent=0
    #allocation5 [shape = 'u8[32768]{0}', space=vmem, size = 0x8000, scoped, tag = 'input window, operand 1']
    #allocation6 [shape = 'u8[32768]{0}', space=vmem, size = 0x8000, scoped, tag = 'input window, operand 3']
    #allocation7 [shape = 'u8[262144]{0}', space=vmem, size = 0x40000, scoped, tag = 'output window, operand 0']
    #allocation8 [shape = 's32[2]{0}', space=sflag, size = 0x8, scoped, tag = 'scoped memory for tpu_custom_call.1']
    #allocation9 [shape = 'u8[262144]{0}', space=vmem, size = 0x40000, scoped, tag = 'output window, operand 1']
    #allocation10 [shape = 's32[2]{0}', space=sflag, size = 0x8, scoped, tag = 'scoped memory for tpu_custom_call.1']
    %13 = vsyncpa [#allocation8], 0
    %s14 = scalar_lea.sflag [#allocation8], 1
    %15 = vsyncpa %s14, 0
    %16 = vsyncpa [#allocation10], 0
    %s17 = scalar_lea.sflag [#allocation10], 1
    %18 = vsyncpa %s17, 0
    loop: start=0, step=1, limit=34
    $region2: #{tpu_custom_call.1} parent=1 // loop_pre_header
      _
    $region3: #{tpu_custom_call.1} parent=1 // loop_header
      %s20 = sphi 0, %s24
      %p21 = scmp.ge.s32.totalorder %s20, 34
      %s27 = sphi 0, %s53
      %s28 = sphi 0, %s49
      %s29 = sphi 0, %s45
      %s30 = sphi 0, %s41
      %s31 = sphi 0, %s27
      %s32 = sphi 0, %s28
      %s33 = sphi 0, %s29
      %s34 = sphi 0, %s30
      %s35 = sphi 0, %s31
      %s36 = sphi 0, %s32
      %s37 = sphi 0, %s33
      %s38 = sphi 0, %s34
      %s60 = sphi 0, %s62
      %s63 = sphi 0, %s60
      %s64 = sphi 0, %s63
      %s80 = sphi 0, %s64
      %s90 = sphi 0, %s92
      %s93 = sphi 0, %s90
      %s94 = sphi 0, %s93
      %s110 = sphi 0, %s94
      %s120 = sphi 0, %s122
      %s123 = sphi 0, %s120
      %s124 = sphi 0, %s123
      %s140 = sphi 0, %s124
      %s150 = sphi 0, %s152
      %s153 = sphi 0, %s150
      %s154 = sphi 0, %s153
      %s170 = sphi 0, %s154
      %s174 = sphi 0, %s174
      %s176 = sphi 0, %s174
      %s177 = sphi 0, %s176
      %s191 = sphi 0, %s177
      %s195 = sphi 0, %s195
      %s197 = sphi 0, %s195
      %s198 = sphi 0, %s197
      %s212 = sphi 0, %s198
      %s220 = sphi 0, %s222
      %s223 = sphi 0, %s220
      %s224 = sphi 0, %s223
      %s240 = sphi 0, %s224
      %s248 = sphi 0, %s250
      %s251 = sphi 0, %s248
      %s252 = sphi 0, %s251
      %s268 = sphi 0, %s252
    $region4: #{tpu_custom_call.1} parent=1 // loop_header_branch
      %23 = sbr.rel (%p21) target = $region8
    $region5: #{tpu_custom_call.1} parent=1 // loop_body
      %s25 = ssub.s32 %s20, 1
      %s26 = ssub.s32 %s20, 2
      %s39 = sadd.s32 1, %s30
      %p40 = scmp.ge.s32.totalorder %s39, 2
      %s41 = scalar_select %p40, 0, %s39
      %s42 = sadd.s32 1, %s29
      %s43 = scalar_select %p40, %s42, %s29
      %p44 = scmp.ge.s32.totalorder %s43, 8
      %s45 = scalar_select %p44, 0, %s43
      %s46 = sadd.s32 1, %s28
      %s47 = scalar_select %p44, %s46, %s28
      %p48 = scmp.ge.s32.totalorder %s47, 1
      %s49 = scalar_select %p48, 0, %s47
      %s50 = sadd.s32 1, %s27
      %s51 = scalar_select %p48, %s50, %s27
      %p52 = scmp.ge.s32.totalorder %s51, 2
      %s53 = scalar_select %p52, 0, %s51
      %s54 = ssub.s32 %s27, %s53
      %s55 = ssub.s32 %s29, %s45
      %s56 = sor.u32 %s54, %s55
      %s57 = ssub.s32 %s28, %s49
      %s58 = sor.u32 %s56, %s57
      %p59 = scmp.eq.s32.totalorder %s58, 0
      %s61 = sadd.s32 %s60, 1
      %s62 = scalar_select %p59, %s60, %s61
      %p65 = pneg %p59
      %p66 = scmp.eq.s32.totalorder %s20, 31
      %p67 = por %p65, %p66
      %p68 = scmp.ne.s32.totalorder %s60, %s63
      %p69 = scmp.eq.s32.totalorder %s20, 0
      %p70 = por %p68, %p69
      %p71 = scmp.ne.s32.totalorder %s60, %s63
      %p72 = scmp.eq.s32.totalorder %s25, 31
      %p73 = por %p71, %p72
      %p74 = scmp.ne.s32.totalorder %s63, %s64
      %p75 = scmp.eq.s32.totalorder %s25, 0
      %p76 = por %p74, %p75
      %p77 = scmp.ne.s32.totalorder %s63, %s64
      %p78 = scmp.eq.s32.totalorder %s26, 31
      %p79 = por %p77, %p78
      %p81 = scmp.ne.s32.totalorder %s64, %s80
      %p82 = scmp.eq.s32.totalorder %s26, 0
      %p83 = por %p81, %p82
      %s84 = ssub.s32 %s27, %s53
      %s85 = ssub.s32 %s29, %s45
      %s86 = sor.u32 %s84, %s85
      %s87 = ssub.s32 %s30, %s41
      %s88 = sor.u32 %s86, %s87
      %p89 = scmp.eq.s32.totalorder %s88, 0
      %s91 = sadd.s32 %s90, 1
      %s92 = scalar_select %p89, %s90, %s91
      %p95 = pneg %p89
      %p96 = scmp.eq.s32.totalorder %s20, 31
      %p97 = por %p95, %p96
      %p98 = scmp.ne.s32.totalorder %s90, %s93
      %p99 = scmp.eq.s32.totalorder %s20, 0
      %p100 = por %p98, %p99
      %p101 = scmp.ne.s32.totalorder %s90, %s93
      %p102 = scmp.eq.s32.totalorder %s25, 31
      %p103 = por %p101, %p102
      %p104 = scmp.ne.s32.totalorder %s93, %s94
      %p105 = scmp.eq.s32.totalorder %s25, 0
      %p106 = por %p104, %p105
      %p107 = scmp.ne.s32.totalorder %s93, %s94
      %p108 = scmp.eq.s32.totalorder %s26, 31
      %p109 = por %p107, %p108
      %p111 = scmp.ne.s32.totalorder %s94, %s110
      %p112 = scmp.eq.s32.totalorder %s26, 0
      %p113 = por %p111, %p112
      %s114 = ssub.s32 %s27, %s53
      %s115 = ssub.s32 %s29, %s45
      %s116 = sor.u32 %s114, %s115
      %s117 = ssub.s32 %s30, %s41
      %s118 = sor.u32 %s116, %s117
      %p119 = scmp.eq.s32.totalorder %s118, 0
      %s121 = sadd.s32 %s120, 1
      %s122 = scalar_select %p119, %s120, %s121
      %p125 = pneg %p119
      %p126 = scmp.eq.s32.totalorder %s20, 31
      %p127 = por %p125, %p126
      %p128 = scmp.ne.s32.totalorder %s120, %s123
      %p129 = scmp.eq.s32.totalorder %s20, 0
      %p130 = por %p128, %p129
      %p131 = scmp.ne.s32.totalorder %s120, %s123
      %p132 = scmp.eq.s32.totalorder %s25, 31
      %p133 = por %p131, %p132
      %p134 = scmp.ne.s32.totalorder %s123, %s124
      %p135 = scmp.eq.s32.totalorder %s25, 0
      %p136 = por %p134, %p135
      %p137 = scmp.ne.s32.totalorder %s123, %s124
      %p138 = scmp.eq.s32.totalorder %s26, 31
      %p139 = por %p137, %p138
      %p141 = scmp.ne.s32.totalorder %s124, %s140
      %p142 = scmp.eq.s32.totalorder %s26, 0
      %p143 = por %p141, %p142
      %s144 = ssub.s32 %s27, %s53
      %s145 = ssub.s32 %s28, %s49
      %s146 = sor.u32 %s144, %s145
      %s147 = ssub.s32 %s30, %s41
      %s148 = sor.u32 %s146, %s147
      %p149 = scmp.eq.s32.totalorder %s148, 0
      %s151 = sadd.s32 %s150, 1
      %s152 = scalar_select %p149, %s150, %s151
      %p155 = pneg %p149
      %p156 = scmp.eq.s32.totalorder %s20, 31
      %p157 = por %p155, %p156
      %p158 = scmp.ne.s32.totalorder %s150, %s153
      %p159 = scmp.eq.s32.totalorder %s20, 0
      %p160 = por %p158, %p159
      %p161 = scmp.ne.s32.totalorder %s150, %s153
      %p162 = scmp.eq.s32.totalorder %s25, 31
      %p163 = por %p161, %p162
      %p164 = scmp.ne.s32.totalorder %s153, %s154
      %p165 = scmp.eq.s32.totalorder %s25, 0
      %p166 = por %p164, %p165
      %p167 = scmp.ne.s32.totalorder %s153, %s154
      %p168 = scmp.eq.s32.totalorder %s26, 31
      %p169 = por %p167, %p168
      %p171 = scmp.ne.s32.totalorder %s154, %s170
      %p172 = scmp.eq.s32.totalorder %s26, 0
      %p173 = por %p171, %p172
      %s175 = sadd.s32 %s174, 1
      %p178 = scmp.eq.s32.totalorder %s20, 31
      %p179 = scmp.ne.s32.totalorder %s174, %s176
      %p180 = scmp.eq.s32.totalorder %s20, 0
      %p181 = por %p179, %p180
      %p182 = scmp.ne.s32.totalorder %s174, %s176
      %p183 = scmp.eq.s32.totalorder %s25, 31
      %p184 = por %p182, %p183
      %p185 = scmp.ne.s32.totalorder %s176, %s177
      %p186 = scmp.eq.s32.totalorder %s25, 0
      %p187 = por %p185, %p186
      %p188 = scmp.ne.s32.totalorder %s176, %s177
      %p189 = scmp.eq.s32.totalorder %s26, 31
      %p190 = por %p188, %p189
      %p192 = scmp.ne.s32.totalorder %s177, %s191
      %p193 = scmp.eq.s32.totalorder %s26, 0
      %p194 = por %p192, %p193
      %s196 = sadd.s32 %s195, 1
      %p199 = scmp.eq.s32.totalorder %s20, 31
      %p200 = scmp.ne.s32.totalorder %s195, %s197
      %p201 = scmp.eq.s32.totalorder %s20, 0
      %p202 = por %p200, %p201
      %p203 = scmp.ne.s32.totalorder %s195, %s197
      %p204 = scmp.eq.s32.totalorder %s25, 31
      %p205 = por %p203, %p204
      %p206 = scmp.ne.s32.totalorder %s197, %s198
      %p207 = scmp.eq.s32.totalorder %s25, 0
      %p208 = por %p206, %p207
      %p209 = scmp.ne.s32.totalorder %s197, %s198
      %p210 = scmp.eq.s32.totalorder %s26, 31
      %p211 = por %p209, %p210
      %p213 = scmp.ne.s32.totalorder %s198, %s212
      %p214 = scmp.eq.s32.totalorder %s26, 0
      %p215 = por %p213, %p214
      %s216 = ssub.s32 %s27, %s53
      %s217 = ssub.s32 %s28, %s49
      %s218 = sor.u32 %s216, %s217
      %p219 = scmp.eq.s32.totalorder %s218, 0
      %s221 = sadd.s32 %s220, 1
      %s222 = scalar_select %p219, %s220, %s221
      %p225 = pneg %p219
      %p226 = scmp.eq.s32.totalorder %s20, 31
      %p227 = por %p225, %p226
      %p228 = scmp.ne.s32.totalorder %s220, %s223
      %p229 = scmp.eq.s32.totalorder %s20, 0
      %p230 = por %p228, %p229
      %p231 = scmp.ne.s32.totalorder %s220, %s223
      %p232 = scmp.eq.s32.totalorder %s25, 31
      %p233 = por %p231, %p232
      %p234 = scmp.ne.s32.totalorder %s223, %s224
      %p235 = scmp.eq.s32.totalorder %s25, 0
      %p236 = por %p234, %p235
      %p237 = scmp.ne.s32.totalorder %s223, %s224
      %p238 = scmp.eq.s32.totalorder %s26, 31
      %p239 = por %p237, %p238
      %p241 = scmp.ne.s32.totalorder %s224, %s240
      %p242 = scmp.eq.s32.totalorder %s26, 0
      %p243 = por %p241, %p242
      %s244 = ssub.s32 %s27, %s53
      %s245 = ssub.s32 %s28, %s49
      %s246 = sor.u32 %s244, %s245
      %p247 = scmp.eq.s32.totalorder %s246, 0
      %s249 = sadd.s32 %s248, 1
      %s250 = scalar_select %p247, %s248, %s249
      %p253 = pneg %p247
      %p254 = scmp.eq.s32.totalorder %s20, 31
      %p255 = por %p253, %p254
      %p256 = scmp.ne.s32.totalorder %s248, %s251
      %p257 = scmp.eq.s32.totalorder %s20, 0
      %p258 = por %p256, %p257
      %p259 = scmp.ne.s32.totalorder %s248, %s251
      %p260 = scmp.eq.s32.totalorder %s25, 31
      %p261 = por %p259, %p260
      %p262 = scmp.ne.s32.totalorder %s251, %s252
      %p263 = scmp.eq.s32.totalorder %s25, 0
      %p264 = por %p262, %p263
      %p265 = scmp.ne.s32.totalorder %s251, %s252
      %p266 = scmp.eq.s32.totalorder %s26, 31
      %p267 = por %p265, %p266
      %p269 = scmp.ne.s32.totalorder %s252, %s268
      %p270 = scmp.eq.s32.totalorder %s26, 0
      %p271 = por %p269, %p270
      %p272 = scmp.le.s32.totalorder 1, %s20
      %p273 = scmp.lt.s32.totalorder %s20, 33
      %p274 = pnand %p272, %p273
      %p275 = pneg %p274
      // Predicated region
      $region9: #{tpu_custom_call.1} parent=5 // pred_check
        _
      $region10: #{tpu_custom_call.1} parent=5 // pred_check_branch
        %277 = sbr.rel (%p274) target = $region12
      $region11: #{tpu_custom_call.1} parent=5 // pred_region
        %s278 = ssub.s32 %s20, 1
        // Predicated region
        $region13: #{tpu_custom_call.1} parent=11 // pred_check
          %p279 = pneg %p187
        $region14: #{tpu_custom_call.1} parent=11 // pred_check_branch
          %281 = sbr.rel (%p279) target = $region16
        $region15: #{tpu_custom_call.1} parent=11 // pred_region
          _
        $region16: #{tpu_custom_call.1} parent=11 // pred_fallthru
          _
        // Predicated region
        $region17: #{tpu_custom_call.1} parent=11 // pred_check
          %p282 = pneg %p208
        $region18: #{tpu_custom_call.1} parent=11 // pred_check_branch
          %284 = sbr.rel (%p282) target = $region20
        $region19: #{tpu_custom_call.1} parent=11 // pred_region
          _
        $region20: #{tpu_custom_call.1} parent=11 // pred_fallthru
          _
      $region12: #{tpu_custom_call.1} parent=5 // pred_fallthru
        _
      %p285 = scmp.lt.s32.totalorder %s20, 32
      // Predicated region
      $region21: #{tpu_custom_call.1} parent=5 // pred_check
        %p286 = pneg %p285
      $region22: #{tpu_custom_call.1} parent=5 // pred_check_branch
        %288 = sbr.rel (%p286) target = $region24
      $region23: #{tpu_custom_call.1} parent=5 // pred_region
        // Predicated region
        $region25: #{tpu_custom_call.1} parent=23 // pred_check
          %p289 = pneg %p70
        $region26: #{tpu_custom_call.1} parent=23 // pred_check_branch
          %291 = sbr.rel (%p289) target = $region28
        $region27: #{tpu_custom_call.1} parent=23 // pred_region
          %s292 = smul.u32 16, %s28
          %p293 = scmp.lt.s32.totalorder %s27, 1
          %s294 = scalar_select %p293, %s27, 1
          %p295 = scmp.lt.s32.totalorder %s29, 7
          %s296 = scalar_select %p295, %s29, 7
          %p297 = scmp.lt.s32.totalorder %s292, 15
          %s298 = scalar_select %p297, %s292, 15
          %s299 = smul.addr %s296, 16
          %s300 = sadd.s32 %s298, %s299
          %s301 = smul.addr %s294, 128
          %s302 = sadd.s32 %s300, %s301
          %s303 = smul.addr %s302, 4
          %s304 = scalar_lea.vmem %s0, %s303
          %s305 = smul.u32 16, %s28
        $region28: #{tpu_custom_call.1} parent=23 // pred_fallthru
          _
        // Predicated region
        $region29: #{tpu_custom_call.1} parent=23 // pred_check
          %p306 = pneg %p100
        $region30: #{tpu_custom_call.1} parent=23 // pred_check_branch
          %308 = sbr.rel (%p306) target = $region32
        $region31: #{tpu_custom_call.1} parent=23 // pred_region
          %s309 = sand.u32 %s90, 1
          %s310 = sand.u32 %s90, 1
          %s311 = smul.addr %s310, 32
          %s312 = scalar_lea.vmem [#allocation5], %s311
          %s313 = smul.addr %s29, 16
          %s314 = sadd.s32 %s30, %s313
          %s315 = smul.addr %s27, 128
          %s316 = sadd.s32 %s314, %s315
          %s317 = smul.addr %s316, 4
          %s318 = scalar_lea.vmem %s1, %s317
          // Predicated region
          $region33: #{tpu_custom_call.1} parent=31 // pred_check
            _
          $region34: #{tpu_custom_call.1} parent=31 // pred_check_branch
            %320 = sbr.rel (0) target = $region36
          $region35: #{tpu_custom_call.1} parent=31 // pred_region
            // Predicated region
            $region37: #{tpu_custom_call.1} parent=35 // pred_check
              _
            $region38: #{tpu_custom_call.1} parent=35 // pred_check_branch
              %322 = sbr.rel target = $region40
            $region39: #{tpu_custom_call.1} parent=35 // pred_region
              // Predicated region
              $region52: #{tpu_custom_call.1} parent=39 // pred_check
                _
              $region53: #{tpu_custom_call.1} parent=39 // pred_check_branch
                %351 = sbr.rel (0) target = $region55
              $region54: #{tpu_custom_call.1} parent=39 // pred_region
                loop: start=0, step=1, limit=1
                $region56: #{tpu_custom_call.1} parent=54 // loop_pre_header
                  _
                $region57: #{tpu_custom_call.1} parent=54 // loop_header
                  %s353 = sphi 0, %s357
                  %p354 = scmp.ge.s32.totalorder %s353, 1
                  %s358 = sphi %s318, %s318
                  %s359 = sphi %s312, %s312
                $region58: #{tpu_custom_call.1} parent=54 // loop_header_branch
                  %356 = sbr.rel (%p354) target = $region62
                $region59: #{tpu_custom_call.1} parent=54 // loop_body
                  _
                $region60: #{tpu_custom_call.1} parent=54 // loop_footer
                  %s357 = sadd.s32 1, %s353
                $region61: #{tpu_custom_call.1} parent=54 // loop_footer_branch
                  %352 = sbr.rel target = $region57
                $region62: #{tpu_custom_call.1} parent=54 // loop_exit
                  _
                loop: start=0, step=1, limit=1
                $region63: #{tpu_custom_call.1} parent=54 // loop_pre_header
                  _
                $region64: #{tpu_custom_call.1} parent=54 // loop_header
                  %s362 = sphi 0, %s366
                  %p363 = scmp.ge.s32.totalorder %s362, 1
                  %s367 = sphi %s318, %s318
                  %s368 = sphi %s312, %s312
                $region65: #{tpu_custom_call.1} parent=54 // loop_header_branch
                  %365 = sbr.rel (%p363) target = $region69
                $region66: #{tpu_custom_call.1} parent=54 // loop_body
                  %v369 = vld [vmem:[%s367] sm:$0xf]
                  %370 = vst [vmem:[%s368] sm:$0xf] %v369
                  %v371 = vld [vmem:[%s367 + $0x8] sm:$0xf]
                  %372 = vst [vmem:[%s368 + $0x4] sm:$0xf] %v371
                  %v373 = vld [vmem:[%s367 + $0x10] sm:$0xf]
                  %374 = vst [vmem:[%s368 + $0x8] sm:$0xf] %v373
                  %v375 = vld [vmem:[%s367 + $0x18] sm:$0xf]
                  %376 = vst [vmem:[%s368 + $0xc] sm:$0xf] %v375
                  %v377 = vld [vmem:[%s367 + $0x20] sm:$0xf]
                  %378 = vst [vmem:[%s368 + $0x10] sm:$0xf] %v377
                  %v379 = vld [vmem:[%s367 + $0x28] sm:$0xf]
                  %380 = vst [vmem:[%s368 + $0x14] sm:$0xf] %v379
                  %v381 = vld [vmem:[%s367 + $0x30] sm:$0xf]
                  %382 = vst [vmem:[%s368 + $0x18] sm:$0xf] %v381
                  %v383 = vld [vmem:[%s367 + $0x38] sm:$0xf]
                  %384 = vst [vmem:[%s368 + $0x1c] sm:$0xf] %v383
                $region67: #{tpu_custom_call.1} parent=54 // loop_footer
                  %s366 = sadd.s32 1, %s362
                $region68: #{tpu_custom_call.1} parent=54 // loop_footer_branch
                  %361 = sbr.rel target = $region64
                $region69: #{tpu_custom_call.1} parent=54 // loop_exit
                  _
              $region55: #{tpu_custom_call.1} parent=39 // pred_fallthru
                _
            $region40: #{tpu_custom_call.1} parent=35 // pred_fallthru
              _
            // Predicated region
            $region41: #{tpu_custom_call.1} parent=35 // pred_check
              _
            $region42: #{tpu_custom_call.1} parent=35 // pred_check_branch
              %324 = sbr.rel (0) target = $region44
            $region43: #{tpu_custom_call.1} parent=35 // pred_region
              loop: start=0, step=1, limit=1
              $region45: #{tpu_custom_call.1} parent=43 // loop_pre_header
                _
              $region46: #{tpu_custom_call.1} parent=43 // loop_header
                %s327 = sphi 0, %s331
                %p328 = scmp.ge.s32.totalorder %s327, 1
                %s332 = sphi %s318, %s318
                %s333 = sphi %s312, %s312
              $region47: #{tpu_custom_call.1} parent=43 // loop_header_branch
                %330 = sbr.rel (%p328) target = $region51
              $region48: #{tpu_custom_call.1} parent=43 // loop_body
                %v334 = vld [vmem:[%s332] sm:$0xf]
                %335 = vst [vmem:[%s333] sm:$0xf] %v334
                %v336 = vld [vmem:[%s332 + $0x8] sm:$0xf]
                %337 = vst [vmem:[%s333 + $0x4] sm:$0xf] %v336
                %v338 = vld [vmem:[%s332 + $0x10] sm:$0xf]
                %339 = vst [vmem:[%s333 + $0x8] sm:$0xf] %v338
                %v340 = vld [vmem:[%s332 + $0x18] sm:$0xf]
                %341 = vst [vmem:[%s333 + $0xc] sm:$0xf] %v340
                %v342 = vld [vmem:[%s332 + $0x20] sm:$0xf]
                %343 = vst [vmem:[%s333 + $0x10] sm:$0xf] %v342
                %v344 = vld [vmem:[%s332 + $0x28] sm:$0xf]
                %345 = vst [vmem:[%s333 + $0x14] sm:$0xf] %v344
                %v346 = vld [vmem:[%s332 + $0x30] sm:$0xf]
                %347 = vst [vmem:[%s333 + $0x18] sm:$0xf] %v346
                %v348 = vld [vmem:[%s332 + $0x38] sm:$0xf]
                %349 = vst [vmem:[%s333 + $0x1c] sm:$0xf] %v348
              $region49: #{tpu_custom_call.1} parent=43 // loop_footer
                %s331 = sadd.s32 1, %s327
              $region50: #{tpu_custom_call.1} parent=43 // loop_footer_branch
                %326 = sbr.rel target = $region46
              $region51: #{tpu_custom_call.1} parent=43 // loop_exit
                _
            $region44: #{tpu_custom_call.1} parent=35 // pred_fallthru
              _
          $region36: #{tpu_custom_call.1} parent=31 // pred_fallthru
            _
          %385 = vnop
        $region32: #{tpu_custom_call.1} parent=23 // pred_fallthru
          _
        // Predicated region
        $region70: #{tpu_custom_call.1} parent=23 // pred_check
          %p386 = pneg %p130
        $region71: #{tpu_custom_call.1} parent=23 // pred_check_branch
          %388 = sbr.rel (%p386) target = $region73
        $region72: #{tpu_custom_call.1} parent=23 // pred_region
          %s389 = smul.u32 16, %s30
          %p390 = scmp.lt.s32.totalorder %s27, 1
          %s391 = scalar_select %p390, %s27, 1
          %p392 = scmp.lt.s32.totalorder %s29, 7
          %s393 = scalar_select %p392, %s29, 7
          %p394 = scmp.lt.s32.totalorder %s389, 31
          %s395 = scalar_select %p394, %s389, 31
          %s396 = smul.addr %s393, 32
          %s397 = sadd.s32 %s395, %s396
          %s398 = smul.addr %s391, 256
          %s399 = sadd.s32 %s397, %s398
          %s400 = smul.addr %s399, 4
          %s401 = scalar_lea.vmem %s2, %s400
          %s402 = smul.u32 16, %s30
        $region73: #{tpu_custom_call.1} parent=23 // pred_fallthru
          _
        // Predicated region
        $region74: #{tpu_custom_call.1} parent=23 // pred_check
          %p403 = pneg %p160
        $region75: #{tpu_custom_call.1} parent=23 // pred_check_branch
          %405 = sbr.rel (%p403) target = $region77
        $region76: #{tpu_custom_call.1} parent=23 // pred_region
          %s406 = sand.u32 %s150, 1
          %s407 = sand.u32 %s150, 1
          %s408 = smul.addr %s407, 32
          %s409 = scalar_lea.vmem [#allocation6], %s408
          %s410 = smul.u32 4, %s28
          %s411 = smul.addr %s410, 2
          %s412 = sadd.s32 %s30, %s411
          %s413 = smul.addr %s27, 8
          %s414 = sadd.s32 %s412, %s413
          %s415 = smul.addr %s414, 8
          %s416 = scalar_lea.vmem %s3, %s415
          // Predicated region
          $region78: #{tpu_custom_call.1} parent=76 // pred_check
            _
          $region79: #{tpu_custom_call.1} parent=76 // pred_check_branch
            %418 = sbr.rel (0) target = $region81
          $region80: #{tpu_custom_call.1} parent=76 // pred_region
            // Predicated region
            $region82: #{tpu_custom_call.1} parent=80 // pred_check
              _
            $region83: #{tpu_custom_call.1} parent=80 // pred_check_branch
              %420 = sbr.rel (0) target = $region85
            $region84: #{tpu_custom_call.1} parent=80 // pred_region
              // Predicated region
              $region97: #{tpu_custom_call.1} parent=84 // pred_check
                _
              $region98: #{tpu_custom_call.1} parent=84 // pred_check_branch
                %441 = sbr.rel (0) target = $region100
              $region99: #{tpu_custom_call.1} parent=84 // pred_region
                loop: start=0, step=1, limit=1
                $region101: #{tpu_custom_call.1} parent=99 // loop_pre_header
                  _
                $region102: #{tpu_custom_call.1} parent=99 // loop_header
                  %s443 = sphi 0, %s447
                  %p444 = scmp.ge.s32.totalorder %s443, 1
                  %s448 = sphi %s416, %s416
                  %s449 = sphi %s409, %s409
                $region103: #{tpu_custom_call.1} parent=99 // loop_header_branch
                  %446 = sbr.rel (%p444) target = $region107
                $region104: #{tpu_custom_call.1} parent=99 // loop_body
                  %v450 = vld [vmem:[%s448] sm:$0xff]
                  %451 = vst [vmem:[%s449] sm:$0xff] %v450
                  %v452 = vld [vmem:[%s448 + $0x10] sm:$0xff]
                  %453 = vst [vmem:[%s449 + $0x8] sm:$0xff] %v452
                  %v454 = vld [vmem:[%s448 + $0x20] sm:$0xff]
                  %455 = vst [vmem:[%s449 + $0x10] sm:$0xff] %v454
                  %v456 = vld [vmem:[%s448 + $0x30] sm:$0xff]
                  %457 = vst [vmem:[%s449 + $0x18] sm:$0xff] %v456
                $region105: #{tpu_custom_call.1} parent=99 // loop_footer
                  %s447 = sadd.s32 1, %s443
                $region106: #{tpu_custom_call.1} parent=99 // loop_footer_branch
                  %442 = sbr.rel target = $region102
                $region107: #{tpu_custom_call.1} parent=99 // loop_exit
                  _
              $region100: #{tpu_custom_call.1} parent=84 // pred_fallthru
                _
              // Predicated region
              $region108: #{tpu_custom_call.1} parent=84 // pred_check
                _
              $region109: #{tpu_custom_call.1} parent=84 // pred_check_branch
                %459 = sbr.rel target = $region111
              $region110: #{tpu_custom_call.1} parent=84 // pred_region
                _
              $region111: #{tpu_custom_call.1} parent=84 // pred_fallthru
                _
            $region85: #{tpu_custom_call.1} parent=80 // pred_fallthru
              _
            // Predicated region
            $region86: #{tpu_custom_call.1} parent=80 // pred_check
              _
            $region87: #{tpu_custom_call.1} parent=80 // pred_check_branch
              %422 = sbr.rel target = $region89
            $region88: #{tpu_custom_call.1} parent=80 // pred_region
              loop: start=0, step=1, limit=1
              $region90: #{tpu_custom_call.1} parent=88 // loop_pre_header
                _
              $region91: #{tpu_custom_call.1} parent=88 // loop_header
                %s425 = sphi 0, %s429
                %p426 = scmp.ge.s32.totalorder %s425, 1
                %s430 = sphi %s416, %s416
                %s431 = sphi %s409, %s409
              $region92: #{tpu_custom_call.1} parent=88 // loop_header_branch
                %428 = sbr.rel (%p426) target = $region96
              $region93: #{tpu_custom_call.1} parent=88 // loop_body
                %v432 = vld [vmem:[%s430] sm:$0xff]
                %433 = vst [vmem:[%s431] sm:$0xff] %v432
                %v434 = vld [vmem:[%s430 + $0x10] sm:$0xff]
                %435 = vst [vmem:[%s431 + $0x8] sm:$0xff] %v434
                %v436 = vld [vmem:[%s430 + $0x20] sm:$0xff]
                %437 = vst [vmem:[%s431 + $0x10] sm:$0xff] %v436
                %v438 = vld [vmem:[%s430 + $0x30] sm:$0xff]
                %439 = vst [vmem:[%s431 + $0x18] sm:$0xff] %v438
              $region94: #{tpu_custom_call.1} parent=88 // loop_footer
                %s429 = sadd.s32 1, %s425
              $region95: #{tpu_custom_call.1} parent=88 // loop_footer_branch
                %424 = sbr.rel target = $region91
              $region96: #{tpu_custom_call.1} parent=88 // loop_exit
                _
            $region89: #{tpu_custom_call.1} parent=80 // pred_fallthru
              _
          $region81: #{tpu_custom_call.1} parent=76 // pred_fallthru
            _
          %460 = vnop
        $region77: #{tpu_custom_call.1} parent=23 // pred_fallthru
          _
      $region24: #{tpu_custom_call.1} parent=5 // pred_fallthru
        _
      %p461 = scmp.le.s32.totalorder 1, %s20
      %p462 = scmp.lt.s32.totalorder %s20, 33
      %p463 = pnand %p461, %p462
      %p464 = pneg %p463
      // Predicated region
      $region112: #{tpu_custom_call.1} parent=5 // pred_check
        _
      $region113: #{tpu_custom_call.1} parent=5 // pred_check_branch
        %466 = sbr.rel (%p463) target = $region115
      $region114: #{tpu_custom_call.1} parent=5 // pred_region
        %s467 = ssub.s32 %s20, 1
        %s468 = sand.u32 %s93, 1
        %s469 = sand.u32 %s93, 1
        %s470 = smul.addr %s469, 32
        %s471 = scalar_lea.vmem [#allocation5], %s470
        // Predicated region
        $region116: #{tpu_custom_call.1} parent=114 // pred_check
          %p472 = pneg %p106
        $region117: #{tpu_custom_call.1} parent=114 // pred_check_branch
          %474 = sbr.rel (%p472) target = $region119
        $region118: #{tpu_custom_call.1} parent=114 // pred_region
          _
        $region119: #{tpu_custom_call.1} parent=114 // pred_fallthru
          _
        %s475 = sand.u32 %s153, 1
        %s476 = sand.u32 %s153, 1
        %s477 = smul.addr %s476, 32
        %s478 = scalar_lea.vmem [#allocation6], %s477
        // Predicated region
        $region120: #{tpu_custom_call.1} parent=114 // pred_check
          %p479 = pneg %p166
        $region121: #{tpu_custom_call.1} parent=114 // pred_check_branch
          %481 = sbr.rel (%p479) target = $region123
        $region122: #{tpu_custom_call.1} parent=114 // pred_region
          _
        $region123: #{tpu_custom_call.1} parent=114 // pred_fallthru
          _
        %s482 = smul.u32 16, %s32
        %p483 = scmp.lt.s32.totalorder %s31, 1
        %s484 = scalar_select %p483, %s31, 1
        %p485 = scmp.lt.s32.totalorder %s33, 7
        %s486 = scalar_select %p485, %s33, 7
        %p487 = scmp.lt.s32.totalorder %s482, 15
        %s488 = scalar_select %p487, %s482, 15
        %s489 = smul.addr %s486, 16
        %s490 = sadd.s32 %s488, %s489
        %s491 = smul.addr %s484, 128
        %s492 = sadd.s32 %s490, %s491
        %s493 = smul.addr %s492, 4
        %s494 = scalar_lea.vmem %s0, %s493
        %p495 = pneg %p76
        %p496 = pneg %p73
        %s497 = sand.u32 %s93, 1
        %s498 = sand.u32 %s93, 1
        %s499 = smul.addr %s498, 32
        %s500 = scalar_lea.vmem [#allocation5], %s499
        %p501 = pneg %p106
        %p502 = pneg %p103
        %s503 = smul.u32 16, %s34
        %p504 = scmp.lt.s32.totalorder %s31, 1
        %s505 = scalar_select %p504, %s31, 1
        %p506 = scmp.lt.s32.totalorder %s33, 7
        %s507 = scalar_select %p506, %s33, 7
        %p508 = scmp.lt.s32.totalorder %s503, 31
        %s509 = scalar_select %p508, %s503, 31
        %s510 = smul.addr %s507, 32
        %s511 = sadd.s32 %s509, %s510
        %s512 = smul.addr %s505, 256
        %s513 = sadd.s32 %s511, %s512
        %s514 = smul.addr %s513, 4
        %s515 = scalar_lea.vmem %s2, %s514
        %p516 = pneg %p136
        %p517 = pneg %p133
        %s518 = sand.u32 %s153, 1
        %s519 = sand.u32 %s153, 1
        %s520 = smul.addr %s519, 32
        %s521 = scalar_lea.vmem [#allocation6], %s520
        %p522 = pneg %p166
        %p523 = pneg %p163
        %p524 = pneg %p187
        %p525 = pneg %p184
        %p526 = pneg %p208
        %p527 = pneg %p205
        %p528 = pneg %p236
        %p529 = pneg %p233
        %s530 = sand.u32 %s223, 1
        %s531 = scalar_lea.sflag [#allocation8], %s530
        %s532 = sand.u32 %s223, 1
        %s533 = smul.addr %s532, 256
        %s534 = scalar_lea.vmem [#allocation7], %s533
        %p535 = pneg %p264
        %p536 = pneg %p261
        %s537 = sand.u32 %s251, 1
        %s538 = scalar_lea.sflag [#allocation10], %s537
        %s539 = sand.u32 %s251, 1
        %s540 = smul.addr %s539, 256
        %s541 = scalar_lea.vmem [#allocation9], %s540
        %s542 = smul.u32 16, %s32
        %p543 = scmp.lt.s32.totalorder %s31, 1
        %s544 = scalar_select %p543, %s31, 1
        %p545 = scmp.lt.s32.totalorder %s33, 7
        %s546 = scalar_select %p545, %s33, 7
        %p547 = scmp.lt.s32.totalorder %s542, 15
        %s548 = scalar_select %p547, %s542, 15
        %s549 = smul.addr %s546, 16
        %s550 = sadd.s32 %s548, %s549
        %s551 = smul.addr %s544, 128
        %s552 = sadd.s32 %s550, %s551
        %s553 = smul.addr %s552, 4
        %s554 = scalar_lea.vmem %s0, %s553
        %s555 = smul.u32 16, %s32
        %s556 = smul.u32 16, %s34
        %p557 = scmp.lt.s32.totalorder %s31, 1
        %s558 = scalar_select %p557, %s31, 1
        %p559 = scmp.lt.s32.totalorder %s33, 7
        %s560 = scalar_select %p559, %s33, 7
        %p561 = scmp.lt.s32.totalorder %s556, 31
        %s562 = scalar_select %p561, %s556, 31
        %s563 = smul.addr %s560, 32
        %s564 = sadd.s32 %s562, %s563
        %s565 = smul.addr %s558, 256
        %s566 = sadd.s32 %s564, %s565
        %s567 = smul.addr %s566, 4
        %s568 = scalar_lea.vmem %s2, %s567
        %s569 = smul.u32 16, %s34
        %s570 = smul.u32 4, %s32
        %s571 = smul.u32 16, %s32
        %s572 = smul.u32 16, %s32
        %p576 = scmp.eq.s32.totalorder %s34, 0
        // Predicated region
        $region124: #{tpu_custom_call.1} parent=114 // pred_check
          %p577 = pneg %p576
        $region125: #{tpu_custom_call.1} parent=114 // pred_check_branch
          %579 = sbr.rel (%p577) target = $region127
        $region126: #{tpu_custom_call.1} parent=114 // pred_region
          %vm580 = vcmask 7168
          %581 = vst.msk [vmem:[#allocation2] sm:$0xff] %vm580, -1e+30
          %582 = vst.msk [vmem:[#allocation2 + $0x8] sm:$0xff] %vm580, -1e+30
          %583 = vst.msk [vmem:[#allocation2 + $0x10] sm:$0xff] %vm580, -1e+30
          %584 = vst.msk [vmem:[#allocation2 + $0x18] sm:$0xff] %vm580, -1e+30
          %585 = vst.msk [vmem:[#allocation2 + $0x20] sm:$0xff] %vm580, -1e+30
          %586 = vst.msk [vmem:[#allocation2 + $0x28] sm:$0xff] %vm580, -1e+30
          %587 = vst.msk [vmem:[#allocation2 + $0x30] sm:$0xff] %vm580, -1e+30
          %588 = vst.msk [vmem:[#allocation2 + $0x38] sm:$0xff] %vm580, -1e+30
          %589 = vst.msk [vmem:[#allocation2 + $0x40] sm:$0xff] %vm580, -1e+30
          %590 = vst.msk [vmem:[#allocation2 + $0x48] sm:$0xff] %vm580, -1e+30
          %591 = vst.msk [vmem:[#allocation2 + $0x50] sm:$0xff] %vm580, -1e+30
          %592 = vst.msk [vmem:[#allocation2 + $0x58] sm:$0xff] %vm580, -1e+30
          %593 = vst.msk [vmem:[#allocation2 + $0x60] sm:$0xff] %vm580, -1e+30
          %594 = vst.msk [vmem:[#allocation2 + $0x68] sm:$0xff] %vm580, -1e+30
          %595 = vst.msk [vmem:[#allocation2 + $0x70] sm:$0xff] %vm580, -1e+30
          %596 = vst.msk [vmem:[#allocation2 + $0x78] sm:$0xff] %vm580, -1e+30
          %597 = vst.msk [vmem:[#allocation3] sm:$0xff] %vm580, 0.0
          %598 = vst.msk [vmem:[#allocation3 + $0x8] sm:$0xff] %vm580, 0.0
          %599 = vst.msk [vmem:[#allocation3 + $0x10] sm:$0xff] %vm580, 0.0
          %600 = vst.msk [vmem:[#allocation3 + $0x18] sm:$0xff] %vm580, 0.0
          %601 = vst.msk [vmem:[#allocation3 + $0x20] sm:$0xff] %vm580, 0.0
          %602 = vst.msk [vmem:[#allocation3 + $0x28] sm:$0xff] %vm580, 0.0
          %603 = vst.msk [vmem:[#allocation3 + $0x30] sm:$0xff] %vm580, 0.0
          %604 = vst.msk [vmem:[#allocation3 + $0x38] sm:$0xff] %vm580, 0.0
          %605 = vst.msk [vmem:[#allocation3 + $0x40] sm:$0xff] %vm580, 0.0
          %606 = vst.msk [vmem:[#allocation3 + $0x48] sm:$0xff] %vm580, 0.0
          %607 = vst.msk [vmem:[#allocation3 + $0x50] sm:$0xff] %vm580, 0.0
          %608 = vst.msk [vmem:[#allocation3 + $0x58] sm:$0xff] %vm580, 0.0
          %609 = vst.msk [vmem:[#allocation3 + $0x60] sm:$0xff] %vm580, 0.0
          %610 = vst.msk [vmem:[#allocation3 + $0x68] sm:$0xff] %vm580, 0.0
          %611 = vst.msk [vmem:[#allocation3 + $0x70] sm:$0xff] %vm580, 0.0
          %612 = vst.msk [vmem:[#allocation3 + $0x78] sm:$0xff] %vm580, 0.0
          %vm613 = vcmask 523264
          %614 = vst.msk [vmem:[#allocation4] sm:$0xff] %vm613, 0.0
          %615 = vst.msk [vmem:[#allocation4 + $0x8] sm:$0xff] %vm613, 0.0
          %616 = vst.msk [vmem:[#allocation4 + $0x10] sm:$0xff] %vm613, 0.0
          %617 = vst.msk [vmem:[#allocation4 + $0x18] sm:$0xff] %vm613, 0.0
          %618 = vst.msk [vmem:[#allocation4 + $0x20] sm:$0xff] %vm613, 0.0
          %619 = vst.msk [vmem:[#allocation4 + $0x28] sm:$0xff] %vm613, 0.0
          %620 = vst.msk [vmem:[#allocation4 + $0x30] sm:$0xff] %vm613, 0.0
          %621 = vst.msk [vmem:[#allocation4 + $0x38] sm:$0xff] %vm613, 0.0
          %622 = vst.msk [vmem:[#allocation4 + $0x40] sm:$0xff] %vm613, 0.0
          %623 = vst.msk [vmem:[#allocation4 + $0x48] sm:$0xff] %vm613, 0.0
          %624 = vst.msk [vmem:[#allocation4 + $0x50] sm:$0xff] %vm613, 0.0
          %625 = vst.msk [vmem:[#allocation4 + $0x58] sm:$0xff] %vm613, 0.0
          %626 = vst.msk [vmem:[#allocation4 + $0x60] sm:$0xff] %vm613, 0.0
          %627 = vst.msk [vmem:[#allocation4 + $0x68] sm:$0xff] %vm613, 0.0
          %628 = vst.msk [vmem:[#allocation4 + $0x70] sm:$0xff] %vm613, 0.0
          %629 = vst.msk [vmem:[#allocation4 + $0x78] sm:$0xff] %vm613, 0.0
        $region127: #{tpu_custom_call.1} parent=114 // pred_fallthru
          _
        %v630 = vld [vmem:[%s554] sm:$0xf]
        %v631 = vld [vmem:[%s554 + $0x4] sm:$0xf]
        %v632 = vld [vmem:[%s554 + $0x8] sm:$0xf]
        %v633 = vld [vmem:[%s554 + $0xc] sm:$0xf]
        %v634 = vld [vmem:[%s554 + $0x10] sm:$0xf]
        %v635 = vld [vmem:[%s554 + $0x14] sm:$0xf]
        %v636 = vld [vmem:[%s554 + $0x18] sm:$0xf]
        %v637 = vld [vmem:[%s554 + $0x1c] sm:$0xf]
        %v638 = vld [vmem:[%s554 + $0x20] sm:$0xf]
        %v639 = vld [vmem:[%s554 + $0x24] sm:$0xf]
        %v640 = vld [vmem:[%s554 + $0x28] sm:$0xf]
        %v641 = vld [vmem:[%s554 + $0x2c] sm:$0xf]
        %v642 = vld [vmem:[%s554 + $0x30] sm:$0xf]
        %v643 = vld [vmem:[%s554 + $0x34] sm:$0xf]
        %v644 = vld [vmem:[%s554 + $0x38] sm:$0xf]
        %v645 = vld [vmem:[%s554 + $0x3c] sm:$0xf]
        %v646 = vld [vmem:[%s471] sm:$0xf]
        %v647 = vld [vmem:[%s471 + $0x4] sm:$0xf]
        %v648 = vld [vmem:[%s471 + $0x8] sm:$0xf]
        %v649 = vld [vmem:[%s471 + $0xc] sm:$0xf]
        %v650 = vld [vmem:[%s471 + $0x10] sm:$0xf]
        %v651 = vld [vmem:[%s471 + $0x14] sm:$0xf]
        %v652 = vld [vmem:[%s471 + $0x18] sm:$0xf]
        %v653 = vld [vmem:[%s471 + $0x1c] sm:$0xf]
        %v654 = vld [vmem:[%s568] sm:$0xf]
        %v655 = vld [vmem:[%s568 + $0x4] sm:$0xf]
        %v656 = vld [vmem:[%s568 + $0x8] sm:$0xf]
        %v657 = vld [vmem:[%s568 + $0xc] sm:$0xf]
        %v658 = vld [vmem:[%s568 + $0x10] sm:$0xf]
        %v659 = vld [vmem:[%s568 + $0x14] sm:$0xf]
        %v660 = vld [vmem:[%s568 + $0x18] sm:$0xf]
        %v661 = vld [vmem:[%s568 + $0x1c] sm:$0xf]
        %v662 = vld [vmem:[%s568 + $0x20] sm:$0xf]
        %v663 = vld [vmem:[%s568 + $0x24] sm:$0xf]
        %v664 = vld [vmem:[%s568 + $0x28] sm:$0xf]
        %v665 = vld [vmem:[%s568 + $0x2c] sm:$0xf]
        %v666 = vld [vmem:[%s568 + $0x30] sm:$0xf]
        %v667 = vld [vmem:[%s568 + $0x34] sm:$0xf]
        %v668 = vld [vmem:[%s568 + $0x38] sm:$0xf]
        %v669 = vld [vmem:[%s568 + $0x3c] sm:$0xf]
        %v686 = vunpack.c.l.b16 %v630
        %v687 = vunpack.c.l.b16 %v631
        %v688 = vunpack.c.l.b16 %v632
        %v689 = vunpack.c.l.b16 %v633
        %v690 = vunpack.c.l.b16 %v634
        %v691 = vunpack.c.l.b16 %v635
        %v692 = vunpack.c.l.b16 %v636
        %v693 = vunpack.c.l.b16 %v637
        %v694 = vunpack.c.l.b16 %v638
        %v695 = vunpack.c.l.b16 %v639
        %v696 = vunpack.c.l.b16 %v640
        %v697 = vunpack.c.l.b16 %v641
        %v698 = vunpack.c.l.b16 %v642
        %v699 = vunpack.c.l.b16 %v643
        %v700 = vunpack.c.l.b16 %v644
        %v701 = vunpack.c.l.b16 %v645
        %v702 = vpack.c.b16 %v687, %v686
        %v703 = vpack.c.b16 %v689, %v688
        %v704 = vpack.c.b16 %v691, %v690
        %v705 = vpack.c.b16 %v693, %v692
        %v706 = vpack.c.b16 %v695, %v694
        %v707 = vpack.c.b16 %v697, %v696
        %v708 = vpack.c.b16 %v699, %v698
        %v709 = vpack.c.b16 %v701, %v700
        %v718 = vunpack.c.l.b16 %v646
        %v719 = vunpack.c.l.b16 %v647
        %v720 = vunpack.c.l.b16 %v648
        %v721 = vunpack.c.l.b16 %v649
        %v722 = vunpack.c.l.b16 %v650
        %v723 = vunpack.c.l.b16 %v651
        %v724 = vunpack.c.l.b16 %v652
        %v725 = vunpack.c.l.b16 %v653
        %v726 = vpack.c.b16 %v719, %v718
        %v727 = vpack.c.b16 %v721, %v720
        %v728 = vpack.c.b16 %v723, %v722
        %v729 = vpack.c.b16 %v725, %v724
        %vm734 = vcmask 523264
        %v736 = vsel %vm734, %v702, 0
        %v739 = vsel %vm734, %v703, 0
        %v742 = vsel %vm734, %v704, 0
        %v745 = vsel %vm734, %v705, 0
        %v748 = vsel %vm734, %v706, 0
        %v751 = vsel %vm734, %v707, 0
        %v754 = vsel %vm734, %v708, 0
        %v757 = vsel %vm734, %v709, 0
        %759 = vmatprep.subr.bf16.mxu0 0
        %760 = vmatpush1.bf16.msra.mxu0 %v726
        %761 = vmatprep.subr.bf16.mxu0 0
        %762 = vmatpush1.bf16.msra.mxu0 %v727
        %763 = vmatprep.subr.bf16.mxu0 0
        %764 = vmatpush1.bf16.msra.mxu0 %v728
        %765 = vmatprep.subr.bf16.mxu0 0
        %766 = vmatpush1.bf16.msra.mxu0 %v729
        %767 = vmatprep.subr.bf16.mxu0 0
        %768 = vmatpush1.bf16.msra.mxu0 0
        %769 = vmatprep.subr.bf16.mxu0 0
        %770 = vmatpush1.bf16.msra.mxu0 0
        %771 = vmatprep.subr.bf16.mxu0 0
        %772 = vmatpush1.bf16.msra.mxu0 0
        %773 = vmatprep.subr.bf16.mxu0 0
        %774 = vmatpush1.bf16.msra.mxu0 0
        %775 = vmatprep.subr.bf16.mxu0 0
        %776 = vmatpush1.bf16.msra.mxu0 0
        %777 = vmatprep.subr.bf16.mxu0 0
        %778 = vmatpush1.bf16.msra.mxu0 0
        %779 = vmatprep.subr.bf16.mxu0 0
        %780 = vmatpush1.bf16.msra.mxu0 0
        %781 = vmatprep.subr.bf16.mxu0 0
        %782 = vmatpush1.bf16.msra.mxu0 0
        %783 = vmatprep.subr.bf16.mxu0 0
        %784 = vmatpush1.bf16.msra.mxu0 0
        %785 = vmatprep.subr.bf16.mxu0 0
        %786 = vmatpush1.bf16.msra.mxu0 0
        %787 = vmatprep.subr.bf16.mxu0 0
        %788 = vmatpush1.bf16.msra.mxu0 0
        %789 = vmatprep.subr.bf16.mxu0 0
        %790 = vmatpush1.bf16.msra.mxu0 0
        %791 = vmatprep.mubr.bf16.mxu0 0
        %792 = vmatmul.mubr.bf16.gmra.mrb[0].mxu0 %v736
        %v793 = vpop.f32.mrb[0].mxu0
        %v794 = vadd.f32 0.0, %v793
        %v795 = vpop.f32.mrb[0].mxu0
        %v796 = vpop.f32.mrb[0].mxu0
        %v797 = vadd.f32 0.0, %v796
        %v798 = vpop.f32.mrb[0].mxu0
        %799 = vmatprep.mubr.bf16.mxu0 0
        %800 = vmatmul.mubr.bf16.gmra.mrb[0].mxu0 %v739
        %v801 = vpop.f32.mrb[0].mxu0
        %v802 = vadd.f32 0.0, %v801
        %v803 = vpop.f32.mrb[0].mxu0
        %v804 = vpop.f32.mrb[0].mxu0
        %v805 = vadd.f32 0.0, %v804
        %v806 = vpop.f32.mrb[0].mxu0
        %807 = vmatprep.mubr.bf16.mxu0 0
        %808 = vmatmul.mubr.bf16.gmra.mrb[0].mxu0 %v742
        %v809 = vpop.f32.mrb[0].mxu0
        %v810 = vadd.f32 0.0, %v809
        %v811 = vpop.f32.mrb[0].mxu0
        %v812 = vpop.f32.mrb[0].mxu0
        %v813 = vadd.f32 0.0, %v812
        %v814 = vpop.f32.mrb[0].mxu0
        %815 = vmatprep.mubr.bf16.mxu0 0
        %816 = vmatmul.mubr.bf16.gmra.mrb[0].mxu0 %v745
        %v817 = vpop.f32.mrb[0].mxu0
        %v818 = vadd.f32 0.0, %v817
        %v819 = vpop.f32.mrb[0].mxu0
        %v820 = vpop.f32.mrb[0].mxu0
        %v821 = vadd.f32 0.0, %v820
        %v822 = vpop.f32.mrb[0].mxu0
        %823 = vmatprep.mubr.bf16.mxu0 0
        %824 = vmatmul.mubr.bf16.gmra.mrb[0].mxu0 %v748
        %v825 = vpop.f32.mrb[0].mxu0
        %v826 = vadd.f32 0.0, %v825
        %v827 = vpop.f32.mrb[0].mxu0
        %v828 = vpop.f32.mrb[0].mxu0
        %v829 = vadd.f32 0.0, %v828
        %v830 = vpop.f32.mrb[0].mxu0
        %831 = vmatprep.mubr.bf16.mxu0 0
        %832 = vmatmul.mubr.bf16.gmra.mrb[0].mxu0 %v751
        %v833 = vpop.f32.mrb[0].mxu0
        %v834 = vadd.f32 0.0, %v833
        %v835 = vpop.f32.mrb[0].mxu0
        %v836 = vpop.f32.mrb[0].mxu0
        %v837 = vadd.f32 0.0, %v836
        %v838 = vpop.f32.mrb[0].mxu0
        %839 = vmatprep.mubr.bf16.mxu0 0
        %840 = vmatmul.mubr.bf16.gmra.mrb[0].mxu0 %v754
        %v841 = vpop.f32.mrb[0].mxu0
        %v842 = vadd.f32 0.0, %v841
        %v843 = vpop.f32.mrb[0].mxu0
        %v844 = vpop.f32.mrb[0].mxu0
        %v845 = vadd.f32 0.0, %v844
        %v846 = vpop.f32.mrb[0].mxu0
        %847 = vmatprep.mubr.bf16.mxu0 0
        %848 = vmatmul.mubr.bf16.gmra.mrb[0].mxu0 %v757
        %v849 = vpop.f32.mrb[0].mxu0
        %v850 = vadd.f32 0.0, %v849
        %v851 = vpop.f32.mrb[0].mxu0
        %v852 = vpop.f32.mrb[0].mxu0
        %v853 = vadd.f32 0.0, %v852
        %v854 = vpop.f32.mrb[0].mxu0
        %855 = vdwg.mxu0
        %v856 = vmul.f32 %v794, 0.125
        %v857 = vmul.f32 %v797, 0.125
        %v858 = vmul.f32 %v802, 0.125
        %v859 = vmul.f32 %v805, 0.125
        %v860 = vmul.f32 %v810, 0.125
        %v861 = vmul.f32 %v813, 0.125
        %v862 = vmul.f32 %v818, 0.125
        %v863 = vmul.f32 %v821, 0.125
        %v864 = vmul.f32 %v826, 0.125
        %v865 = vmul.f32 %v829, 0.125
        %v866 = vmul.f32 %v834, 0.125
        %v867 = vmul.f32 %v837, 0.125
        %v868 = vmul.f32 %v842, 0.125
        %v869 = vmul.f32 %v845, 0.125
        %v870 = vmul.f32 %v850, 0.125
        %v871 = vmul.f32 %v853, 0.125
        %v872 = vld [vmem:[%s478] sm:$0xff]
        %v873 = vld [vmem:[%s478 + $0x8] sm:$0xff]
        %v874 = vld [vmem:[%s478 + $0x10] sm:$0xff]
        %v875 = vld [vmem:[%s478 + $0x18] sm:$0xff]
        %vm876 = vnez %v872
        %vm877 = vnez %v873
        %vm878 = vnez %v874
        %vm879 = vnez %v875
        %v880 = vsel %vm876, 16843009, 0
        %v881 = vsel %vm877, 16843009, 0
        %v882 = vsel %vm878, 16843009, 0
        %v883 = vsel %vm879, 16843009, 0
        %v884 = vunpack.c.0.s8 %v880
        %v885 = vunpack.c.1.s8 %v880
        %v886 = vunpack.c.2.s8 %v880
        %v887 = vunpack.c.3.s8 %v880
        %v888 = vunpack.c.0.s8 %v881
        %v889 = vunpack.c.1.s8 %v881
        %v890 = vunpack.c.2.s8 %v881
        %v891 = vunpack.c.3.s8 %v881
        %v892 = vunpack.c.0.s8 %v882
        %v893 = vunpack.c.1.s8 %v882
        %v894 = vunpack.c.2.s8 %v882
        %v895 = vunpack.c.3.s8 %v882
        %v896 = vunpack.c.0.s8 %v883
        %v897 = vunpack.c.1.s8 %v883
        %v898 = vunpack.c.2.s8 %v883
        %v899 = vunpack.c.3.s8 %v883
        %v900 = vpack.c.b16 %v884, %v884
        %v901 = vpack.c.b8 %v900, %v900
        %v902 = vpack.c.b16 %v885, %v885
        %v903 = vpack.c.b8 %v902, %v902
        %v904 = vpack.c.b16 %v886, %v886
        %v905 = vpack.c.b8 %v904, %v904
        %v906 = vpack.c.b16 %v887, %v887
        %v907 = vpack.c.b8 %v906, %v906
        %v908 = vpack.c.b16 %v888, %v888
        %v909 = vpack.c.b8 %v908, %v908
        %v910 = vpack.c.b16 %v889, %v889
        %v911 = vpack.c.b8 %v910, %v910
        %v912 = vpack.c.b16 %v890, %v890
        %v913 = vpack.c.b8 %v912, %v912
        %v914 = vpack.c.b16 %v891, %v891
        %v915 = vpack.c.b8 %v914, %v914
        %v916 = vpack.c.b16 %v892, %v892
        %v917 = vpack.c.b8 %v916, %v916
        %v918 = vpack.c.b16 %v893, %v893
        %v919 = vpack.c.b8 %v918, %v918
        %v920 = vpack.c.b16 %v894, %v894
        %v921 = vpack.c.b8 %v920, %v920
        %v922 = vpack.c.b16 %v895, %v895
        %v923 = vpack.c.b8 %v922, %v922
        %v924 = vpack.c.b16 %v896, %v896
        %v925 = vpack.c.b8 %v924, %v924
        %v926 = vpack.c.b16 %v897, %v897
        %v927 = vpack.c.b8 %v926, %v926
        %v928 = vpack.c.b16 %v898, %v898
        %v929 = vpack.c.b8 %v928, %v928
        %v930 = vpack.c.b16 %v899, %v899
        %v931 = vpack.c.b8 %v930, %v930
        %vm932 = vnez %v901
        %vm933 = vnez %v903
        %vm934 = vnez %v905
        %vm935 = vnez %v907
        %vm936 = vnez %v909
        %vm937 = vnez %v911
        %vm938 = vnez %v913
        %vm939 = vnez %v915
        %vm940 = vnez %v917
        %vm941 = vnez %v919
        %vm942 = vnez %v921
        %vm943 = vnez %v923
        %vm944 = vnez %v925
        %vm945 = vnez %v927
        %vm946 = vnez %v929
        %vm947 = vnez %v931
        %v948 = vsel %vm932, 16843009, 0
        %v949 = vsel %vm933, 16843009, 0
        %v950 = vsel %vm934, 16843009, 0
        %v951 = vsel %vm935, 16843009, 0
        %v952 = vsel %vm936, 16843009, 0
        %v953 = vsel %vm937, 16843009, 0
        %v954 = vsel %vm938, 16843009, 0
        %v955 = vsel %vm939, 16843009, 0
        %v956 = vsel %vm940, 16843009, 0
        %v957 = vsel %vm941, 16843009, 0
        %v958 = vsel %vm942, 16843009, 0
        %v959 = vsel %vm943, 16843009, 0
        %v960 = vsel %vm944, 16843009, 0
        %v961 = vsel %vm945, 16843009, 0
        %v962 = vsel %vm946, 16843009, 0
        %v963 = vsel %vm947, 16843009, 0
        %v964 = vunpack.c.0.s8 %v948
        %v965 = vunpack.c.0.s8 %v949
        %v966 = vunpack.c.0.s8 %v950
        %v967 = vunpack.c.0.s8 %v951
        %v968 = vunpack.c.0.s8 %v952
        %v969 = vunpack.c.0.s8 %v953
        %v970 = vunpack.c.0.s8 %v954
        %v971 = vunpack.c.0.s8 %v955
        %v972 = vunpack.c.0.s8 %v956
        %v973 = vunpack.c.0.s8 %v957
        %v974 = vunpack.c.0.s8 %v958
        %v975 = vunpack.c.0.s8 %v959
        %v976 = vunpack.c.0.s8 %v960
        %v977 = vunpack.c.0.s8 %v961
        %v978 = vunpack.c.0.s8 %v962
        %v979 = vunpack.c.0.s8 %v963
        %vm980 = vcmp.ne.s32.totalorder %v964, 0
        %vm981 = vcmp.ne.s32.totalorder %v965, 0
        %vm982 = vcmp.ne.s32.totalorder %v966, 0
        %vm983 = vcmp.ne.s32.totalorder %v967, 0
        %vm984 = vcmp.ne.s32.totalorder %v968, 0
        %vm985 = vcmp.ne.s32.totalorder %v969, 0
        %vm986 = vcmp.ne.s32.totalorder %v970, 0
        %vm987 = vcmp.ne.s32.totalorder %v971, 0
        %vm988 = vcmp.ne.s32.totalorder %v972, 0
        %vm989 = vcmp.ne.s32.totalorder %v973, 0
        %vm990 = vcmp.ne.s32.totalorder %v974, 0
        %vm991 = vcmp.ne.s32.totalorder %v975, 0
        %vm992 = vcmp.ne.s32.totalorder %v976, 0
        %vm993 = vcmp.ne.s32.totalorder %v977, 0
        %vm994 = vcmp.ne.s32.totalorder %v978, 0
        %vm995 = vcmp.ne.s32.totalorder %v979, 0
        %v996 = vsel %vm980, -1e+30, %v856
        %v997 = vsel %vm981, -1e+30, %v857
        %v998 = vsel %vm982, -1e+30, %v858
        %v999 = vsel %vm983, -1e+30, %v859
        %v1000 = vsel %vm984, -1e+30, %v860
        %v1001 = vsel %vm985, -1e+30, %v861
        %v1002 = vsel %vm986, -1e+30, %v862
        %v1003 = vsel %vm987, -1e+30, %v863
        %v1004 = vsel %vm988, -1e+30, %v864
        %v1005 = vsel %vm989, -1e+30, %v865
        %v1006 = vsel %vm990, -1e+30, %v866
        %v1007 = vsel %vm991, -1e+30, %v867
        %v1008 = vsel %vm992, -1e+30, %v868
        %v1009 = vsel %vm993, -1e+30, %v869
        %v1010 = vsel %vm994, -1e+30, %v870
        %v1011 = vsel %vm995, -1e+30, %v871
        %v1012 = vld [vmem:[#allocation2] sm:$0xff]
        %v1013 = vld [vmem:[#allocation2 + $0x8] sm:$0xff]
        %v1014 = vld [vmem:[#allocation2 + $0x10] sm:$0xff]
        %v1015 = vld [vmem:[#allocation2 + $0x18] sm:$0xff]
        %v1016 = vld [vmem:[#allocation2 + $0x20] sm:$0xff]
        %v1017 = vld [vmem:[#allocation2 + $0x28] sm:$0xff]
        %v1018 = vld [vmem:[#allocation2 + $0x30] sm:$0xff]
        %v1019 = vld [vmem:[#allocation2 + $0x38] sm:$0xff]
        %v1020 = vld [vmem:[#allocation2 + $0x40] sm:$0xff]
        %v1021 = vld [vmem:[#allocation2 + $0x48] sm:$0xff]
        %v1022 = vld [vmem:[#allocation2 + $0x50] sm:$0xff]
        %v1023 = vld [vmem:[#allocation2 + $0x58] sm:$0xff]
        %v1024 = vld [vmem:[#allocation2 + $0x60] sm:$0xff]
        %v1025 = vld [vmem:[#allocation2 + $0x68] sm:$0xff]
        %v1026 = vld [vmem:[#allocation2 + $0x70] sm:$0xff]
        %v1027 = vld [vmem:[#allocation2 + $0x78] sm:$0xff]
        %1028 = vmax.xlane.f32.xlu0 %v996
        %v1029 = vpop.xlane.xlu0 %1028
        %1030 = vmax.xlane.f32.xlu0 %v997
        %v1031 = vpop.xlane.xlu0 %1030
        %1032 = vmax.xlane.f32.xlu0 %v998
        %v1033 = vpop.xlane.xlu0 %1032
        %1034 = vmax.xlane.f32.xlu0 %v999
        %v1035 = vpop.xlane.xlu0 %1034
        %1036 = vmax.xlane.f32.xlu0 %v1000
        %v1037 = vpop.xlane.xlu0 %1036
        %1038 = vmax.xlane.f32.xlu0 %v1001
        %v1039 = vpop.xlane.xlu0 %1038
        %1040 = vmax.xlane.f32.xlu0 %v1002
        %v1041 = vpop.xlane.xlu0 %1040
        %1042 = vmax.xlane.f32.xlu0 %v1003
        %v1043 = vpop.xlane.xlu0 %1042
        %1044 = vmax.xlane.f32.xlu0 %v1004
        %v1045 = vpop.xlane.xlu0 %1044
        %1046 = vmax.xlane.f32.xlu0 %v1005
        %v1047 = vpop.xlane.xlu0 %1046
        %1048 = vmax.xlane.f32.xlu0 %v1006
        %v1049 = vpop.xlane.xlu0 %1048
        %1050 = vmax.xlane.f32.xlu0 %v1007
        %v1051 = vpop.xlane.xlu0 %1050
        %1052 = vmax.xlane.f32.xlu0 %v1008
        %v1053 = vpop.xlane.xlu0 %1052
        %1054 = vmax.xlane.f32.xlu0 %v1009
        %v1055 = vpop.xlane.xlu0 %1054
        %1056 = vmax.xlane.f32.xlu0 %v1010
        %v1057 = vpop.xlane.xlu0 %1056
        %1058 = vmax.xlane.f32.xlu0 %v1011
        %v1059 = vpop.xlane.xlu0 %1058
        %v1060 = vmax.f32 %v1012, %v1029
        %v1061 = vmax.f32 %v1013, %v1031
        %v1062 = vmax.f32 %v1014, %v1033
        %v1063 = vmax.f32 %v1015, %v1035
        %v1064 = vmax.f32 %v1016, %v1037
        %v1065 = vmax.f32 %v1017, %v1039
        %v1066 = vmax.f32 %v1018, %v1041
        %v1067 = vmax.f32 %v1019, %v1043
        %v1068 = vmax.f32 %v1020, %v1045
        %v1069 = vmax.f32 %v1021, %v1047
        %v1070 = vmax.f32 %v1022, %v1049
        %v1071 = vmax.f32 %v1023, %v1051
        %v1072 = vmax.f32 %v1024, %v1053
        %v1073 = vmax.f32 %v1025, %v1055
        %v1074 = vmax.f32 %v1026, %v1057
        %v1075 = vmax.f32 %v1027, %v1059
        %v1076 = vsub.f32 %v1012, %v1060
        %v1077 = vsub.f32 %v1013, %v1061
        %v1078 = vsub.f32 %v1014, %v1062
        %v1079 = vsub.f32 %v1015, %v1063
        %v1080 = vsub.f32 %v1016, %v1064
        %v1081 = vsub.f32 %v1017, %v1065
        %v1082 = vsub.f32 %v1018, %v1066
        %v1083 = vsub.f32 %v1019, %v1067
        %v1084 = vsub.f32 %v1020, %v1068
        %v1085 = vsub.f32 %v1021, %v1069
        %v1086 = vsub.f32 %v1022, %v1070
        %v1087 = vsub.f32 %v1023, %v1071
        %v1088 = vsub.f32 %v1024, %v1072
        %v1089 = vsub.f32 %v1025, %v1073
        %v1090 = vsub.f32 %v1026, %v1074
        %v1091 = vsub.f32 %v1027, %v1075
        %v1092 = vmul.f32 %v1076, 1.442695
        %v1093 = vpow.pop %v1092
        %v1094 = vmul.f32 %v1077, 1.442695
        %v1095 = vpow.pop %v1094
        %v1096 = vmul.f32 %v1078, 1.442695
        %v1097 = vpow.pop %v1096
        %v1098 = vmul.f32 %v1079, 1.442695
        %v1099 = vpow.pop %v1098
        %v1100 = vmul.f32 %v1080, 1.442695
        %v1101 = vpow.pop %v1100
        %v1102 = vmul.f32 %v1081, 1.442695
        %v1103 = vpow.pop %v1102
        %v1104 = vmul.f32 %v1082, 1.442695
        %v1105 = vpow.pop %v1104
        %v1106 = vmul.f32 %v1083, 1.442695
        %v1107 = vpow.pop %v1106
        %v1108 = vmul.f32 %v1084, 1.442695
        %v1109 = vpow.pop %v1108
        %v1110 = vmul.f32 %v1085, 1.442695
        %v1111 = vpow.pop %v1110
        %v1112 = vmul.f32 %v1086, 1.442695
        %v1113 = vpow.pop %v1112
        %v1114 = vmul.f32 %v1087, 1.442695
        %v1115 = vpow.pop %v1114
        %v1116 = vmul.f32 %v1088, 1.442695
        %v1117 = vpow.pop %v1116
        %v1118 = vmul.f32 %v1089, 1.442695
        %v1119 = vpow.pop %v1118
        %v1120 = vmul.f32 %v1090, 1.442695
        %v1121 = vpow.pop %v1120
        %v1122 = vmul.f32 %v1091, 1.442695
        %v1123 = vpow.pop %v1122
        %1125 = vset.pattern.permute.xlu0 0
        %1126 = vperm.xlu0 %1125, %v1060
        %v1127 = vpop.permute.xlu0 %1126
        %1130 = vset.pattern.permute.xlu0 0
        %1131 = vperm.xlu0 %1130, %v1061
        %v1132 = vpop.permute.xlu0 %1131
        %1135 = vset.pattern.permute.xlu0 0
        %1136 = vperm.xlu0 %1135, %v1062
        %v1137 = vpop.permute.xlu0 %1136
        %1140 = vset.pattern.permute.xlu0 0
        %1141 = vperm.xlu0 %1140, %v1063
        %v1142 = vpop.permute.xlu0 %1141
        %1145 = vset.pattern.permute.xlu0 0
        %1146 = vperm.xlu0 %1145, %v1064
        %v1147 = vpop.permute.xlu0 %1146
        %1150 = vset.pattern.permute.xlu0 0
        %1151 = vperm.xlu0 %1150, %v1065
        %v1152 = vpop.permute.xlu0 %1151
        %1155 = vset.pattern.permute.xlu0 0
        %1156 = vperm.xlu0 %1155, %v1066
        %v1157 = vpop.permute.xlu0 %1156
        %1160 = vset.pattern.permute.xlu0 0
        %1161 = vperm.xlu0 %1160, %v1067
        %v1162 = vpop.permute.xlu0 %1161
        %1165 = vset.pattern.permute.xlu0 0
        %1166 = vperm.xlu0 %1165, %v1068
        %v1167 = vpop.permute.xlu0 %1166
        %1170 = vset.pattern.permute.xlu0 0
        %1171 = vperm.xlu0 %1170, %v1069
        %v1172 = vpop.permute.xlu0 %1171
        %1175 = vset.pattern.permute.xlu0 0
        %1176 = vperm.xlu0 %1175, %v1070
        %v1177 = vpop.permute.xlu0 %1176
        %1180 = vset.pattern.permute.xlu0 0
        %1181 = vperm.xlu0 %1180, %v1071
        %v1182 = vpop.permute.xlu0 %1181
        %1185 = vset.pattern.permute.xlu0 0
        %1186 = vperm.xlu0 %1185, %v1072
        %v1187 = vpop.permute.xlu0 %1186
        %1190 = vset.pattern.permute.xlu0 0
        %1191 = vperm.xlu0 %1190, %v1073
        %v1192 = vpop.permute.xlu0 %1191
        %1195 = vset.pattern.permute.xlu0 0
        %1196 = vperm.xlu0 %1195, %v1074
        %v1197 = vpop.permute.xlu0 %1196
        %1200 = vset.pattern.permute.xlu0 0
        %1201 = vperm.xlu0 %1200, %v1075
        %v1202 = vpop.permute.xlu0 %1201
        %v1204 = vsub.f32 %v996, %v1127
        %v1205 = vsub.f32 %v997, %v1132
        %v1206 = vsub.f32 %v998, %v1137
        %v1207 = vsub.f32 %v999, %v1142
        %v1208 = vsub.f32 %v1000, %v1147
        %v1209 = vsub.f32 %v1001, %v1152
        %v1210 = vsub.f32 %v1002, %v1157
        %v1211 = vsub.f32 %v1003, %v1162
        %v1212 = vsub.f32 %v1004, %v1167
        %v1213 = vsub.f32 %v1005, %v1172
        %v1214 = vsub.f32 %v1006, %v1177
        %v1215 = vsub.f32 %v1007, %v1182
        %v1216 = vsub.f32 %v1008, %v1187
        %v1217 = vsub.f32 %v1009, %v1192
        %v1218 = vsub.f32 %v1010, %v1197
        %v1219 = vsub.f32 %v1011, %v1202
        %v1220 = vmul.f32 %v1204, 1.442695
        %v1221 = vpow.pop %v1220
        %v1222 = vmul.f32 %v1205, 1.442695
        %v1223 = vpow.pop %v1222
        %v1224 = vmul.f32 %v1206, 1.442695
        %v1225 = vpow.pop %v1224
        %v1226 = vmul.f32 %v1207, 1.442695
        %v1227 = vpow.pop %v1226
        %v1228 = vmul.f32 %v1208, 1.442695
        %v1229 = vpow.pop %v1228
        %v1230 = vmul.f32 %v1209, 1.442695
        %v1231 = vpow.pop %v1230
        %v1232 = vmul.f32 %v1210, 1.442695
        %v1233 = vpow.pop %v1232
        %v1234 = vmul.f32 %v1211, 1.442695
        %v1235 = vpow.pop %v1234
        %v1236 = vmul.f32 %v1212, 1.442695
        %v1237 = vpow.pop %v1236
        %v1238 = vmul.f32 %v1213, 1.442695
        %v1239 = vpow.pop %v1238
        %v1240 = vmul.f32 %v1214, 1.442695
        %v1241 = vpow.pop %v1240
        %v1242 = vmul.f32 %v1215, 1.442695
        %v1243 = vpow.pop %v1242
        %v1244 = vmul.f32 %v1216, 1.442695
        %v1245 = vpow.pop %v1244
        %v1246 = vmul.f32 %v1217, 1.442695
        %v1247 = vpow.pop %v1246
        %v1248 = vmul.f32 %v1218, 1.442695
        %v1249 = vpow.pop %v1248
        %v1250 = vmul.f32 %v1219, 1.442695
        %v1251 = vpow.pop %v1250
        %v1252 = vsel %vm980, 0.0, %v1221
        %v1253 = vsel %vm981, 0.0, %v1223
        %v1254 = vsel %vm982, 0.0, %v1225
        %v1255 = vsel %vm983, 0.0, %v1227
        %v1256 = vsel %vm984, 0.0, %v1229
        %v1257 = vsel %vm985, 0.0, %v1231
        %v1258 = vsel %vm986, 0.0, %v1233
        %v1259 = vsel %vm987, 0.0, %v1235
        %v1260 = vsel %vm988, 0.0, %v1237
        %v1261 = vsel %vm989, 0.0, %v1239
        %v1262 = vsel %vm990, 0.0, %v1241
        %v1263 = vsel %vm991, 0.0, %v1243
        %v1264 = vsel %vm992, 0.0, %v1245
        %v1265 = vsel %vm993, 0.0, %v1247
        %v1266 = vsel %vm994, 0.0, %v1249
        %v1267 = vsel %vm995, 0.0, %v1251
        %v1268 = vld [vmem:[#allocation3] sm:$0xff]
        %v1269 = vld [vmem:[#allocation3 + $0x8] sm:$0xff]
        %v1270 = vld [vmem:[#allocation3 + $0x10] sm:$0xff]
        %v1271 = vld [vmem:[#allocation3 + $0x18] sm:$0xff]
        %v1272 = vld [vmem:[#allocation3 + $0x20] sm:$0xff]
        %v1273 = vld [vmem:[#allocation3 + $0x28] sm:$0xff]
        %v1274 = vld [vmem:[#allocation3 + $0x30] sm:$0xff]
        %v1275 = vld [vmem:[#allocation3 + $0x38] sm:$0xff]
        %v1276 = vld [vmem:[#allocation3 + $0x40] sm:$0xff]
        %v1277 = vld [vmem:[#allocation3 + $0x48] sm:$0xff]
        %v1278 = vld [vmem:[#allocation3 + $0x50] sm:$0xff]
        %v1279 = vld [vmem:[#allocation3 + $0x58] sm:$0xff]
        %v1280 = vld [vmem:[#allocation3 + $0x60] sm:$0xff]
        %v1281 = vld [vmem:[#allocation3 + $0x68] sm:$0xff]
        %v1282 = vld [vmem:[#allocation3 + $0x70] sm:$0xff]
        %v1283 = vld [vmem:[#allocation3 + $0x78] sm:$0xff]
        %v1284 = vmul.f32 %v1093, %v1268
        %v1285 = vmul.f32 %v1095, %v1269
        %v1286 = vmul.f32 %v1097, %v1270
        %v1287 = vmul.f32 %v1099, %v1271
        %v1288 = vmul.f32 %v1101, %v1272
        %v1289 = vmul.f32 %v1103, %v1273
        %v1290 = vmul.f32 %v1105, %v1274
        %v1291 = vmul.f32 %v1107, %v1275
        %v1292 = vmul.f32 %v1109, %v1276
        %v1293 = vmul.f32 %v1111, %v1277
        %v1294 = vmul.f32 %v1113, %v1278
        %v1295 = vmul.f32 %v1115, %v1279
        %v1296 = vmul.f32 %v1117, %v1280
        %v1297 = vmul.f32 %v1119, %v1281
        %v1298 = vmul.f32 %v1121, %v1282
        %v1299 = vmul.f32 %v1123, %v1283
        %1300 = vadd.xlane.f32.xlu0 %v1252
        %v1301 = vpop.xlane.xlu0 %1300
        %1302 = vadd.xlane.f32.xlu0 %v1253
        %v1303 = vpop.xlane.xlu0 %1302
        %1304 = vadd.xlane.f32.xlu0 %v1254
        %v1305 = vpop.xlane.xlu0 %1304
        %1306 = vadd.xlane.f32.xlu0 %v1255
        %v1307 = vpop.xlane.xlu0 %1306
        %1308 = vadd.xlane.f32.xlu0 %v1256
        %v1309 = vpop.xlane.xlu0 %1308
        %1310 = vadd.xlane.f32.xlu0 %v1257
        %v1311 = vpop.xlane.xlu0 %1310
        %1312 = vadd.xlane.f32.xlu0 %v1258
        %v1313 = vpop.xlane.xlu0 %1312
        %1314 = vadd.xlane.f32.xlu0 %v1259
        %v1315 = vpop.xlane.xlu0 %1314
        %1316 = vadd.xlane.f32.xlu0 %v1260
        %v1317 = vpop.xlane.xlu0 %1316
        %1318 = vadd.xlane.f32.xlu0 %v1261
        %v1319 = vpop.xlane.xlu0 %1318
        %1320 = vadd.xlane.f32.xlu0 %v1262
        %v1321 = vpop.xlane.xlu0 %1320
        %1322 = vadd.xlane.f32.xlu0 %v1263
        %v1323 = vpop.xlane.xlu0 %1322
        %1324 = vadd.xlane.f32.xlu0 %v1264
        %v1325 = vpop.xlane.xlu0 %1324
        %1326 = vadd.xlane.f32.xlu0 %v1265
        %v1327 = vpop.xlane.xlu0 %1326
        %1328 = vadd.xlane.f32.xlu0 %v1266
        %v1329 = vpop.xlane.xlu0 %1328
        %1330 = vadd.xlane.f32.xlu0 %v1267
        %v1331 = vpop.xlane.xlu0 %1330
        %v1332 = vadd.f32 %v1284, %v1301
        %v1333 = vadd.f32 %v1285, %v1303
        %v1334 = vadd.f32 %v1286, %v1305
        %v1335 = vadd.f32 %v1287, %v1307
        %v1336 = vadd.f32 %v1288, %v1309
        %v1337 = vadd.f32 %v1289, %v1311
        %v1338 = vadd.f32 %v1290, %v1313
        %v1339 = vadd.f32 %v1291, %v1315
        %v1340 = vadd.f32 %v1292, %v1317
        %v1341 = vadd.f32 %v1293, %v1319
        %v1342 = vadd.f32 %v1294, %v1321
        %v1343 = vadd.f32 %v1295, %v1323
        %v1344 = vadd.f32 %v1296, %v1325
        %v1345 = vadd.f32 %v1297, %v1327
        %v1346 = vadd.f32 %v1298, %v1329
        %v1347 = vadd.f32 %v1299, %v1331
        %vm1348 = vcmask 7168
        %1349 = vst.msk [vmem:[#allocation3] sm:$0xff] %vm1348, %v1332
        %1350 = vst.msk [vmem:[#allocation3 + $0x8] sm:$0xff] %vm1348, %v1333
        %1351 = vst.msk [vmem:[#allocation3 + $0x10] sm:$0xff] %vm1348, %v1334
        %1352 = vst.msk [vmem:[#allocation3 + $0x18] sm:$0xff] %vm1348, %v1335
        %1353 = vst.msk [vmem:[#allocation3 + $0x20] sm:$0xff] %vm1348, %v1336
        %1354 = vst.msk [vmem:[#allocation3 + $0x28] sm:$0xff] %vm1348, %v1337
        %1355 = vst.msk [vmem:[#allocation3 + $0x30] sm:$0xff] %vm1348, %v1338
        %1356 = vst.msk [vmem:[#allocation3 + $0x38] sm:$0xff] %vm1348, %v1339
        %1357 = vst.msk [vmem:[#allocation3 + $0x40] sm:$0xff] %vm1348, %v1340
        %1358 = vst.msk [vmem:[#allocation3 + $0x48] sm:$0xff] %vm1348, %v1341
        %1359 = vst.msk [vmem:[#allocation3 + $0x50] sm:$0xff] %vm1348, %v1342
        %1360 = vst.msk [vmem:[#allocation3 + $0x58] sm:$0xff] %vm1348, %v1343
        %1361 = vst.msk [vmem:[#allocation3 + $0x60] sm:$0xff] %vm1348, %v1344
        %1362 = vst.msk [vmem:[#allocation3 + $0x68] sm:$0xff] %vm1348, %v1345
        %1363 = vst.msk [vmem:[#allocation3 + $0x70] sm:$0xff] %vm1348, %v1346
        %1364 = vst.msk [vmem:[#allocation3 + $0x78] sm:$0xff] %vm1348, %v1347
        %v1365 = vld [vmem:[#allocation4] sm:$0xff]
        %v1366 = vld [vmem:[#allocation4 + $0x8] sm:$0xff]
        %v1367 = vld [vmem:[#allocation4 + $0x10] sm:$0xff]
        %v1368 = vld [vmem:[#allocation4 + $0x18] sm:$0xff]
        %v1369 = vld [vmem:[#allocation4 + $0x20] sm:$0xff]
        %v1370 = vld [vmem:[#allocation4 + $0x28] sm:$0xff]
        %v1371 = vld [vmem:[#allocation4 + $0x30] sm:$0xff]
        %v1372 = vld [vmem:[#allocation4 + $0x38] sm:$0xff]
        %v1373 = vld [vmem:[#allocation4 + $0x40] sm:$0xff]
        %v1374 = vld [vmem:[#allocation4 + $0x48] sm:$0xff]
        %v1375 = vld [vmem:[#allocation4 + $0x50] sm:$0xff]
        %v1376 = vld [vmem:[#allocation4 + $0x58] sm:$0xff]
        %v1377 = vld [vmem:[#allocation4 + $0x60] sm:$0xff]
        %v1378 = vld [vmem:[#allocation4 + $0x68] sm:$0xff]
        %v1379 = vld [vmem:[#allocation4 + $0x70] sm:$0xff]
        %v1380 = vld [vmem:[#allocation4 + $0x78] sm:$0xff]
        %1382 = vset.pattern.permute.xlu0 0
        %1383 = vperm.xlu0 %1382, %v1093
        %v1384 = vpop.permute.xlu0 %1383
        %1387 = vset.pattern.permute.xlu0 0
        %1388 = vperm.xlu0 %1387, %v1095
        %v1389 = vpop.permute.xlu0 %1388
        %1392 = vset.pattern.permute.xlu0 0
        %1393 = vperm.xlu0 %1392, %v1097
        %v1394 = vpop.permute.xlu0 %1393
        %1397 = vset.pattern.permute.xlu0 0
        %1398 = vperm.xlu0 %1397, %v1099
        %v1399 = vpop.permute.xlu0 %1398
        %1402 = vset.pattern.permute.xlu0 0
        %1403 = vperm.xlu0 %1402, %v1101
        %v1404 = vpop.permute.xlu0 %1403
        %1407 = vset.pattern.permute.xlu0 0
        %1408 = vperm.xlu0 %1407, %v1103
        %v1409 = vpop.permute.xlu0 %1408
        %1412 = vset.pattern.permute.xlu0 0
        %1413 = vperm.xlu0 %1412, %v1105
        %v1414 = vpop.permute.xlu0 %1413
        %1417 = vset.pattern.permute.xlu0 0
        %1418 = vperm.xlu0 %1417, %v1107
        %v1419 = vpop.permute.xlu0 %1418
        %1422 = vset.pattern.permute.xlu0 0
        %1423 = vperm.xlu0 %1422, %v1109
        %v1424 = vpop.permute.xlu0 %1423
        %1427 = vset.pattern.permute.xlu0 0
        %1428 = vperm.xlu0 %1427, %v1111
        %v1429 = vpop.permute.xlu0 %1428
        %1432 = vset.pattern.permute.xlu0 0
        %1433 = vperm.xlu0 %1432, %v1113
        %v1434 = vpop.permute.xlu0 %1433
        %1437 = vset.pattern.permute.xlu0 0
        %1438 = vperm.xlu0 %1437, %v1115
        %v1439 = vpop.permute.xlu0 %1438
        %1442 = vset.pattern.permute.xlu0 0
        %1443 = vperm.xlu0 %1442, %v1117
        %v1444 = vpop.permute.xlu0 %1443
        %1447 = vset.pattern.permute.xlu0 0
        %1448 = vperm.xlu0 %1447, %v1119
        %v1449 = vpop.permute.xlu0 %1448
        %1452 = vset.pattern.permute.xlu0 0
        %1453 = vperm.xlu0 %1452, %v1121
        %v1454 = vpop.permute.xlu0 %1453
        %1457 = vset.pattern.permute.xlu0 0
        %1458 = vperm.xlu0 %1457, %v1123
        %v1459 = vpop.permute.xlu0 %1458
        %v1461 = vmul.f32 %v1384, %v1365
        %v1462 = vmul.f32 %v1389, %v1366
        %v1463 = vmul.f32 %v1394, %v1367
        %v1464 = vmul.f32 %v1399, %v1368
        %v1465 = vmul.f32 %v1404, %v1369
        %v1466 = vmul.f32 %v1409, %v1370
        %v1467 = vmul.f32 %v1414, %v1371
        %v1468 = vmul.f32 %v1419, %v1372
        %v1469 = vmul.f32 %v1424, %v1373
        %v1470 = vmul.f32 %v1429, %v1374
        %v1471 = vmul.f32 %v1434, %v1375
        %v1472 = vmul.f32 %v1439, %v1376
        %v1473 = vmul.f32 %v1444, %v1377
        %v1474 = vmul.f32 %v1449, %v1378
        %v1475 = vmul.f32 %v1454, %v1379
        %v1476 = vmul.f32 %v1459, %v1380
        %v1477 = vpack.c.bf16 %v1253, %v1252
        %v1478 = vpack.c.bf16 %v1255, %v1254
        %v1479 = vpack.c.bf16 %v1257, %v1256
        %v1480 = vpack.c.bf16 %v1259, %v1258
        %v1481 = vpack.c.bf16 %v1261, %v1260
        %v1482 = vpack.c.bf16 %v1263, %v1262
        %v1483 = vpack.c.bf16 %v1265, %v1264
        %v1484 = vpack.c.bf16 %v1267, %v1266
        %v1501 = vunpack.c.l.b16 %v654
        %v1502 = vunpack.c.l.b16 %v655
        %v1503 = vunpack.c.l.b16 %v656
        %v1504 = vunpack.c.l.b16 %v657
        %v1505 = vunpack.c.l.b16 %v658
        %v1506 = vunpack.c.l.b16 %v659
        %v1507 = vunpack.c.l.b16 %v660
        %v1508 = vunpack.c.l.b16 %v661
        %v1509 = vunpack.c.l.b16 %v662
        %v1510 = vunpack.c.l.b16 %v663
        %v1511 = vunpack.c.l.b16 %v664
        %v1512 = vunpack.c.l.b16 %v665
        %v1513 = vunpack.c.l.b16 %v666
        %v1514 = vunpack.c.l.b16 %v667
        %v1515 = vunpack.c.l.b16 %v668
        %v1516 = vunpack.c.l.b16 %v669
        %v1517 = vpack.c.b16 %v1502, %v1501
        %v1518 = vpack.c.b16 %v1504, %v1503
        %v1519 = vpack.c.b16 %v1506, %v1505
        %v1520 = vpack.c.b16 %v1508, %v1507
        %v1521 = vpack.c.b16 %v1510, %v1509
        %v1522 = vpack.c.b16 %v1512, %v1511
        %v1523 = vpack.c.b16 %v1514, %v1513
        %v1524 = vpack.c.b16 %v1516, %v1515
        %1533 = vmatprep.subr.bf16.mxu0 0
        %1534 = vmatpush1.bf16.msra.mxu0 %v1517
        %1535 = vmatprep.subr.bf16.mxu0 0
        %1536 = vmatpush1.bf16.msra.mxu0 %v1518
        %1537 = vmatprep.subr.bf16.mxu0 0
        %1538 = vmatpush1.bf16.msra.mxu0 %v1519
        %1539 = vmatprep.subr.bf16.mxu0 0
        %1540 = vmatpush1.bf16.msra.mxu0 %v1520
        %1541 = vmatprep.subr.bf16.mxu0 0
        %1542 = vmatpush1.bf16.msra.mxu0 %v1521
        %1543 = vmatprep.subr.bf16.mxu0 0
        %1544 = vmatpush1.bf16.msra.mxu0 %v1522
        %1545 = vmatprep.subr.bf16.mxu0 0
        %1546 = vmatpush1.bf16.msra.mxu0 %v1523
        %1547 = vmatprep.subr.bf16.mxu0 0
        %1548 = vmatpush1.bf16.msra.mxu0 %v1524
        %1549 = vmatprep.subr.bf16.mxu0 0
        %1550 = vmatpush1.bf16.msra.mxu0 0
        %1551 = vmatprep.subr.bf16.mxu0 0
        %1552 = vmatpush1.bf16.msra.mxu0 0
        %1553 = vmatprep.subr.bf16.mxu0 0
        %1554 = vmatpush1.bf16.msra.mxu0 0
        %1555 = vmatprep.subr.bf16.mxu0 0
        %1556 = vmatpush1.bf16.msra.mxu0 0
        %1557 = vmatprep.subr.bf16.mxu0 0
        %1558 = vmatpush1.bf16.msra.mxu0 0
        %1559 = vmatprep.subr.bf16.mxu0 0
        %1560 = vmatpush1.bf16.msra.mxu0 0
        %1561 = vmatprep.subr.bf16.mxu0 0
        %1562 = vmatpush1.bf16.msra.mxu0 0
        %1563 = vmatprep.subr.bf16.mxu0 0
        %1564 = vmatpush1.bf16.msra.mxu0 0
        %1565 = vmatprep.mubr.bf16.mxu0 0
        %1566 = vmatmul.mubr.bf16.gmra.mrb[0].mxu0 %v1477
        %v1567 = vpop.f32.mrb[0].mxu0
        %v1568 = vadd.f32 0.0, %v1567
        %v1569 = vpop.f32.mrb[0].mxu0
        %v1570 = vpop.f32.mrb[0].mxu0
        %v1571 = vadd.f32 0.0, %v1570
        %v1572 = vpop.f32.mrb[0].mxu0
        %1573 = vmatprep.mubr.bf16.mxu0 0
        %1574 = vmatmul.mubr.bf16.gmra.mrb[0].mxu0 %v1478
        %v1575 = vpop.f32.mrb[0].mxu0
        %v1576 = vadd.f32 0.0, %v1575
        %v1577 = vpop.f32.mrb[0].mxu0
        %v1578 = vpop.f32.mrb[0].mxu0
        %v1579 = vadd.f32 0.0, %v1578
        %v1580 = vpop.f32.mrb[0].mxu0
        %1581 = vmatprep.mubr.bf16.mxu0 0
        %1582 = vmatmul.mubr.bf16.gmra.mrb[0].mxu0 %v1479
        %v1583 = vpop.f32.mrb[0].mxu0
        %v1584 = vadd.f32 0.0, %v1583
        %v1585 = vpop.f32.mrb[0].mxu0
        %v1586 = vpop.f32.mrb[0].mxu0
        %v1587 = vadd.f32 0.0, %v1586
        %v1588 = vpop.f32.mrb[0].mxu0
        %1589 = vmatprep.mubr.bf16.mxu0 0
        %1590 = vmatmul.mubr.bf16.gmra.mrb[0].mxu0 %v1480
        %v1591 = vpop.f32.mrb[0].mxu0
        %v1592 = vadd.f32 0.0, %v1591
        %v1593 = vpop.f32.mrb[0].mxu0
        %v1594 = vpop.f32.mrb[0].mxu0
        %v1595 = vadd.f32 0.0, %v1594
        %v1596 = vpop.f32.mrb[0].mxu0
        %1597 = vmatprep.mubr.bf16.mxu0 0
        %1598 = vmatmul.mubr.bf16.gmra.mrb[0].mxu0 %v1481
        %v1599 = vpop.f32.mrb[0].mxu0
        %v1600 = vadd.f32 0.0, %v1599
        %v1601 = vpop.f32.mrb[0].mxu0
        %v1602 = vpop.f32.mrb[0].mxu0
        %v1603 = vadd.f32 0.0, %v1602
        %v1604 = vpop.f32.mrb[0].mxu0
        %1605 = vmatprep.mubr.bf16.mxu0 0
        %1606 = vmatmul.mubr.bf16.gmra.mrb[0].mxu0 %v1482
        %v1607 = vpop.f32.mrb[0].mxu0
        %v1608 = vadd.f32 0.0, %v1607
        %v1609 = vpop.f32.mrb[0].mxu0
        %v1610 = vpop.f32.mrb[0].mxu0
        %v1611 = vadd.f32 0.0, %v1610
        %v1612 = vpop.f32.mrb[0].mxu0
        %1613 = vmatprep.mubr.bf16.mxu0 0
        %1614 = vmatmul.mubr.bf16.gmra.mrb[0].mxu0 %v1483
        %v1615 = vpop.f32.mrb[0].mxu0
        %v1616 = vadd.f32 0.0, %v1615
        %v1617 = vpop.f32.mrb[0].mxu0
        %v1618 = vpop.f32.mrb[0].mxu0
        %v1619 = vadd.f32 0.0, %v1618
        %v1620 = vpop.f32.mrb[0].mxu0
        %1621 = vmatprep.mubr.bf16.mxu0 0
        %1622 = vmatmul.mubr.bf16.gmra.mrb[0].mxu0 %v1484
        %v1623 = vpop.f32.mrb[0].mxu0
        %v1624 = vadd.f32 0.0, %v1623
        %v1625 = vpop.f32.mrb[0].mxu0
        %v1626 = vpop.f32.mrb[0].mxu0
        %v1627 = vadd.f32 0.0, %v1626
        %v1628 = vpop.f32.mrb[0].mxu0
        %1629 = vdwg.mxu0
        %v1630 = vadd.f32 %v1461, %v1568
        %v1631 = vadd.f32 %v1462, %v1571
        %v1632 = vadd.f32 %v1463, %v1576
        %v1633 = vadd.f32 %v1464, %v1579
        %v1634 = vadd.f32 %v1465, %v1584
        %v1635 = vadd.f32 %v1466, %v1587
        %v1636 = vadd.f32 %v1467, %v1592
        %v1637 = vadd.f32 %v1468, %v1595
        %v1638 = vadd.f32 %v1469, %v1600
        %v1639 = vadd.f32 %v1470, %v1603
        %v1640 = vadd.f32 %v1471, %v1608
        %v1641 = vadd.f32 %v1472, %v1611
        %v1642 = vadd.f32 %v1473, %v1616
        %v1643 = vadd.f32 %v1474, %v1619
        %v1644 = vadd.f32 %v1475, %v1624
        %v1645 = vadd.f32 %v1476, %v1627
        %1646 = vst.msk [vmem:[#allocation4] sm:$0xff] %vm734, %v1630
        %1647 = vst.msk [vmem:[#allocation4 + $0x8] sm:$0xff] %vm734, %v1631
        %1648 = vst.msk [vmem:[#allocation4 + $0x10] sm:$0xff] %vm734, %v1632
        %1649 = vst.msk [vmem:[#allocation4 + $0x18] sm:$0xff] %vm734, %v1633
        %1650 = vst.msk [vmem:[#allocation4 + $0x20] sm:$0xff] %vm734, %v1634
        %1651 = vst.msk [vmem:[#allocation4 + $0x28] sm:$0xff] %vm734, %v1635
        %1652 = vst.msk [vmem:[#allocation4 + $0x30] sm:$0xff] %vm734, %v1636
        %1653 = vst.msk [vmem:[#allocation4 + $0x38] sm:$0xff] %vm734, %v1637
        %1654 = vst.msk [vmem:[#allocation4 + $0x40] sm:$0xff] %vm734, %v1638
        %1655 = vst.msk [vmem:[#allocation4 + $0x48] sm:$0xff] %vm734, %v1639
        %1656 = vst.msk [vmem:[#allocation4 + $0x50] sm:$0xff] %vm734, %v1640
        %1657 = vst.msk [vmem:[#allocation4 + $0x58] sm:$0xff] %vm734, %v1641
        %1658 = vst.msk [vmem:[#allocation4 + $0x60] sm:$0xff] %vm734, %v1642
        %1659 = vst.msk [vmem:[#allocation4 + $0x68] sm:$0xff] %vm734, %v1643
        %1660 = vst.msk [vmem:[#allocation4 + $0x70] sm:$0xff] %vm734, %v1644
        %1661 = vst.msk [vmem:[#allocation4 + $0x78] sm:$0xff] %vm734, %v1645
        %1662 = vst.msk [vmem:[#allocation2] sm:$0xff] %vm1348, %v1060
        %1663 = vst.msk [vmem:[#allocation2 + $0x8] sm:$0xff] %vm1348, %v1061
        %1664 = vst.msk [vmem:[#allocation2 + $0x10] sm:$0xff] %vm1348, %v1062
        %1665 = vst.msk [vmem:[#allocation2 + $0x18] sm:$0xff] %vm1348, %v1063
        %1666 = vst.msk [vmem:[#allocation2 + $0x20] sm:$0xff] %vm1348, %v1064
        %1667 = vst.msk [vmem:[#allocation2 + $0x28] sm:$0xff] %vm1348, %v1065
        %1668 = vst.msk [vmem:[#allocation2 + $0x30] sm:$0xff] %vm1348, %v1066
        %1669 = vst.msk [vmem:[#allocation2 + $0x38] sm:$0xff] %vm1348, %v1067
        %1670 = vst.msk [vmem:[#allocation2 + $0x40] sm:$0xff] %vm1348, %v1068
        %1671 = vst.msk [vmem:[#allocation2 + $0x48] sm:$0xff] %vm1348, %v1069
        %1672 = vst.msk [vmem:[#allocation2 + $0x50] sm:$0xff] %vm1348, %v1070
        %1673 = vst.msk [vmem:[#allocation2 + $0x58] sm:$0xff] %vm1348, %v1071
        %1674 = vst.msk [vmem:[#allocation2 + $0x60] sm:$0xff] %vm1348, %v1072
        %1675 = vst.msk [vmem:[#allocation2 + $0x68] sm:$0xff] %vm1348, %v1073
        %1676 = vst.msk [vmem:[#allocation2 + $0x70] sm:$0xff] %vm1348, %v1074
        %1677 = vst.msk [vmem:[#allocation2 + $0x78] sm:$0xff] %vm1348, %v1075
        %p1678 = scmp.eq.s32.totalorder %s34, 1
        // Predicated region
        $region128: #{tpu_custom_call.1} parent=114 // pred_check
          %p1679 = pneg %p1678
        $region129: #{tpu_custom_call.1} parent=114 // pred_check_branch
          %1681 = sbr.rel (%p1679) target = $region131
        $region130: #{tpu_custom_call.1} parent=114 // pred_region
          %v1682 = vld [vmem:[#allocation3] sm:$0xff]
          %v1683 = vld [vmem:[#allocation3 + $0x8] sm:$0xff]
          %v1684 = vld [vmem:[#allocation3 + $0x10] sm:$0xff]
          %v1685 = vld [vmem:[#allocation3 + $0x18] sm:$0xff]
          %v1686 = vld [vmem:[#allocation3 + $0x20] sm:$0xff]
          %v1687 = vld [vmem:[#allocation3 + $0x28] sm:$0xff]
          %v1688 = vld [vmem:[#allocation3 + $0x30] sm:$0xff]
          %v1689 = vld [vmem:[#allocation3 + $0x38] sm:$0xff]
          %v1690 = vld [vmem:[#allocation3 + $0x40] sm:$0xff]
          %v1691 = vld [vmem:[#allocation3 + $0x48] sm:$0xff]
          %v1692 = vld [vmem:[#allocation3 + $0x50] sm:$0xff]
          %v1693 = vld [vmem:[#allocation3 + $0x58] sm:$0xff]
          %v1694 = vld [vmem:[#allocation3 + $0x60] sm:$0xff]
          %v1695 = vld [vmem:[#allocation3 + $0x68] sm:$0xff]
          %v1696 = vld [vmem:[#allocation3 + $0x70] sm:$0xff]
          %v1697 = vld [vmem:[#allocation3 + $0x78] sm:$0xff]
          %vm1698 = vcmp.eq.f32.partialorder %v1682, 0.0
          %vm1699 = vcmp.eq.f32.partialorder %v1683, 0.0
          %vm1700 = vcmp.eq.f32.partialorder %v1684, 0.0
          %vm1701 = vcmp.eq.f32.partialorder %v1685, 0.0
          %vm1702 = vcmp.eq.f32.partialorder %v1686, 0.0
          %vm1703 = vcmp.eq.f32.partialorder %v1687, 0.0
          %vm1704 = vcmp.eq.f32.partialorder %v1688, 0.0
          %vm1705 = vcmp.eq.f32.partialorder %v1689, 0.0
          %vm1706 = vcmp.eq.f32.partialorder %v1690, 0.0
          %vm1707 = vcmp.eq.f32.partialorder %v1691, 0.0
          %vm1708 = vcmp.eq.f32.partialorder %v1692, 0.0
          %vm1709 = vcmp.eq.f32.partialorder %v1693, 0.0
          %vm1710 = vcmp.eq.f32.partialorder %v1694, 0.0
          %vm1711 = vcmp.eq.f32.partialorder %v1695, 0.0
          %vm1712 = vcmp.eq.f32.partialorder %v1696, 0.0
          %vm1713 = vcmp.eq.f32.partialorder %v1697, 0.0
          %v1714 = vsel %vm1698, 1.0, %v1682
          %v1715 = vsel %vm1699, 1.0, %v1683
          %v1716 = vsel %vm1700, 1.0, %v1684
          %v1717 = vsel %vm1701, 1.0, %v1685
          %v1718 = vsel %vm1702, 1.0, %v1686
          %v1719 = vsel %vm1703, 1.0, %v1687
          %v1720 = vsel %vm1704, 1.0, %v1688
          %v1721 = vsel %vm1705, 1.0, %v1689
          %v1722 = vsel %vm1706, 1.0, %v1690
          %v1723 = vsel %vm1707, 1.0, %v1691
          %v1724 = vsel %vm1708, 1.0, %v1692
          %v1725 = vsel %vm1709, 1.0, %v1693
          %v1726 = vsel %vm1710, 1.0, %v1694
          %v1727 = vsel %vm1711, 1.0, %v1695
          %v1728 = vsel %vm1712, 1.0, %v1696
          %v1729 = vsel %vm1713, 1.0, %v1697
          %v1730 = vld [vmem:[#allocation4] sm:$0xff]
          %v1731 = vld [vmem:[#allocation4 + $0x8] sm:$0xff]
          %v1732 = vld [vmem:[#allocation4 + $0x10] sm:$0xff]
          %v1733 = vld [vmem:[#allocation4 + $0x18] sm:$0xff]
          %v1734 = vld [vmem:[#allocation4 + $0x20] sm:$0xff]
          %v1735 = vld [vmem:[#allocation4 + $0x28] sm:$0xff]
          %v1736 = vld [vmem:[#allocation4 + $0x30] sm:$0xff]
          %v1737 = vld [vmem:[#allocation4 + $0x38] sm:$0xff]
          %v1738 = vld [vmem:[#allocation4 + $0x40] sm:$0xff]
          %v1739 = vld [vmem:[#allocation4 + $0x48] sm:$0xff]
          %v1740 = vld [vmem:[#allocation4 + $0x50] sm:$0xff]
          %v1741 = vld [vmem:[#allocation4 + $0x58] sm:$0xff]
          %v1742 = vld [vmem:[#allocation4 + $0x60] sm:$0xff]
          %v1743 = vld [vmem:[#allocation4 + $0x68] sm:$0xff]
          %v1744 = vld [vmem:[#allocation4 + $0x70] sm:$0xff]
          %v1745 = vld [vmem:[#allocation4 + $0x78] sm:$0xff]
          %v1746 = vrcp.pop %v1714
          %v1747 = vrcp.pop %v1715
          %v1748 = vrcp.pop %v1716
          %v1749 = vrcp.pop %v1717
          %v1750 = vrcp.pop %v1718
          %v1751 = vrcp.pop %v1719
          %v1752 = vrcp.pop %v1720
          %v1753 = vrcp.pop %v1721
          %v1754 = vrcp.pop %v1722
          %v1755 = vrcp.pop %v1723
          %v1756 = vrcp.pop %v1724
          %v1757 = vrcp.pop %v1725
          %v1758 = vrcp.pop %v1726
          %v1759 = vrcp.pop %v1727
          %v1760 = vrcp.pop %v1728
          %v1761 = vrcp.pop %v1729
          %1763 = vset.pattern.permute.xlu0 0
          %1764 = vperm.xlu0 %1763, %v1746
          %v1765 = vpop.permute.xlu0 %1764
          %1768 = vset.pattern.permute.xlu0 0
          %1769 = vperm.xlu0 %1768, %v1747
          %v1770 = vpop.permute.xlu0 %1769
          %1773 = vset.pattern.permute.xlu0 0
          %1774 = vperm.xlu0 %1773, %v1748
          %v1775 = vpop.permute.xlu0 %1774
          %1778 = vset.pattern.permute.xlu0 0
          %1779 = vperm.xlu0 %1778, %v1749
          %v1780 = vpop.permute.xlu0 %1779
          %1783 = vset.pattern.permute.xlu0 0
          %1784 = vperm.xlu0 %1783, %v1750
          %v1785 = vpop.permute.xlu0 %1784
          %1788 = vset.pattern.permute.xlu0 0
          %1789 = vperm.xlu0 %1788, %v1751
          %v1790 = vpop.permute.xlu0 %1789
          %1793 = vset.pattern.permute.xlu0 0
          %1794 = vperm.xlu0 %1793, %v1752
          %v1795 = vpop.permute.xlu0 %1794
          %1798 = vset.pattern.permute.xlu0 0
          %1799 = vperm.xlu0 %1798, %v1753
          %v1800 = vpop.permute.xlu0 %1799
          %1803 = vset.pattern.permute.xlu0 0
          %1804 = vperm.xlu0 %1803, %v1754
          %v1805 = vpop.permute.xlu0 %1804
          %1808 = vset.pattern.permute.xlu0 0
          %1809 = vperm.xlu0 %1808, %v1755
          %v1810 = vpop.permute.xlu0 %1809
          %1813 = vset.pattern.permute.xlu0 0
          %1814 = vperm.xlu0 %1813, %v1756
          %v1815 = vpop.permute.xlu0 %1814
          %1818 = vset.pattern.permute.xlu0 0
          %1819 = vperm.xlu0 %1818, %v1757
          %v1820 = vpop.permute.xlu0 %1819
          %1823 = vset.pattern.permute.xlu0 0
          %1824 = vperm.xlu0 %1823, %v1758
          %v1825 = vpop.permute.xlu0 %1824
          %1828 = vset.pattern.permute.xlu0 0
          %1829 = vperm.xlu0 %1828, %v1759
          %v1830 = vpop.permute.xlu0 %1829
          %1833 = vset.pattern.permute.xlu0 0
          %1834 = vperm.xlu0 %1833, %v1760
          %v1835 = vpop.permute.xlu0 %1834
          %1838 = vset.pattern.permute.xlu0 0
          %1839 = vperm.xlu0 %1838, %v1761
          %v1840 = vpop.permute.xlu0 %1839
          %v1842 = vmul.f32 %v1730, %v1765
          %v1843 = vmul.f32 %v1731, %v1770
          %v1844 = vmul.f32 %v1732, %v1775
          %v1845 = vmul.f32 %v1733, %v1780
          %v1846 = vmul.f32 %v1734, %v1785
          %v1847 = vmul.f32 %v1735, %v1790
          %v1848 = vmul.f32 %v1736, %v1795
          %v1849 = vmul.f32 %v1737, %v1800
          %v1850 = vmul.f32 %v1738, %v1805
          %v1851 = vmul.f32 %v1739, %v1810
          %v1852 = vmul.f32 %v1740, %v1815
          %v1853 = vmul.f32 %v1741, %v1820
          %v1854 = vmul.f32 %v1742, %v1825
          %v1855 = vmul.f32 %v1743, %v1830
          %v1856 = vmul.f32 %v1744, %v1835
          %v1857 = vmul.f32 %v1745, %v1840
          %v1858 = vpack.c.bf16 %v1843, %v1842
          %v1859 = vpack.c.bf16 %v1845, %v1844
          %v1860 = vpack.c.bf16 %v1847, %v1846
          %v1861 = vpack.c.bf16 %v1849, %v1848
          %v1862 = vpack.c.bf16 %v1851, %v1850
          %v1863 = vpack.c.bf16 %v1853, %v1852
          %v1864 = vpack.c.bf16 %v1855, %v1854
          %v1865 = vpack.c.bf16 %v1857, %v1856
          %p1866 = scmp.eq.s32.totalorder %s33, 0
          // Predicated region
          $region132: #{tpu_custom_call.1} parent=130 // pred_check
            %p1867 = pneg %p1866
          $region133: #{tpu_custom_call.1} parent=130 // pred_check_branch
            %1869 = sbr.rel (%p1867) target = $region135
          $region134: #{tpu_custom_call.1} parent=130 // pred_region
            %v1878 = vunpack.c.l.b16 %v1858
            %v1879 = vunpack.c.h.b16 %v1858
            %v1880 = vunpack.c.l.b16 %v1859
            %v1881 = vunpack.c.h.b16 %v1859
            %v1882 = vunpack.c.l.b16 %v1860
            %v1883 = vunpack.c.h.b16 %v1860
            %v1884 = vunpack.c.l.b16 %v1861
            %v1885 = vunpack.c.h.b16 %v1861
            %v1886 = vunpack.c.l.b16 %v1862
            %v1887 = vunpack.c.h.b16 %v1862
            %v1888 = vunpack.c.l.b16 %v1863
            %v1889 = vunpack.c.h.b16 %v1863
            %v1890 = vunpack.c.l.b16 %v1864
            %v1891 = vunpack.c.h.b16 %v1864
            %v1892 = vunpack.c.l.b16 %v1865
            %v1893 = vunpack.c.h.b16 %v1865
            %v1894 = vpack.c.b16 %v1878, %v1878
            %v1895 = vpack.c.b16 %v1879, %v1879
            %v1896 = vpack.c.b16 %v1880, %v1880
            %v1897 = vpack.c.b16 %v1881, %v1881
            %v1898 = vpack.c.b16 %v1882, %v1882
            %v1899 = vpack.c.b16 %v1883, %v1883
            %v1900 = vpack.c.b16 %v1884, %v1884
            %v1901 = vpack.c.b16 %v1885, %v1885
            %v1902 = vpack.c.b16 %v1886, %v1886
            %v1903 = vpack.c.b16 %v1887, %v1887
            %v1904 = vpack.c.b16 %v1888, %v1888
            %v1905 = vpack.c.b16 %v1889, %v1889
            %v1906 = vpack.c.b16 %v1890, %v1890
            %v1907 = vpack.c.b16 %v1891, %v1891
            %v1908 = vpack.c.b16 %v1892, %v1892
            %v1909 = vpack.c.b16 %v1893, %v1893
            %vm1926 = vcmask 519168
            %1927 = vst.msk [vmem:[%s541] sm:$0xf] %vm1926, %v1894
            %1928 = vst.msk [vmem:[%s541 + $0x10] sm:$0xf] %vm1926, %v1895
            %1929 = vst.msk [vmem:[%s541 + $0x20] sm:$0xf] %vm1926, %v1896
            %1930 = vst.msk [vmem:[%s541 + $0x30] sm:$0xf] %vm1926, %v1897
            %1931 = vst.msk [vmem:[%s541 + $0x40] sm:$0xf] %vm1926, %v1898
            %1932 = vst.msk [vmem:[%s541 + $0x50] sm:$0xf] %vm1926, %v1899
            %1933 = vst.msk [vmem:[%s541 + $0x60] sm:$0xf] %vm1926, %v1900
            %1934 = vst.msk [vmem:[%s541 + $0x70] sm:$0xf] %vm1926, %v1901
            %1935 = vst.msk [vmem:[%s541 + $0x80] sm:$0xf] %vm1926, %v1902
            %1936 = vst.msk [vmem:[%s541 + $0x90] sm:$0xf] %vm1926, %v1903
            %1937 = vst.msk [vmem:[%s541 + $0xa0] sm:$0xf] %vm1926, %v1904
            %1938 = vst.msk [vmem:[%s541 + $0xb0] sm:$0xf] %vm1926, %v1905
            %1939 = vst.msk [vmem:[%s541 + $0xc0] sm:$0xf] %vm1926, %v1906
            %1940 = vst.msk [vmem:[%s541 + $0xd0] sm:$0xf] %vm1926, %v1907
            %1941 = vst.msk [vmem:[%s541 + $0xe0] sm:$0xf] %vm1926, %v1908
            %1942 = vst.msk [vmem:[%s541 + $0xf0] sm:$0xf] %vm1926, %v1909
          $region135: #{tpu_custom_call.1} parent=130 // pred_fallthru
            _
          %p1943 = scmp.eq.s32.totalorder %s33, 1
          // Predicated region
          $region136: #{tpu_custom_call.1} parent=130 // pred_check
            %p1944 = pneg %p1943
          $region137: #{tpu_custom_call.1} parent=130 // pred_check_branch
            %1946 = sbr.rel (%p1944) target = $region139
          $region138: #{tpu_custom_call.1} parent=130 // pred_region
            %v1955 = vunpack.c.l.b16 %v1858
            %v1956 = vunpack.c.h.b16 %v1858
            %v1957 = vunpack.c.l.b16 %v1859
            %v1958 = vunpack.c.h.b16 %v1859
            %v1959 = vunpack.c.l.b16 %v1860
            %v1960 = vunpack.c.h.b16 %v1860
            %v1961 = vunpack.c.l.b16 %v1861
            %v1962 = vunpack.c.h.b16 %v1861
            %v1963 = vunpack.c.l.b16 %v1862
            %v1964 = vunpack.c.h.b16 %v1862
            %v1965 = vunpack.c.l.b16 %v1863
            %v1966 = vunpack.c.h.b16 %v1863
            %v1967 = vunpack.c.l.b16 %v1864
            %v1968 = vunpack.c.h.b16 %v1864
            %v1969 = vunpack.c.l.b16 %v1865
            %v1970 = vunpack.c.h.b16 %v1865
            %v1971 = vpack.c.b16 %v1955, %v1955
            %v1972 = vpack.c.b16 %v1956, %v1956
            %v1973 = vpack.c.b16 %v1957, %v1957
            %v1974 = vpack.c.b16 %v1958, %v1958
            %v1975 = vpack.c.b16 %v1959, %v1959
            %v1976 = vpack.c.b16 %v1960, %v1960
            %v1977 = vpack.c.b16 %v1961, %v1961
            %v1978 = vpack.c.b16 %v1962, %v1962
            %v1979 = vpack.c.b16 %v1963, %v1963
            %v1980 = vpack.c.b16 %v1964, %v1964
            %v1981 = vpack.c.b16 %v1965, %v1965
            %v1982 = vpack.c.b16 %v1966, %v1966
            %v1983 = vpack.c.b16 %v1967, %v1967
            %v1984 = vpack.c.b16 %v1968, %v1968
            %v1985 = vpack.c.b16 %v1969, %v1969
            %v1986 = vpack.c.b16 %v1970, %v1970
            %1987 = vrot.lane.b32.xlu0 %v1971, 64
            %v1988 = vpop.permute.xlu0 %1987
            %1989 = vrot.lane.b32.xlu0 %v1972, 64
            %v1990 = vpop.permute.xlu0 %1989
            %1991 = vrot.lane.b32.xlu0 %v1973, 64
            %v1992 = vpop.permute.xlu0 %1991
            %1993 = vrot.lane.b32.xlu0 %v1974, 64
            %v1994 = vpop.permute.xlu0 %1993
            %1995 = vrot.lane.b32.xlu0 %v1975, 64
            %v1996 = vpop.permute.xlu0 %1995
            %1997 = vrot.lane.b32.xlu0 %v1976, 64
            %v1998 = vpop.permute.xlu0 %1997
            %1999 = vrot.lane.b32.xlu0 %v1977, 64
            %v2000 = vpop.permute.xlu0 %1999
            %2001 = vrot.lane.b32.xlu0 %v1978, 64
            %v2002 = vpop.permute.xlu0 %2001
            %2003 = vrot.lane.b32.xlu0 %v1979, 64
            %v2004 = vpop.permute.xlu0 %2003
            %2005 = vrot.lane.b32.xlu0 %v1980, 64
            %v2006 = vpop.permute.xlu0 %2005
            %2007 = vrot.lane.b32.xlu0 %v1981, 64
            %v2008 = vpop.permute.xlu0 %2007
            %2009 = vrot.lane.b32.xlu0 %v1982, 64
            %v2010 = vpop.permute.xlu0 %2009
            %2011 = vrot.lane.b32.xlu0 %v1983, 64
            %v2012 = vpop.permute.xlu0 %2011
            %2013 = vrot.lane.b32.xlu0 %v1984, 64
            %v2014 = vpop.permute.xlu0 %2013
            %2015 = vrot.lane.b32.xlu0 %v1985, 64
            %v2016 = vpop.permute.xlu0 %2015
            %2017 = vrot.lane.b32.xlu0 %v1986, 64
            %v2018 = vpop.permute.xlu0 %2017
            %vm2035 = vcmask 1043968
            %2036 = vst.msk [vmem:[%s541] sm:$0xf] %vm2035, %v1988
            %2037 = vst.msk [vmem:[%s541 + $0x10] sm:$0xf] %vm2035, %v1990
            %2038 = vst.msk [vmem:[%s541 + $0x20] sm:$0xf] %vm2035, %v1992
            %2039 = vst.msk [vmem:[%s541 + $0x30] sm:$0xf] %vm2035, %v1994
            %2040 = vst.msk [vmem:[%s541 + $0x40] sm:$0xf] %vm2035, %v1996
            %2041 = vst.msk [vmem:[%s541 + $0x50] sm:$0xf] %vm2035, %v1998
            %2042 = vst.msk [vmem:[%s541 + $0x60] sm:$0xf] %vm2035, %v2000
            %2043 = vst.msk [vmem:[%s541 + $0x70] sm:$0xf] %vm2035, %v2002
            %2044 = vst.msk [vmem:[%s541 + $0x80] sm:$0xf] %vm2035, %v2004
            %2045 = vst.msk [vmem:[%s541 + $0x90] sm:$0xf] %vm2035, %v2006
            %2046 = vst.msk [vmem:[%s541 + $0xa0] sm:$0xf] %vm2035, %v2008
            %2047 = vst.msk [vmem:[%s541 + $0xb0] sm:$0xf] %vm2035, %v2010
            %2048 = vst.msk [vmem:[%s541 + $0xc0] sm:$0xf] %vm2035, %v2012
            %2049 = vst.msk [vmem:[%s541 + $0xd0] sm:$0xf] %vm2035, %v2014
            %2050 = vst.msk [vmem:[%s541 + $0xe0] sm:$0xf] %vm2035, %v2016
            %2051 = vst.msk [vmem:[%s541 + $0xf0] sm:$0xf] %vm2035, %v2018
          $region139: #{tpu_custom_call.1} parent=130 // pred_fallthru
            _
          %p2052 = scmp.eq.s32.totalorder %s33, 2
          // Predicated region
          $region140: #{tpu_custom_call.1} parent=130 // pred_check
            %p2053 = pneg %p2052
          $region141: #{tpu_custom_call.1} parent=130 // pred_check_branch
            %2055 = sbr.rel (%p2053) target = $region143
          $region142: #{tpu_custom_call.1} parent=130 // pred_region
            %v2064 = vunpack.c.l.b16 %v1858
            %v2065 = vunpack.c.h.b16 %v1858
            %v2066 = vunpack.c.l.b16 %v1859
            %v2067 = vunpack.c.h.b16 %v1859
            %v2068 = vunpack.c.l.b16 %v1860
            %v2069 = vunpack.c.h.b16 %v1860
            %v2070 = vunpack.c.l.b16 %v1861
            %v2071 = vunpack.c.h.b16 %v1861
            %v2072 = vunpack.c.l.b16 %v1862
            %v2073 = vunpack.c.h.b16 %v1862
            %v2074 = vunpack.c.l.b16 %v1863
            %v2075 = vunpack.c.h.b16 %v1863
            %v2076 = vunpack.c.l.b16 %v1864
            %v2077 = vunpack.c.h.b16 %v1864
            %v2078 = vunpack.c.l.b16 %v1865
            %v2079 = vunpack.c.h.b16 %v1865
            %v2080 = vpack.c.b16 %v2064, %v2064
            %v2081 = vpack.c.b16 %v2065, %v2065
            %v2082 = vpack.c.b16 %v2066, %v2066
            %v2083 = vpack.c.b16 %v2067, %v2067
            %v2084 = vpack.c.b16 %v2068, %v2068
            %v2085 = vpack.c.b16 %v2069, %v2069
            %v2086 = vpack.c.b16 %v2070, %v2070
            %v2087 = vpack.c.b16 %v2071, %v2071
            %v2088 = vpack.c.b16 %v2072, %v2072
            %v2089 = vpack.c.b16 %v2073, %v2073
            %v2090 = vpack.c.b16 %v2074, %v2074
            %v2091 = vpack.c.b16 %v2075, %v2075
            %v2092 = vpack.c.b16 %v2076, %v2076
            %v2093 = vpack.c.b16 %v2077, %v2077
            %v2094 = vpack.c.b16 %v2078, %v2078
            %v2095 = vpack.c.b16 %v2079, %v2079
            %vm2112 = vcmask 519168
            %2113 = vst.msk [vmem:[%s541 + $0x4] sm:$0xf] %vm2112, %v2080
            %2114 = vst.msk [vmem:[%s541 + $0x14] sm:$0xf] %vm2112, %v2081
            %2115 = vst.msk [vmem:[%s541 + $0x24] sm:$0xf] %vm2112, %v2082
            %2116 = vst.msk [vmem:[%s541 + $0x34] sm:$0xf] %vm2112, %v2083
            %2117 = vst.msk [vmem:[%s541 + $0x44] sm:$0xf] %vm2112, %v2084
            %2118 = vst.msk [vmem:[%s541 + $0x54] sm:$0xf] %vm2112, %v2085
            %2119 = vst.msk [vmem:[%s541 + $0x64] sm:$0xf] %vm2112, %v2086
            %2120 = vst.msk [vmem:[%s541 + $0x74] sm:$0xf] %vm2112, %v2087
            %2121 = vst.msk [vmem:[%s541 + $0x84] sm:$0xf] %vm2112, %v2088
            %2122 = vst.msk [vmem:[%s541 + $0x94] sm:$0xf] %vm2112, %v2089
            %2123 = vst.msk [vmem:[%s541 + $0xa4] sm:$0xf] %vm2112, %v2090
            %2124 = vst.msk [vmem:[%s541 + $0xb4] sm:$0xf] %vm2112, %v2091
            %2125 = vst.msk [vmem:[%s541 + $0xc4] sm:$0xf] %vm2112, %v2092
            %2126 = vst.msk [vmem:[%s541 + $0xd4] sm:$0xf] %vm2112, %v2093
            %2127 = vst.msk [vmem:[%s541 + $0xe4] sm:$0xf] %vm2112, %v2094
            %2128 = vst.msk [vmem:[%s541 + $0xf4] sm:$0xf] %vm2112, %v2095
          $region143: #{tpu_custom_call.1} parent=130 // pred_fallthru
            _
          %p2129 = scmp.eq.s32.totalorder %s33, 3
          // Predicated region
          $region144: #{tpu_custom_call.1} parent=130 // pred_check
            %p2130 = pneg %p2129
          $region145: #{tpu_custom_call.1} parent=130 // pred_check_branch
            %2132 = sbr.rel (%p2130) target = $region147
          $region146: #{tpu_custom_call.1} parent=130 // pred_region
            %v2141 = vunpack.c.l.b16 %v1858
            %v2142 = vunpack.c.h.b16 %v1858
            %v2143 = vunpack.c.l.b16 %v1859
            %v2144 = vunpack.c.h.b16 %v1859
            %v2145 = vunpack.c.l.b16 %v1860
            %v2146 = vunpack.c.h.b16 %v1860
            %v2147 = vunpack.c.l.b16 %v1861
            %v2148 = vunpack.c.h.b16 %v1861
            %v2149 = vunpack.c.l.b16 %v1862
            %v2150 = vunpack.c.h.b16 %v1862
            %v2151 = vunpack.c.l.b16 %v1863
            %v2152 = vunpack.c.h.b16 %v1863
            %v2153 = vunpack.c.l.b16 %v1864
            %v2154 = vunpack.c.h.b16 %v1864
            %v2155 = vunpack.c.l.b16 %v1865
            %v2156 = vunpack.c.h.b16 %v1865
            %v2157 = vpack.c.b16 %v2141, %v2141
            %v2158 = vpack.c.b16 %v2142, %v2142
            %v2159 = vpack.c.b16 %v2143, %v2143
            %v2160 = vpack.c.b16 %v2144, %v2144
            %v2161 = vpack.c.b16 %v2145, %v2145
            %v2162 = vpack.c.b16 %v2146, %v2146
            %v2163 = vpack.c.b16 %v2147, %v2147
            %v2164 = vpack.c.b16 %v2148, %v2148
            %v2165 = vpack.c.b16 %v2149, %v2149
            %v2166 = vpack.c.b16 %v2150, %v2150
            %v2167 = vpack.c.b16 %v2151, %v2151
            %v2168 = vpack.c.b16 %v2152, %v2152
            %v2169 = vpack.c.b16 %v2153, %v2153
            %v2170 = vpack.c.b16 %v2154, %v2154
            %v2171 = vpack.c.b16 %v2155, %v2155
            %v2172 = vpack.c.b16 %v2156, %v2156
            %2173 = vrot.lane.b32.xlu0 %v2157, 64
            %v2174 = vpop.permute.xlu0 %2173
            %2175 = vrot.lane.b32.xlu0 %v2158, 64
            %v2176 = vpop.permute.xlu0 %2175
            %2177 = vrot.lane.b32.xlu0 %v2159, 64
            %v2178 = vpop.permute.xlu0 %2177
            %2179 = vrot.lane.b32.xlu0 %v2160, 64
            %v2180 = vpop.permute.xlu0 %2179
            %2181 = vrot.lane.b32.xlu0 %v2161, 64
            %v2182 = vpop.permute.xlu0 %2181
            %2183 = vrot.lane.b32.xlu0 %v2162, 64
            %v2184 = vpop.permute.xlu0 %2183
            %2185 = vrot.lane.b32.xlu0 %v2163, 64
            %v2186 = vpop.permute.xlu0 %2185
            %2187 = vrot.lane.b32.xlu0 %v2164, 64
            %v2188 = vpop.permute.xlu0 %2187
            %2189 = vrot.lane.b32.xlu0 %v2165, 64
            %v2190 = vpop.permute.xlu0 %2189
            %2191 = vrot.lane.b32.xlu0 %v2166, 64
            %v2192 = vpop.permute.xlu0 %2191
            %2193 = vrot.lane.b32.xlu0 %v2167, 64
            %v2194 = vpop.permute.xlu0 %2193
            %2195 = vrot.lane.b32.xlu0 %v2168, 64
            %v2196 = vpop.permute.xlu0 %2195
            %2197 = vrot.lane.b32.xlu0 %v2169, 64
            %v2198 = vpop.permute.xlu0 %2197
            %2199 = vrot.lane.b32.xlu0 %v2170, 64
            %v2200 = vpop.permute.xlu0 %2199
            %2201 = vrot.lane.b32.xlu0 %v2171, 64
            %v2202 = vpop.permute.xlu0 %2201
            %2203 = vrot.lane.b32.xlu0 %v2172, 64
            %v2204 = vpop.permute.xlu0 %2203
            %vm2221 = vcmask 1043968
            %2222 = vst.msk [vmem:[%s541 + $0x4] sm:$0xf] %vm2221, %v2174
            %2223 = vst.msk [vmem:[%s541 + $0x14] sm:$0xf] %vm2221, %v2176
            %2224 = vst.msk [vmem:[%s541 + $0x24] sm:$0xf] %vm2221, %v2178
            %2225 = vst.msk [vmem:[%s541 + $0x34] sm:$0xf] %vm2221, %v2180
            %2226 = vst.msk [vmem:[%s541 + $0x44] sm:$0xf] %vm2221, %v2182
            %2227 = vst.msk [vmem:[%s541 + $0x54] sm:$0xf] %vm2221, %v2184
            %2228 = vst.msk [vmem:[%s541 + $0x64] sm:$0xf] %vm2221, %v2186
            %2229 = vst.msk [vmem:[%s541 + $0x74] sm:$0xf] %vm2221, %v2188
            %2230 = vst.msk [vmem:[%s541 + $0x84] sm:$0xf] %vm2221, %v2190
            %2231 = vst.msk [vmem:[%s541 + $0x94] sm:$0xf] %vm2221, %v2192
            %2232 = vst.msk [vmem:[%s541 + $0xa4] sm:$0xf] %vm2221, %v2194
            %2233 = vst.msk [vmem:[%s541 + $0xb4] sm:$0xf] %vm2221, %v2196
            %2234 = vst.msk [vmem:[%s541 + $0xc4] sm:$0xf] %vm2221, %v2198
            %2235 = vst.msk [vmem:[%s541 + $0xd4] sm:$0xf] %vm2221, %v2200
            %2236 = vst.msk [vmem:[%s541 + $0xe4] sm:$0xf] %vm2221, %v2202
            %2237 = vst.msk [vmem:[%s541 + $0xf4] sm:$0xf] %vm2221, %v2204
          $region147: #{tpu_custom_call.1} parent=130 // pred_fallthru
            _
          %p2238 = scmp.eq.s32.totalorder %s33, 4
          // Predicated region
          $region148: #{tpu_custom_call.1} parent=130 // pred_check
            %p2239 = pneg %p2238
          $region149: #{tpu_custom_call.1} parent=130 // pred_check_branch
            %2241 = sbr.rel (%p2239) target = $region151
          $region150: #{tpu_custom_call.1} parent=130 // pred_region
            %v2250 = vunpack.c.l.b16 %v1858
            %v2251 = vunpack.c.h.b16 %v1858
            %v2252 = vunpack.c.l.b16 %v1859
            %v2253 = vunpack.c.h.b16 %v1859
            %v2254 = vunpack.c.l.b16 %v1860
            %v2255 = vunpack.c.h.b16 %v1860
            %v2256 = vunpack.c.l.b16 %v1861
            %v2257 = vunpack.c.h.b16 %v1861
            %v2258 = vunpack.c.l.b16 %v1862
            %v2259 = vunpack.c.h.b16 %v1862
            %v2260 = vunpack.c.l.b16 %v1863
            %v2261 = vunpack.c.h.b16 %v1863
            %v2262 = vunpack.c.l.b16 %v1864
            %v2263 = vunpack.c.h.b16 %v1864
            %v2264 = vunpack.c.l.b16 %v1865
            %v2265 = vunpack.c.h.b16 %v1865
            %v2266 = vpack.c.b16 %v2250, %v2250
            %v2267 = vpack.c.b16 %v2251, %v2251
            %v2268 = vpack.c.b16 %v2252, %v2252
            %v2269 = vpack.c.b16 %v2253, %v2253
            %v2270 = vpack.c.b16 %v2254, %v2254
            %v2271 = vpack.c.b16 %v2255, %v2255
            %v2272 = vpack.c.b16 %v2256, %v2256
            %v2273 = vpack.c.b16 %v2257, %v2257
            %v2274 = vpack.c.b16 %v2258, %v2258
            %v2275 = vpack.c.b16 %v2259, %v2259
            %v2276 = vpack.c.b16 %v2260, %v2260
            %v2277 = vpack.c.b16 %v2261, %v2261
            %v2278 = vpack.c.b16 %v2262, %v2262
            %v2279 = vpack.c.b16 %v2263, %v2263
            %v2280 = vpack.c.b16 %v2264, %v2264
            %v2281 = vpack.c.b16 %v2265, %v2265
            %vm2298 = vcmask 519168
            %2299 = vst.msk [vmem:[%s541 + $0x8] sm:$0xf] %vm2298, %v2266
            %2300 = vst.msk [vmem:[%s541 + $0x18] sm:$0xf] %vm2298, %v2267
            %2301 = vst.msk [vmem:[%s541 + $0x28] sm:$0xf] %vm2298, %v2268
            %2302 = vst.msk [vmem:[%s541 + $0x38] sm:$0xf] %vm2298, %v2269
            %2303 = vst.msk [vmem:[%s541 + $0x48] sm:$0xf] %vm2298, %v2270
            %2304 = vst.msk [vmem:[%s541 + $0x58] sm:$0xf] %vm2298, %v2271
            %2305 = vst.msk [vmem:[%s541 + $0x68] sm:$0xf] %vm2298, %v2272
            %2306 = vst.msk [vmem:[%s541 + $0x78] sm:$0xf] %vm2298, %v2273
            %2307 = vst.msk [vmem:[%s541 + $0x88] sm:$0xf] %vm2298, %v2274
            %2308 = vst.msk [vmem:[%s541 + $0x98] sm:$0xf] %vm2298, %v2275
            %2309 = vst.msk [vmem:[%s541 + $0xa8] sm:$0xf] %vm2298, %v2276
            %2310 = vst.msk [vmem:[%s541 + $0xb8] sm:$0xf] %vm2298, %v2277
            %2311 = vst.msk [vmem:[%s541 + $0xc8] sm:$0xf] %vm2298, %v2278
            %2312 = vst.msk [vmem:[%s541 + $0xd8] sm:$0xf] %vm2298, %v2279
            %2313 = vst.msk [vmem:[%s541 + $0xe8] sm:$0xf] %vm2298, %v2280
            %2314 = vst.msk [vmem:[%s541 + $0xf8] sm:$0xf] %vm2298, %v2281
          $region151: #{tpu_custom_call.1} parent=130 // pred_fallthru
            _
          %p2315 = scmp.eq.s32.totalorder %s33, 5
          // Predicated region
          $region152: #{tpu_custom_call.1} parent=130 // pred_check
            %p2316 = pneg %p2315
          $region153: #{tpu_custom_call.1} parent=130 // pred_check_branch
            %2318 = sbr.rel (%p2316) target = $region155
          $region154: #{tpu_custom_call.1} parent=130 // pred_region
            %v2327 = vunpack.c.l.b16 %v1858
            %v2328 = vunpack.c.h.b16 %v1858
            %v2329 = vunpack.c.l.b16 %v1859
            %v2330 = vunpack.c.h.b16 %v1859
            %v2331 = vunpack.c.l.b16 %v1860
            %v2332 = vunpack.c.h.b16 %v1860
            %v2333 = vunpack.c.l.b16 %v1861
            %v2334 = vunpack.c.h.b16 %v1861
            %v2335 = vunpack.c.l.b16 %v1862
            %v2336 = vunpack.c.h.b16 %v1862
            %v2337 = vunpack.c.l.b16 %v1863
            %v2338 = vunpack.c.h.b16 %v1863
            %v2339 = vunpack.c.l.b16 %v1864
            %v2340 = vunpack.c.h.b16 %v1864
            %v2341 = vunpack.c.l.b16 %v1865
            %v2342 = vunpack.c.h.b16 %v1865
            %v2343 = vpack.c.b16 %v2327, %v2327
            %v2344 = vpack.c.b16 %v2328, %v2328
            %v2345 = vpack.c.b16 %v2329, %v2329
            %v2346 = vpack.c.b16 %v2330, %v2330
            %v2347 = vpack.c.b16 %v2331, %v2331
            %v2348 = vpack.c.b16 %v2332, %v2332
            %v2349 = vpack.c.b16 %v2333, %v2333
            %v2350 = vpack.c.b16 %v2334, %v2334
            %v2351 = vpack.c.b16 %v2335, %v2335
            %v2352 = vpack.c.b16 %v2336, %v2336
            %v2353 = vpack.c.b16 %v2337, %v2337
            %v2354 = vpack.c.b16 %v2338, %v2338
            %v2355 = vpack.c.b16 %v2339, %v2339
            %v2356 = vpack.c.b16 %v2340, %v2340
            %v2357 = vpack.c.b16 %v2341, %v2341
            %v2358 = vpack.c.b16 %v2342, %v2342
            %2359 = vrot.lane.b32.xlu0 %v2343, 64
            %v2360 = vpop.permute.xlu0 %2359
            %2361 = vrot.lane.b32.xlu0 %v2344, 64
            %v2362 = vpop.permute.xlu0 %2361
            %2363 = vrot.lane.b32.xlu0 %v2345, 64
            %v2364 = vpop.permute.xlu0 %2363
            %2365 = vrot.lane.b32.xlu0 %v2346, 64
            %v2366 = vpop.permute.xlu0 %2365
            %2367 = vrot.lane.b32.xlu0 %v2347, 64
            %v2368 = vpop.permute.xlu0 %2367
            %2369 = vrot.lane.b32.xlu0 %v2348, 64
            %v2370 = vpop.permute.xlu0 %2369
            %2371 = vrot.lane.b32.xlu0 %v2349, 64
            %v2372 = vpop.permute.xlu0 %2371
            %2373 = vrot.lane.b32.xlu0 %v2350, 64
            %v2374 = vpop.permute.xlu0 %2373
            %2375 = vrot.lane.b32.xlu0 %v2351, 64
            %v2376 = vpop.permute.xlu0 %2375
            %2377 = vrot.lane.b32.xlu0 %v2352, 64
            %v2378 = vpop.permute.xlu0 %2377
            %2379 = vrot.lane.b32.xlu0 %v2353, 64
            %v2380 = vpop.permute.xlu0 %2379
            %2381 = vrot.lane.b32.xlu0 %v2354, 64
            %v2382 = vpop.permute.xlu0 %2381
            %2383 = vrot.lane.b32.xlu0 %v2355, 64
            %v2384 = vpop.permute.xlu0 %2383
            %2385 = vrot.lane.b32.xlu0 %v2356, 64
            %v2386 = vpop.permute.xlu0 %2385
            %2387 = vrot.lane.b32.xlu0 %v2357, 64
            %v2388 = vpop.permute.xlu0 %2387
            %2389 = vrot.lane.b32.xlu0 %v2358, 64
            %v2390 = vpop.permute.xlu0 %2389
            %vm2407 = vcmask 1043968
            %2408 = vst.msk [vmem:[%s541 + $0x8] sm:$0xf] %vm2407, %v2360
            %2409 = vst.msk [vmem:[%s541 + $0x18] sm:$0xf] %vm2407, %v2362
            %2410 = vst.msk [vmem:[%s541 + $0x28] sm:$0xf] %vm2407, %v2364
            %2411 = vst.msk [vmem:[%s541 + $0x38] sm:$0xf] %vm2407, %v2366
            %2412 = vst.msk [vmem:[%s541 + $0x48] sm:$0xf] %vm2407, %v2368
            %2413 = vst.msk [vmem:[%s541 + $0x58] sm:$0xf] %vm2407, %v2370
            %2414 = vst.msk [vmem:[%s541 + $0x68] sm:$0xf] %vm2407, %v2372
            %2415 = vst.msk [vmem:[%s541 + $0x78] sm:$0xf] %vm2407, %v2374
            %2416 = vst.msk [vmem:[%s541 + $0x88] sm:$0xf] %vm2407, %v2376
            %2417 = vst.msk [vmem:[%s541 + $0x98] sm:$0xf] %vm2407, %v2378
            %2418 = vst.msk [vmem:[%s541 + $0xa8] sm:$0xf] %vm2407, %v2380
            %2419 = vst.msk [vmem:[%s541 + $0xb8] sm:$0xf] %vm2407, %v2382
            %2420 = vst.msk [vmem:[%s541 + $0xc8] sm:$0xf] %vm2407, %v2384
            %2421 = vst.msk [vmem:[%s541 + $0xd8] sm:$0xf] %vm2407, %v2386
            %2422 = vst.msk [vmem:[%s541 + $0xe8] sm:$0xf] %vm2407, %v2388
            %2423 = vst.msk [vmem:[%s541 + $0xf8] sm:$0xf] %vm2407, %v2390
          $region155: #{tpu_custom_call.1} parent=130 // pred_fallthru
            _
          %p2424 = scmp.eq.s32.totalorder %s33, 6
          // Predicated region
          $region156: #{tpu_custom_call.1} parent=130 // pred_check
            %p2425 = pneg %p2424
          $region157: #{tpu_custom_call.1} parent=130 // pred_check_branch
            %2427 = sbr.rel (%p2425) target = $region159
          $region158: #{tpu_custom_call.1} parent=130 // pred_region
            %v2436 = vunpack.c.l.b16 %v1858
            %v2437 = vunpack.c.h.b16 %v1858
            %v2438 = vunpack.c.l.b16 %v1859
            %v2439 = vunpack.c.h.b16 %v1859
            %v2440 = vunpack.c.l.b16 %v1860
            %v2441 = vunpack.c.h.b16 %v1860
            %v2442 = vunpack.c.l.b16 %v1861
            %v2443 = vunpack.c.h.b16 %v1861
            %v2444 = vunpack.c.l.b16 %v1862
            %v2445 = vunpack.c.h.b16 %v1862
            %v2446 = vunpack.c.l.b16 %v1863
            %v2447 = vunpack.c.h.b16 %v1863
            %v2448 = vunpack.c.l.b16 %v1864
            %v2449 = vunpack.c.h.b16 %v1864
            %v2450 = vunpack.c.l.b16 %v1865
            %v2451 = vunpack.c.h.b16 %v1865
            %v2452 = vpack.c.b16 %v2436, %v2436
            %v2453 = vpack.c.b16 %v2437, %v2437
            %v2454 = vpack.c.b16 %v2438, %v2438
            %v2455 = vpack.c.b16 %v2439, %v2439
            %v2456 = vpack.c.b16 %v2440, %v2440
            %v2457 = vpack.c.b16 %v2441, %v2441
            %v2458 = vpack.c.b16 %v2442, %v2442
            %v2459 = vpack.c.b16 %v2443, %v2443
            %v2460 = vpack.c.b16 %v2444, %v2444
            %v2461 = vpack.c.b16 %v2445, %v2445
            %v2462 = vpack.c.b16 %v2446, %v2446
            %v2463 = vpack.c.b16 %v2447, %v2447
            %v2464 = vpack.c.b16 %v2448, %v2448
            %v2465 = vpack.c.b16 %v2449, %v2449
            %v2466 = vpack.c.b16 %v2450, %v2450
            %v2467 = vpack.c.b16 %v2451, %v2451
            %vm2484 = vcmask 519168
            %2485 = vst.msk [vmem:[%s541 + $0xc] sm:$0xf] %vm2484, %v2452
            %2486 = vst.msk [vmem:[%s541 + $0x1c] sm:$0xf] %vm2484, %v2453
            %2487 = vst.msk [vmem:[%s541 + $0x2c] sm:$0xf] %vm2484, %v2454
            %2488 = vst.msk [vmem:[%s541 + $0x3c] sm:$0xf] %vm2484, %v2455
            %2489 = vst.msk [vmem:[%s541 + $0x4c] sm:$0xf] %vm2484, %v2456
            %2490 = vst.msk [vmem:[%s541 + $0x5c] sm:$0xf] %vm2484, %v2457
            %2491 = vst.msk [vmem:[%s541 + $0x6c] sm:$0xf] %vm2484, %v2458
            %2492 = vst.msk [vmem:[%s541 + $0x7c] sm:$0xf] %vm2484, %v2459
            %2493 = vst.msk [vmem:[%s541 + $0x8c] sm:$0xf] %vm2484, %v2460
            %2494 = vst.msk [vmem:[%s541 + $0x9c] sm:$0xf] %vm2484, %v2461
            %2495 = vst.msk [vmem:[%s541 + $0xac] sm:$0xf] %vm2484, %v2462
            %2496 = vst.msk [vmem:[%s541 + $0xbc] sm:$0xf] %vm2484, %v2463
            %2497 = vst.msk [vmem:[%s541 + $0xcc] sm:$0xf] %vm2484, %v2464
            %2498 = vst.msk [vmem:[%s541 + $0xdc] sm:$0xf] %vm2484, %v2465
            %2499 = vst.msk [vmem:[%s541 + $0xec] sm:$0xf] %vm2484, %v2466
            %2500 = vst.msk [vmem:[%s541 + $0xfc] sm:$0xf] %vm2484, %v2467
          $region159: #{tpu_custom_call.1} parent=130 // pred_fallthru
            _
          %p2501 = scmp.eq.s32.totalorder %s33, 7
          // Predicated region
          $region160: #{tpu_custom_call.1} parent=130 // pred_check
            %p2502 = pneg %p2501
          $region161: #{tpu_custom_call.1} parent=130 // pred_check_branch
            %2504 = sbr.rel (%p2502) target = $region163
          $region162: #{tpu_custom_call.1} parent=130 // pred_region
            %v2513 = vunpack.c.l.b16 %v1858
            %v2514 = vunpack.c.h.b16 %v1858
            %v2515 = vunpack.c.l.b16 %v1859
            %v2516 = vunpack.c.h.b16 %v1859
            %v2517 = vunpack.c.l.b16 %v1860
            %v2518 = vunpack.c.h.b16 %v1860
            %v2519 = vunpack.c.l.b16 %v1861
            %v2520 = vunpack.c.h.b16 %v1861
            %v2521 = vunpack.c.l.b16 %v1862
            %v2522 = vunpack.c.h.b16 %v1862
            %v2523 = vunpack.c.l.b16 %v1863
            %v2524 = vunpack.c.h.b16 %v1863
            %v2525 = vunpack.c.l.b16 %v1864
            %v2526 = vunpack.c.h.b16 %v1864
            %v2527 = vunpack.c.l.b16 %v1865
            %v2528 = vunpack.c.h.b16 %v1865
            %v2529 = vpack.c.b16 %v2513, %v2513
            %v2530 = vpack.c.b16 %v2514, %v2514
            %v2531 = vpack.c.b16 %v2515, %v2515
            %v2532 = vpack.c.b16 %v2516, %v2516
            %v2533 = vpack.c.b16 %v2517, %v2517
            %v2534 = vpack.c.b16 %v2518, %v2518
            %v2535 = vpack.c.b16 %v2519, %v2519
            %v2536 = vpack.c.b16 %v2520, %v2520
            %v2537 = vpack.c.b16 %v2521, %v2521
            %v2538 = vpack.c.b16 %v2522, %v2522
            %v2539 = vpack.c.b16 %v2523, %v2523
            %v2540 = vpack.c.b16 %v2524, %v2524
            %v2541 = vpack.c.b16 %v2525, %v2525
            %v2542 = vpack.c.b16 %v2526, %v2526
            %v2543 = vpack.c.b16 %v2527, %v2527
            %v2544 = vpack.c.b16 %v2528, %v2528
            %2545 = vrot.lane.b32.xlu0 %v2529, 64
            %v2546 = vpop.permute.xlu0 %2545
            %2547 = vrot.lane.b32.xlu0 %v2530, 64
            %v2548 = vpop.permute.xlu0 %2547
            %2549 = vrot.lane.b32.xlu0 %v2531, 64
            %v2550 = vpop.permute.xlu0 %2549
            %2551 = vrot.lane.b32.xlu0 %v2532, 64
            %v2552 = vpop.permute.xlu0 %2551
            %2553 = vrot.lane.b32.xlu0 %v2533, 64
            %v2554 = vpop.permute.xlu0 %2553
            %2555 = vrot.lane.b32.xlu0 %v2534, 64
            %v2556 = vpop.permute.xlu0 %2555
            %2557 = vrot.lane.b32.xlu0 %v2535, 64
            %v2558 = vpop.permute.xlu0 %2557
            %2559 = vrot.lane.b32.xlu0 %v2536, 64
            %v2560 = vpop.permute.xlu0 %2559
            %2561 = vrot.lane.b32.xlu0 %v2537, 64
            %v2562 = vpop.permute.xlu0 %2561
            %2563 = vrot.lane.b32.xlu0 %v2538, 64
            %v2564 = vpop.permute.xlu0 %2563
            %2565 = vrot.lane.b32.xlu0 %v2539, 64
            %v2566 = vpop.permute.xlu0 %2565
            %2567 = vrot.lane.b32.xlu0 %v2540, 64
            %v2568 = vpop.permute.xlu0 %2567
            %2569 = vrot.lane.b32.xlu0 %v2541, 64
            %v2570 = vpop.permute.xlu0 %2569
            %2571 = vrot.lane.b32.xlu0 %v2542, 64
            %v2572 = vpop.permute.xlu0 %2571
            %2573 = vrot.lane.b32.xlu0 %v2543, 64
            %v2574 = vpop.permute.xlu0 %2573
            %2575 = vrot.lane.b32.xlu0 %v2544, 64
            %v2576 = vpop.permute.xlu0 %2575
            %vm2593 = vcmask 1043968
            %2594 = vst.msk [vmem:[%s541 + $0xc] sm:$0xf] %vm2593, %v2546
            %2595 = vst.msk [vmem:[%s541 + $0x1c] sm:$0xf] %vm2593, %v2548
            %2596 = vst.msk [vmem:[%s541 + $0x2c] sm:$0xf] %vm2593, %v2550
            %2597 = vst.msk [vmem:[%s541 + $0x3c] sm:$0xf] %vm2593, %v2552
            %2598 = vst.msk [vmem:[%s541 + $0x4c] sm:$0xf] %vm2593, %v2554
            %2599 = vst.msk [vmem:[%s541 + $0x5c] sm:$0xf] %vm2593, %v2556
            %2600 = vst.msk [vmem:[%s541 + $0x6c] sm:$0xf] %vm2593, %v2558
            %2601 = vst.msk [vmem:[%s541 + $0x7c] sm:$0xf] %vm2593, %v2560
            %2602 = vst.msk [vmem:[%s541 + $0x8c] sm:$0xf] %vm2593, %v2562
            %2603 = vst.msk [vmem:[%s541 + $0x9c] sm:$0xf] %vm2593, %v2564
            %2604 = vst.msk [vmem:[%s541 + $0xac] sm:$0xf] %vm2593, %v2566
            %2605 = vst.msk [vmem:[%s541 + $0xbc] sm:$0xf] %vm2593, %v2568
            %2606 = vst.msk [vmem:[%s541 + $0xcc] sm:$0xf] %vm2593, %v2570
            %2607 = vst.msk [vmem:[%s541 + $0xdc] sm:$0xf] %vm2593, %v2572
            %2608 = vst.msk [vmem:[%s541 + $0xec] sm:$0xf] %vm2593, %v2574
            %2609 = vst.msk [vmem:[%s541 + $0xfc] sm:$0xf] %vm2593, %v2576
            %v2610 = vld [vmem:[%s541] sm:$0xff]
            %v2611 = vld [vmem:[%s541 + $0x8] sm:$0xff]
            %v2612 = vld [vmem:[%s541 + $0x10] sm:$0xff]
            %v2613 = vld [vmem:[%s541 + $0x18] sm:$0xff]
            %v2614 = vld [vmem:[%s541 + $0x20] sm:$0xff]
            %v2615 = vld [vmem:[%s541 + $0x28] sm:$0xff]
            %v2616 = vld [vmem:[%s541 + $0x30] sm:$0xff]
            %v2617 = vld [vmem:[%s541 + $0x38] sm:$0xff]
            %v2618 = vld [vmem:[%s541 + $0x40] sm:$0xff]
            %v2619 = vld [vmem:[%s541 + $0x48] sm:$0xff]
            %v2620 = vld [vmem:[%s541 + $0x50] sm:$0xff]
            %v2621 = vld [vmem:[%s541 + $0x58] sm:$0xff]
            %v2622 = vld [vmem:[%s541 + $0x60] sm:$0xff]
            %v2623 = vld [vmem:[%s541 + $0x68] sm:$0xff]
            %v2624 = vld [vmem:[%s541 + $0x70] sm:$0xff]
            %v2625 = vld [vmem:[%s541 + $0x78] sm:$0xff]
            %v2626 = vld [vmem:[%s541 + $0x80] sm:$0xff]
            %v2627 = vld [vmem:[%s541 + $0x88] sm:$0xff]
            %v2628 = vld [vmem:[%s541 + $0x90] sm:$0xff]
            %v2629 = vld [vmem:[%s541 + $0x98] sm:$0xff]
            %v2630 = vld [vmem:[%s541 + $0xa0] sm:$0xff]
            %v2631 = vld [vmem:[%s541 + $0xa8] sm:$0xff]
            %v2632 = vld [vmem:[%s541 + $0xb0] sm:$0xff]
            %v2633 = vld [vmem:[%s541 + $0xb8] sm:$0xff]
            %v2634 = vld [vmem:[%s541 + $0xc0] sm:$0xff]
            %v2635 = vld [vmem:[%s541 + $0xc8] sm:$0xff]
            %v2636 = vld [vmem:[%s541 + $0xd0] sm:$0xff]
            %v2637 = vld [vmem:[%s541 + $0xd8] sm:$0xff]
            %v2638 = vld [vmem:[%s541 + $0xe0] sm:$0xff]
            %v2639 = vld [vmem:[%s541 + $0xe8] sm:$0xff]
            %v2640 = vld [vmem:[%s541 + $0xf0] sm:$0xff]
            %v2641 = vld [vmem:[%s541 + $0xf8] sm:$0xff]
            %v2642 = vld [vmem:[%s4] sm:$0xff]
            %v2643 = vld [vmem:[%s4 + $0x8] sm:$0xff]
            %v2644 = vld [vmem:[%s4 + $0x10] sm:$0xff]
            %v2645 = vld [vmem:[%s4 + $0x18] sm:$0xff]
            %v2646 = vld [vmem:[%s4 + $0x20] sm:$0xff]
            %v2647 = vld [vmem:[%s4 + $0x28] sm:$0xff]
            %v2648 = vld [vmem:[%s4 + $0x30] sm:$0xff]
            %v2649 = vld [vmem:[%s4 + $0x38] sm:$0xff]
            %v2650 = vld [vmem:[%s4 + $0x40] sm:$0xff]
            %v2651 = vld [vmem:[%s4 + $0x48] sm:$0xff]
            %v2652 = vld [vmem:[%s4 + $0x50] sm:$0xff]
            %v2653 = vld [vmem:[%s4 + $0x58] sm:$0xff]
            %v2654 = vld [vmem:[%s4 + $0x60] sm:$0xff]
            %v2655 = vld [vmem:[%s4 + $0x68] sm:$0xff]
            %v2656 = vld [vmem:[%s4 + $0x70] sm:$0xff]
            %v2657 = vld [vmem:[%s4 + $0x78] sm:$0xff]
            %v2658 = vld [vmem:[%s4 + $0x80] sm:$0xff]
            %v2659 = vld [vmem:[%s4 + $0x88] sm:$0xff]
            %v2660 = vld [vmem:[%s4 + $0x90] sm:$0xff]
            %v2661 = vld [vmem:[%s4 + $0x98] sm:$0xff]
            %v2662 = vld [vmem:[%s4 + $0xa0] sm:$0xff]
            %v2663 = vld [vmem:[%s4 + $0xa8] sm:$0xff]
            %v2664 = vld [vmem:[%s4 + $0xb0] sm:$0xff]
            %v2665 = vld [vmem:[%s4 + $0xb8] sm:$0xff]
            %v2666 = vld [vmem:[%s4 + $0xc0] sm:$0xff]
            %v2667 = vld [vmem:[%s4 + $0xc8] sm:$0xff]
            %v2668 = vld [vmem:[%s4 + $0xd0] sm:$0xff]
            %v2669 = vld [vmem:[%s4 + $0xd8] sm:$0xff]
            %v2670 = vld [vmem:[%s4 + $0xe0] sm:$0xff]
            %v2671 = vld [vmem:[%s4 + $0xe8] sm:$0xff]
            %v2672 = vld [vmem:[%s4 + $0xf0] sm:$0xff]
            %v2673 = vld [vmem:[%s4 + $0xf8] sm:$0xff]
            %v2674 = vld [vmem:[%s4 + $0x100] sm:$0xff]
            %v2675 = vld [vmem:[%s4 + $0x108] sm:$0xff]
            %v2676 = vld [vmem:[%s4 + $0x110] sm:$0xff]
            %v2677 = vld [vmem:[%s4 + $0x118] sm:$0xff]
            %v2678 = vld [vmem:[%s4 + $0x120] sm:$0xff]
            %v2679 = vld [vmem:[%s4 + $0x128] sm:$0xff]
            %v2680 = vld [vmem:[%s4 + $0x130] sm:$0xff]
            %v2681 = vld [vmem:[%s4 + $0x138] sm:$0xff]
            %v2682 = vld [vmem:[%s4 + $0x140] sm:$0xff]
            %v2683 = vld [vmem:[%s4 + $0x148] sm:$0xff]
            %v2684 = vld [vmem:[%s4 + $0x150] sm:$0xff]
            %v2685 = vld [vmem:[%s4 + $0x158] sm:$0xff]
            %v2686 = vld [vmem:[%s4 + $0x160] sm:$0xff]
            %v2687 = vld [vmem:[%s4 + $0x168] sm:$0xff]
            %v2688 = vld [vmem:[%s4 + $0x170] sm:$0xff]
            %v2689 = vld [vmem:[%s4 + $0x178] sm:$0xff]
            %v2690 = vld [vmem:[%s4 + $0x180] sm:$0xff]
            %v2691 = vld [vmem:[%s4 + $0x188] sm:$0xff]
            %v2692 = vld [vmem:[%s4 + $0x190] sm:$0xff]
            %v2693 = vld [vmem:[%s4 + $0x198] sm:$0xff]
            %v2694 = vld [vmem:[%s4 + $0x1a0] sm:$0xff]
            %v2695 = vld [vmem:[%s4 + $0x1a8] sm:$0xff]
            %v2696 = vld [vmem:[%s4 + $0x1b0] sm:$0xff]
            %v2697 = vld [vmem:[%s4 + $0x1b8] sm:$0xff]
            %v2698 = vld [vmem:[%s4 + $0x1c0] sm:$0xff]
            %v2699 = vld [vmem:[%s4 + $0x1c8] sm:$0xff]
            %v2700 = vld [vmem:[%s4 + $0x1d0] sm:$0xff]
            %v2701 = vld [vmem:[%s4 + $0x1d8] sm:$0xff]
            %v2702 = vld [vmem:[%s4 + $0x1e0] sm:$0xff]
            %v2703 = vld [vmem:[%s4 + $0x1e8] sm:$0xff]
            %v2704 = vld [vmem:[%s4 + $0x1f0] sm:$0xff]
            %v2705 = vld [vmem:[%s4 + $0x1f8] sm:$0xff]
            %v2706 = vld [vmem:[%s4 + $0x200] sm:$0xff]
            %v2707 = vld [vmem:[%s4 + $0x208] sm:$0xff]
            %v2708 = vld [vmem:[%s4 + $0x210] sm:$0xff]
            %v2709 = vld [vmem:[%s4 + $0x218] sm:$0xff]
            %v2710 = vld [vmem:[%s4 + $0x220] sm:$0xff]
            %v2711 = vld [vmem:[%s4 + $0x228] sm:$0xff]
            %v2712 = vld [vmem:[%s4 + $0x230] sm:$0xff]
            %v2713 = vld [vmem:[%s4 + $0x238] sm:$0xff]
            %v2714 = vld [vmem:[%s4 + $0x240] sm:$0xff]
            %v2715 = vld [vmem:[%s4 + $0x248] sm:$0xff]
            %v2716 = vld [vmem:[%s4 + $0x250] sm:$0xff]
            %v2717 = vld [vmem:[%s4 + $0x258] sm:$0xff]
            %v2718 = vld [vmem:[%s4 + $0x260] sm:$0xff]
            %v2719 = vld [vmem:[%s4 + $0x268] sm:$0xff]
            %v2720 = vld [vmem:[%s4 + $0x270] sm:$0xff]
            %v2721 = vld [vmem:[%s4 + $0x278] sm:$0xff]
            %v2722 = vld [vmem:[%s4 + $0x280] sm:$0xff]
            %v2723 = vld [vmem:[%s4 + $0x288] sm:$0xff]
            %v2724 = vld [vmem:[%s4 + $0x290] sm:$0xff]
            %v2725 = vld [vmem:[%s4 + $0x298] sm:$0xff]
            %v2726 = vld [vmem:[%s4 + $0x2a0] sm:$0xff]
            %v2727 = vld [vmem:[%s4 + $0x2a8] sm:$0xff]
            %v2728 = vld [vmem:[%s4 + $0x2b0] sm:$0xff]
            %v2729 = vld [vmem:[%s4 + $0x2b8] sm:$0xff]
            %v2730 = vld [vmem:[%s4 + $0x2c0] sm:$0xff]
            %v2731 = vld [vmem:[%s4 + $0x2c8] sm:$0xff]
            %v2732 = vld [vmem:[%s4 + $0x2d0] sm:$0xff]
            %v2733 = vld [vmem:[%s4 + $0x2d8] sm:$0xff]
            %v2734 = vld [vmem:[%s4 + $0x2e0] sm:$0xff]
            %v2735 = vld [vmem:[%s4 + $0x2e8] sm:$0xff]
            %v2736 = vld [vmem:[%s4 + $0x2f0] sm:$0xff]
            %v2737 = vld [vmem:[%s4 + $0x2f8] sm:$0xff]
            %v2738 = vld [vmem:[%s4 + $0x300] sm:$0xff]
            %v2739 = vld [vmem:[%s4 + $0x308] sm:$0xff]
            %v2740 = vld [vmem:[%s4 + $0x310] sm:$0xff]
            %v2741 = vld [vmem:[%s4 + $0x318] sm:$0xff]
            %v2742 = vld [vmem:[%s4 + $0x320] sm:$0xff]
            %v2743 = vld [vmem:[%s4 + $0x328] sm:$0xff]
            %v2744 = vld [vmem:[%s4 + $0x330] sm:$0xff]
            %v2745 = vld [vmem:[%s4 + $0x338] sm:$0xff]
            %v2746 = vld [vmem:[%s4 + $0x340] sm:$0xff]
            %v2747 = vld [vmem:[%s4 + $0x348] sm:$0xff]
            %v2748 = vld [vmem:[%s4 + $0x350] sm:$0xff]
            %v2749 = vld [vmem:[%s4 + $0x358] sm:$0xff]
            %v2750 = vld [vmem:[%s4 + $0x360] sm:$0xff]
            %v2751 = vld [vmem:[%s4 + $0x368] sm:$0xff]
            %v2752 = vld [vmem:[%s4 + $0x370] sm:$0xff]
            %v2753 = vld [vmem:[%s4 + $0x378] sm:$0xff]
            %v2754 = vld [vmem:[%s4 + $0x380] sm:$0xff]
            %v2755 = vld [vmem:[%s4 + $0x388] sm:$0xff]
            %v2756 = vld [vmem:[%s4 + $0x390] sm:$0xff]
            %v2757 = vld [vmem:[%s4 + $0x398] sm:$0xff]
            %v2758 = vld [vmem:[%s4 + $0x3a0] sm:$0xff]
            %v2759 = vld [vmem:[%s4 + $0x3a8] sm:$0xff]
            %v2760 = vld [vmem:[%s4 + $0x3b0] sm:$0xff]
            %v2761 = vld [vmem:[%s4 + $0x3b8] sm:$0xff]
            %v2762 = vld [vmem:[%s4 + $0x3c0] sm:$0xff]
            %v2763 = vld [vmem:[%s4 + $0x3c8] sm:$0xff]
            %v2764 = vld [vmem:[%s4 + $0x3d0] sm:$0xff]
            %v2765 = vld [vmem:[%s4 + $0x3d8] sm:$0xff]
            %v2766 = vld [vmem:[%s4 + $0x3e0] sm:$0xff]
            %v2767 = vld [vmem:[%s4 + $0x3e8] sm:$0xff]
            %v2768 = vld [vmem:[%s4 + $0x3f0] sm:$0xff]
            %v2769 = vld [vmem:[%s4 + $0x3f8] sm:$0xff]
            %v2770 = vld [vmem:[%s5] sm:$0xf]
            %v2772 = vlaneseq
            %v2773 = vshrl.u32 %v2772, 7
            %v2774 = vsub.s32 0, %v2773
            %v2775 = vrot.slane %v2770, %v2774
            %v2776 = vlaneseq
            %v2777 = vshrl.u32 %v2776, 7
            %v2778 = vsub.s32 1, %v2777
            %v2779 = vrot.slane %v2770, %v2778
            %v2780 = vlaneseq
            %v2781 = vshrl.u32 %v2780, 7
            %v2782 = vsub.s32 2, %v2781
            %v2783 = vrot.slane %v2770, %v2782
            %v2784 = vlaneseq
            %v2785 = vshrl.u32 %v2784, 7
            %v2786 = vsub.s32 3, %v2785
            %v2787 = vrot.slane %v2770, %v2786
            %v2824 = vunpack.c.l.b16 %v2610
            %v2825 = vunpack.c.h.b16 %v2610
            %v2826 = vunpack.c.l.b16 %v2611
            %v2827 = vunpack.c.h.b16 %v2611
            %v2828 = vunpack.c.l.b16 %v2612
            %v2829 = vunpack.c.h.b16 %v2612
            %v2830 = vunpack.c.l.b16 %v2613
            %v2831 = vunpack.c.h.b16 %v2613
            %v2832 = vunpack.c.l.b16 %v2614
            %v2833 = vunpack.c.h.b16 %v2614
            %v2834 = vunpack.c.l.b16 %v2615
            %v2835 = vunpack.c.h.b16 %v2615
            %v2836 = vunpack.c.l.b16 %v2616
            %v2837 = vunpack.c.h.b16 %v2616
            %v2838 = vunpack.c.l.b16 %v2617
            %v2839 = vunpack.c.h.b16 %v2617
            %v2840 = vunpack.c.l.b16 %v2618
            %v2841 = vunpack.c.h.b16 %v2618
            %v2842 = vunpack.c.l.b16 %v2619
            %v2843 = vunpack.c.h.b16 %v2619
            %v2844 = vunpack.c.l.b16 %v2620
            %v2845 = vunpack.c.h.b16 %v2620
            %v2846 = vunpack.c.l.b16 %v2621
            %v2847 = vunpack.c.h.b16 %v2621
            %v2848 = vunpack.c.l.b16 %v2622
            %v2849 = vunpack.c.h.b16 %v2622
            %v2850 = vunpack.c.l.b16 %v2623
            %v2851 = vunpack.c.h.b16 %v2623
            %v2852 = vunpack.c.l.b16 %v2624
            %v2853 = vunpack.c.h.b16 %v2624
            %v2854 = vunpack.c.l.b16 %v2625
            %v2855 = vunpack.c.h.b16 %v2625
            %v2856 = vunpack.c.l.b16 %v2626
            %v2857 = vunpack.c.h.b16 %v2626
            %v2858 = vunpack.c.l.b16 %v2627
            %v2859 = vunpack.c.h.b16 %v2627
            %v2860 = vunpack.c.l.b16 %v2628
            %v2861 = vunpack.c.h.b16 %v2628
            %v2862 = vunpack.c.l.b16 %v2629
            %v2863 = vunpack.c.h.b16 %v2629
            %v2864 = vunpack.c.l.b16 %v2630
            %v2865 = vunpack.c.h.b16 %v2630
            %v2866 = vunpack.c.l.b16 %v2631
            %v2867 = vunpack.c.h.b16 %v2631
            %v2868 = vunpack.c.l.b16 %v2632
            %v2869 = vunpack.c.h.b16 %v2632
            %v2870 = vunpack.c.l.b16 %v2633
            %v2871 = vunpack.c.h.b16 %v2633
            %v2872 = vunpack.c.l.b16 %v2634
            %v2873 = vunpack.c.h.b16 %v2634
            %v2874 = vunpack.c.l.b16 %v2635
            %v2875 = vunpack.c.h.b16 %v2635
            %v2876 = vunpack.c.l.b16 %v2636
            %v2877 = vunpack.c.h.b16 %v2636
            %v2878 = vunpack.c.l.b16 %v2637
            %v2879 = vunpack.c.h.b16 %v2637
            %v2880 = vunpack.c.l.b16 %v2638
            %v2881 = vunpack.c.h.b16 %v2638
            %v2882 = vunpack.c.l.b16 %v2639
            %v2883 = vunpack.c.h.b16 %v2639
            %v2884 = vunpack.c.l.b16 %v2640
            %v2885 = vunpack.c.h.b16 %v2640
            %v2886 = vunpack.c.l.b16 %v2641
            %v2887 = vunpack.c.h.b16 %v2641
            %v2888 = vpack.c.b16 %v2828, %v2824
            %v2889 = vpack.c.b16 %v2829, %v2825
            %v2890 = vpack.c.b16 %v2830, %v2826
            %v2891 = vpack.c.b16 %v2831, %v2827
            %v2892 = vpack.c.b16 %v2836, %v2832
            %v2893 = vpack.c.b16 %v2837, %v2833
            %v2894 = vpack.c.b16 %v2838, %v2834
            %v2895 = vpack.c.b16 %v2839, %v2835
            %v2896 = vpack.c.b16 %v2844, %v2840
            %v2897 = vpack.c.b16 %v2845, %v2841
            %v2898 = vpack.c.b16 %v2846, %v2842
            %v2899 = vpack.c.b16 %v2847, %v2843
            %v2900 = vpack.c.b16 %v2852, %v2848
            %v2901 = vpack.c.b16 %v2853, %v2849
            %v2902 = vpack.c.b16 %v2854, %v2850
            %v2903 = vpack.c.b16 %v2855, %v2851
            %v2904 = vpack.c.b16 %v2860, %v2856
            %v2905 = vpack.c.b16 %v2861, %v2857
            %v2906 = vpack.c.b16 %v2862, %v2858
            %v2907 = vpack.c.b16 %v2863, %v2859
            %v2908 = vpack.c.b16 %v2868, %v2864
            %v2909 = vpack.c.b16 %v2869, %v2865
            %v2910 = vpack.c.b16 %v2870, %v2866
            %v2911 = vpack.c.b16 %v2871, %v2867
            %v2912 = vpack.c.b16 %v2876, %v2872
            %v2913 = vpack.c.b16 %v2877, %v2873
            %v2914 = vpack.c.b16 %v2878, %v2874
            %v2915 = vpack.c.b16 %v2879, %v2875
            %v2916 = vpack.c.b16 %v2884, %v2880
            %v2917 = vpack.c.b16 %v2885, %v2881
            %v2918 = vpack.c.b16 %v2886, %v2882
            %v2919 = vpack.c.b16 %v2887, %v2883
            %v3080 = vunpack.c.l.b16 %v2642
            %v3081 = vunpack.c.h.b16 %v2642
            %v3082 = vunpack.c.l.b16 %v2643
            %v3083 = vunpack.c.h.b16 %v2643
            %v3084 = vunpack.c.l.b16 %v2644
            %v3085 = vunpack.c.h.b16 %v2644
            %v3086 = vunpack.c.l.b16 %v2645
            %v3087 = vunpack.c.h.b16 %v2645
            %v3088 = vunpack.c.l.b16 %v2646
            %v3089 = vunpack.c.h.b16 %v2646
            %v3090 = vunpack.c.l.b16 %v2647
            %v3091 = vunpack.c.h.b16 %v2647
            %v3092 = vunpack.c.l.b16 %v2648
            %v3093 = vunpack.c.h.b16 %v2648
            %v3094 = vunpack.c.l.b16 %v2649
            %v3095 = vunpack.c.h.b16 %v2649
            %v3096 = vunpack.c.l.b16 %v2650
            %v3097 = vunpack.c.h.b16 %v2650
            %v3098 = vunpack.c.l.b16 %v2651
            %v3099 = vunpack.c.h.b16 %v2651
            %v3100 = vunpack.c.l.b16 %v2652
            %v3101 = vunpack.c.h.b16 %v2652
            %v3102 = vunpack.c.l.b16 %v2653
            %v3103 = vunpack.c.h.b16 %v2653
            %v3104 = vunpack.c.l.b16 %v2654
            %v3105 = vunpack.c.h.b16 %v2654
            %v3106 = vunpack.c.l.b16 %v2655
            %v3107 = vunpack.c.h.b16 %v2655
            %v3108 = vunpack.c.l.b16 %v2656
            %v3109 = vunpack.c.h.b16 %v2656
            %v3110 = vunpack.c.l.b16 %v2657
            %v3111 = vunpack.c.h.b16 %v2657
            %v3112 = vunpack.c.l.b16 %v2658
            %v3113 = vunpack.c.h.b16 %v2658
            %v3114 = vunpack.c.l.b16 %v2659
            %v3115 = vunpack.c.h.b16 %v2659
            %v3116 = vunpack.c.l.b16 %v2660
            %v3117 = vunpack.c.h.b16 %v2660
            %v3118 = vunpack.c.l.b16 %v2661
            %v3119 = vunpack.c.h.b16 %v2661
            %v3120 = vunpack.c.l.b16 %v2662
            %v3121 = vunpack.c.h.b16 %v2662
            %v3122 = vunpack.c.l.b16 %v2663
            %v3123 = vunpack.c.h.b16 %v2663
            %v3124 = vunpack.c.l.b16 %v2664
            %v3125 = vunpack.c.h.b16 %v2664
            %v3126 = vunpack.c.l.b16 %v2665
            %v3127 = vunpack.c.h.b16 %v2665
            %v3128 = vunpack.c.l.b16 %v2666
            %v3129 = vunpack.c.h.b16 %v2666
            %v3130 = vunpack.c.l.b16 %v2667
            %v3131 = vunpack.c.h.b16 %v2667
            %v3132 = vunpack.c.l.b16 %v2668
            %v3133 = vunpack.c.h.b16 %v2668
            %v3134 = vunpack.c.l.b16 %v2669
            %v3135 = vunpack.c.h.b16 %v2669
            %v3136 = vunpack.c.l.b16 %v2670
            %v3137 = vunpack.c.h.b16 %v2670
            %v3138 = vunpack.c.l.b16 %v2671
            %v3139 = vunpack.c.h.b16 %v2671
            %v3140 = vunpack.c.l.b16 %v2672
            %v3141 = vunpack.c.h.b16 %v2672
            %v3142 = vunpack.c.l.b16 %v2673
            %v3143 = vunpack.c.h.b16 %v2673
            %v3144 = vunpack.c.l.b16 %v2674
            %v3145 = vunpack.c.h.b16 %v2674
            %v3146 = vunpack.c.l.b16 %v2675
            %v3147 = vunpack.c.h.b16 %v2675
            %v3148 = vunpack.c.l.b16 %v2676
            %v3149 = vunpack.c.h.b16 %v2676
            %v3150 = vunpack.c.l.b16 %v2677
            %v3151 = vunpack.c.h.b16 %v2677
            %v3152 = vunpack.c.l.b16 %v2678
            %v3153 = vunpack.c.h.b16 %v2678
            %v3154 = vunpack.c.l.b16 %v2679
            %v3155 = vunpack.c.h.b16 %v2679
            %v3156 = vunpack.c.l.b16 %v2680
            %v3157 = vunpack.c.h.b16 %v2680
            %v3158 = vunpack.c.l.b16 %v2681
            %v3159 = vunpack.c.h.b16 %v2681
            %v3160 = vunpack.c.l.b16 %v2682
            %v3161 = vunpack.c.h.b16 %v2682
            %v3162 = vunpack.c.l.b16 %v2683
            %v3163 = vunpack.c.h.b16 %v2683
            %v3164 = vunpack.c.l.b16 %v2684
            %v3165 = vunpack.c.h.b16 %v2684
            %v3166 = vunpack.c.l.b16 %v2685
            %v3167 = vunpack.c.h.b16 %v2685
            %v3168 = vunpack.c.l.b16 %v2686
            %v3169 = vunpack.c.h.b16 %v2686
            %v3170 = vunpack.c.l.b16 %v2687
            %v3171 = vunpack.c.h.b16 %v2687
            %v3172 = vunpack.c.l.b16 %v2688
            %v3173 = vunpack.c.h.b16 %v2688
            %v3174 = vunpack.c.l.b16 %v2689
            %v3175 = vunpack.c.h.b16 %v2689
            %v3176 = vunpack.c.l.b16 %v2690
            %v3177 = vunpack.c.h.b16 %v2690
            %v3178 = vunpack.c.l.b16 %v2691
            %v3179 = vunpack.c.h.b16 %v2691
            %v3180 = vunpack.c.l.b16 %v2692
            %v3181 = vunpack.c.h.b16 %v2692
            %v3182 = vunpack.c.l.b16 %v2693
            %v3183 = vunpack.c.h.b16 %v2693
            %v3184 = vunpack.c.l.b16 %v2694
            %v3185 = vunpack.c.h.b16 %v2694
            %v3186 = vunpack.c.l.b16 %v2695
            %v3187 = vunpack.c.h.b16 %v2695
            %v3188 = vunpack.c.l.b16 %v2696
            %v3189 = vunpack.c.h.b16 %v2696
            %v3190 = vunpack.c.l.b16 %v2697
            %v3191 = vunpack.c.h.b16 %v2697
            %v3192 = vunpack.c.l.b16 %v2698
            %v3193 = vunpack.c.h.b16 %v2698
            %v3194 = vunpack.c.l.b16 %v2699
            %v3195 = vunpack.c.h.b16 %v2699
            %v3196 = vunpack.c.l.b16 %v2700
            %v3197 = vunpack.c.h.b16 %v2700
            %v3198 = vunpack.c.l.b16 %v2701
            %v3199 = vunpack.c.h.b16 %v2701
            %v3200 = vunpack.c.l.b16 %v2702
            %v3201 = vunpack.c.h.b16 %v2702
            %v3202 = vunpack.c.l.b16 %v2703
            %v3203 = vunpack.c.h.b16 %v2703
            %v3204 = vunpack.c.l.b16 %v2704
            %v3205 = vunpack.c.h.b16 %v2704
            %v3206 = vunpack.c.l.b16 %v2705
            %v3207 = vunpack.c.h.b16 %v2705
            %v3208 = vunpack.c.l.b16 %v2706
            %v3209 = vunpack.c.h.b16 %v2706
            %v3210 = vunpack.c.l.b16 %v2707
            %v3211 = vunpack.c.h.b16 %v2707
            %v3212 = vunpack.c.l.b16 %v2708
            %v3213 = vunpack.c.h.b16 %v2708
            %v3214 = vunpack.c.l.b16 %v2709
            %v3215 = vunpack.c.h.b16 %v2709
            %v3216 = vunpack.c.l.b16 %v2710
            %v3217 = vunpack.c.h.b16 %v2710
            %v3218 = vunpack.c.l.b16 %v2711
            %v3219 = vunpack.c.h.b16 %v2711
            %v3220 = vunpack.c.l.b16 %v2712
            %v3221 = vunpack.c.h.b16 %v2712
            %v3222 = vunpack.c.l.b16 %v2713
            %v3223 = vunpack.c.h.b16 %v2713
            %v3224 = vunpack.c.l.b16 %v2714
            %v3225 = vunpack.c.h.b16 %v2714
            %v3226 = vunpack.c.l.b16 %v2715
            %v3227 = vunpack.c.h.b16 %v2715
            %v3228 = vunpack.c.l.b16 %v2716
            %v3229 = vunpack.c.h.b16 %v2716
            %v3230 = vunpack.c.l.b16 %v2717
            %v3231 = vunpack.c.h.b16 %v2717
            %v3232 = vunpack.c.l.b16 %v2718
            %v3233 = vunpack.c.h.b16 %v2718
            %v3234 = vunpack.c.l.b16 %v2719
            %v3235 = vunpack.c.h.b16 %v2719
            %v3236 = vunpack.c.l.b16 %v2720
            %v3237 = vunpack.c.h.b16 %v2720
            %v3238 = vunpack.c.l.b16 %v2721
            %v3239 = vunpack.c.h.b16 %v2721
            %v3240 = vunpack.c.l.b16 %v2722
            %v3241 = vunpack.c.h.b16 %v2722
            %v3242 = vunpack.c.l.b16 %v2723
            %v3243 = vunpack.c.h.b16 %v2723
            %v3244 = vunpack.c.l.b16 %v2724
            %v3245 = vunpack.c.h.b16 %v2724
            %v3246 = vunpack.c.l.b16 %v2725
            %v3247 = vunpack.c.h.b16 %v2725
            %v3248 = vunpack.c.l.b16 %v2726
            %v3249 = vunpack.c.h.b16 %v2726
            %v3250 = vunpack.c.l.b16 %v2727
            %v3251 = vunpack.c.h.b16 %v2727
            %v3252 = vunpack.c.l.b16 %v2728
            %v3253 = vunpack.c.h.b16 %v2728
            %v3254 = vunpack.c.l.b16 %v2729
            %v3255 = vunpack.c.h.b16 %v2729
            %v3256 = vunpack.c.l.b16 %v2730
            %v3257 = vunpack.c.h.b16 %v2730
            %v3258 = vunpack.c.l.b16 %v2731
            %v3259 = vunpack.c.h.b16 %v2731
            %v3260 = vunpack.c.l.b16 %v2732
            %v3261 = vunpack.c.h.b16 %v2732
            %v3262 = vunpack.c.l.b16 %v2733
            %v3263 = vunpack.c.h.b16 %v2733
            %v3264 = vunpack.c.l.b16 %v2734
            %v3265 = vunpack.c.h.b16 %v2734
            %v3266 = vunpack.c.l.b16 %v2735
            %v3267 = vunpack.c.h.b16 %v2735
            %v3268 = vunpack.c.l.b16 %v2736
            %v3269 = vunpack.c.h.b16 %v2736
            %v3270 = vunpack.c.l.b16 %v2737
            %v3271 = vunpack.c.h.b16 %v2737
            %v3272 = vunpack.c.l.b16 %v2738
            %v3273 = vunpack.c.h.b16 %v2738
            %v3274 = vunpack.c.l.b16 %v2739
            %v3275 = vunpack.c.h.b16 %v2739
            %v3276 = vunpack.c.l.b16 %v2740
            %v3277 = vunpack.c.h.b16 %v2740
            %v3278 = vunpack.c.l.b16 %v2741
            %v3279 = vunpack.c.h.b16 %v2741
            %v3280 = vunpack.c.l.b16 %v2742
            %v3281 = vunpack.c.h.b16 %v2742
            %v3282 = vunpack.c.l.b16 %v2743
            %v3283 = vunpack.c.h.b16 %v2743
            %v3284 = vunpack.c.l.b16 %v2744
            %v3285 = vunpack.c.h.b16 %v2744
            %v3286 = vunpack.c.l.b16 %v2745
            %v3287 = vunpack.c.h.b16 %v2745
            %v3288 = vunpack.c.l.b16 %v2746
            %v3289 = vunpack.c.h.b16 %v2746
            %v3290 = vunpack.c.l.b16 %v2747
            %v3291 = vunpack.c.h.b16 %v2747
            %v3292 = vunpack.c.l.b16 %v2748
            %v3293 = vunpack.c.h.b16 %v2748
            %v3294 = vunpack.c.l.b16 %v2749
            %v3295 = vunpack.c.h.b16 %v2749
            %v3296 = vunpack.c.l.b16 %v2750
            %v3297 = vunpack.c.h.b16 %v2750
            %v3298 = vunpack.c.l.b16 %v2751
            %v3299 = vunpack.c.h.b16 %v2751
            %v3300 = vunpack.c.l.b16 %v2752
            %v3301 = vunpack.c.h.b16 %v2752
            %v3302 = vunpack.c.l.b16 %v2753
            %v3303 = vunpack.c.h.b16 %v2753
            %v3304 = vunpack.c.l.b16 %v2754
            %v3305 = vunpack.c.h.b16 %v2754
            %v3306 = vunpack.c.l.b16 %v2755
            %v3307 = vunpack.c.h.b16 %v2755
            %v3308 = vunpack.c.l.b16 %v2756
            %v3309 = vunpack.c.h.b16 %v2756
            %v3310 = vunpack.c.l.b16 %v2757
            %v3311 = vunpack.c.h.b16 %v2757
            %v3312 = vunpack.c.l.b16 %v2758
            %v3313 = vunpack.c.h.b16 %v2758
            %v3314 = vunpack.c.l.b16 %v2759
            %v3315 = vunpack.c.h.b16 %v2759
            %v3316 = vunpack.c.l.b16 %v2760
            %v3317 = vunpack.c.h.b16 %v2760
            %v3318 = vunpack.c.l.b16 %v2761
            %v3319 = vunpack.c.h.b16 %v2761
            %v3320 = vunpack.c.l.b16 %v2762
            %v3321 = vunpack.c.h.b16 %v2762
            %v3322 = vunpack.c.l.b16 %v2763
            %v3323 = vunpack.c.h.b16 %v2763
            %v3324 = vunpack.c.l.b16 %v2764
            %v3325 = vunpack.c.h.b16 %v2764
            %v3326 = vunpack.c.l.b16 %v2765
            %v3327 = vunpack.c.h.b16 %v2765
            %v3328 = vunpack.c.l.b16 %v2766
            %v3329 = vunpack.c.h.b16 %v2766
            %v3330 = vunpack.c.l.b16 %v2767
            %v3331 = vunpack.c.h.b16 %v2767
            %v3332 = vunpack.c.l.b16 %v2768
            %v3333 = vunpack.c.h.b16 %v2768
            %v3334 = vunpack.c.l.b16 %v2769
            %v3335 = vunpack.c.h.b16 %v2769
            %v3336 = vpack.c.b16 %v3084, %v3080
            %v3337 = vpack.c.b16 %v3085, %v3081
            %v3338 = vpack.c.b16 %v3086, %v3082
            %v3339 = vpack.c.b16 %v3087, %v3083
            %v3340 = vpack.c.b16 %v3092, %v3088
            %v3341 = vpack.c.b16 %v3093, %v3089
            %v3342 = vpack.c.b16 %v3094, %v3090
            %v3343 = vpack.c.b16 %v3095, %v3091
            %v3344 = vpack.c.b16 %v3100, %v3096
            %v3345 = vpack.c.b16 %v3101, %v3097
            %v3346 = vpack.c.b16 %v3102, %v3098
            %v3347 = vpack.c.b16 %v3103, %v3099
            %v3348 = vpack.c.b16 %v3108, %v3104
            %v3349 = vpack.c.b16 %v3109, %v3105
            %v3350 = vpack.c.b16 %v3110, %v3106
            %v3351 = vpack.c.b16 %v3111, %v3107
            %v3352 = vpack.c.b16 %v3116, %v3112
            %v3353 = vpack.c.b16 %v3117, %v3113
            %v3354 = vpack.c.b16 %v3118, %v3114
            %v3355 = vpack.c.b16 %v3119, %v3115
            %v3356 = vpack.c.b16 %v3124, %v3120
            %v3357 = vpack.c.b16 %v3125, %v3121
            %v3358 = vpack.c.b16 %v3126, %v3122
            %v3359 = vpack.c.b16 %v3127, %v3123
            %v3360 = vpack.c.b16 %v3132, %v3128
            %v3361 = vpack.c.b16 %v3133, %v3129
            %v3362 = vpack.c.b16 %v3134, %v3130
            %v3363 = vpack.c.b16 %v3135, %v3131
            %v3364 = vpack.c.b16 %v3140, %v3136
            %v3365 = vpack.c.b16 %v3141, %v3137
            %v3366 = vpack.c.b16 %v3142, %v3138
            %v3367 = vpack.c.b16 %v3143, %v3139
            %v3368 = vpack.c.b16 %v3148, %v3144
            %v3369 = vpack.c.b16 %v3149, %v3145
            %v3370 = vpack.c.b16 %v3150, %v3146
            %v3371 = vpack.c.b16 %v3151, %v3147
            %v3372 = vpack.c.b16 %v3156, %v3152
            %v3373 = vpack.c.b16 %v3157, %v3153
            %v3374 = vpack.c.b16 %v3158, %v3154
            %v3375 = vpack.c.b16 %v3159, %v3155
            %v3376 = vpack.c.b16 %v3164, %v3160
            %v3377 = vpack.c.b16 %v3165, %v3161
            %v3378 = vpack.c.b16 %v3166, %v3162
            %v3379 = vpack.c.b16 %v3167, %v3163
            %v3380 = vpack.c.b16 %v3172, %v3168
            %v3381 = vpack.c.b16 %v3173, %v3169
            %v3382 = vpack.c.b16 %v3174, %v3170
            %v3383 = vpack.c.b16 %v3175, %v3171
            %v3384 = vpack.c.b16 %v3180, %v3176
            %v3385 = vpack.c.b16 %v3181, %v3177
            %v3386 = vpack.c.b16 %v3182, %v3178
            %v3387 = vpack.c.b16 %v3183, %v3179
            %v3388 = vpack.c.b16 %v3188, %v3184
            %v3389 = vpack.c.b16 %v3189, %v3185
            %v3390 = vpack.c.b16 %v3190, %v3186
            %v3391 = vpack.c.b16 %v3191, %v3187
            %v3392 = vpack.c.b16 %v3196, %v3192
            %v3393 = vpack.c.b16 %v3197, %v3193
            %v3394 = vpack.c.b16 %v3198, %v3194
            %v3395 = vpack.c.b16 %v3199, %v3195
            %v3396 = vpack.c.b16 %v3204, %v3200
            %v3397 = vpack.c.b16 %v3205, %v3201
            %v3398 = vpack.c.b16 %v3206, %v3202
            %v3399 = vpack.c.b16 %v3207, %v3203
            %v3400 = vpack.c.b16 %v3212, %v3208
            %v3401 = vpack.c.b16 %v3213, %v3209
            %v3402 = vpack.c.b16 %v3214, %v3210
            %v3403 = vpack.c.b16 %v3215, %v3211
            %v3404 = vpack.c.b16 %v3220, %v3216
            %v3405 = vpack.c.b16 %v3221, %v3217
            %v3406 = vpack.c.b16 %v3222, %v3218
            %v3407 = vpack.c.b16 %v3223, %v3219
            %v3408 = vpack.c.b16 %v3228, %v3224
            %v3409 = vpack.c.b16 %v3229, %v3225
            %v3410 = vpack.c.b16 %v3230, %v3226
            %v3411 = vpack.c.b16 %v3231, %v3227
            %v3412 = vpack.c.b16 %v3236, %v3232
            %v3413 = vpack.c.b16 %v3237, %v3233
            %v3414 = vpack.c.b16 %v3238, %v3234
            %v3415 = vpack.c.b16 %v3239, %v3235
            %v3416 = vpack.c.b16 %v3244, %v3240
            %v3417 = vpack.c.b16 %v3245, %v3241
            %v3418 = vpack.c.b16 %v3246, %v3242
            %v3419 = vpack.c.b16 %v3247, %v3243
            %v3420 = vpack.c.b16 %v3252, %v3248
            %v3421 = vpack.c.b16 %v3253, %v3249
            %v3422 = vpack.c.b16 %v3254, %v3250
            %v3423 = vpack.c.b16 %v3255, %v3251
            %v3424 = vpack.c.b16 %v3260, %v3256
            %v3425 = vpack.c.b16 %v3261, %v3257
            %v3426 = vpack.c.b16 %v3262, %v3258
            %v3427 = vpack.c.b16 %v3263, %v3259
            %v3428 = vpack.c.b16 %v3268, %v3264
            %v3429 = vpack.c.b16 %v3269, %v3265
            %v3430 = vpack.c.b16 %v3270, %v3266
            %v3431 = vpack.c.b16 %v3271, %v3267
            %v3432 = vpack.c.b16 %v3276, %v3272
            %v3433 = vpack.c.b16 %v3277, %v3273
            %v3434 = vpack.c.b16 %v3278, %v3274
            %v3435 = vpack.c.b16 %v3279, %v3275
            %v3436 = vpack.c.b16 %v3284, %v3280
            %v3437 = vpack.c.b16 %v3285, %v3281
            %v3438 = vpack.c.b16 %v3286, %v3282
            %v3439 = vpack.c.b16 %v3287, %v3283
            %v3440 = vpack.c.b16 %v3292, %v3288
            %v3441 = vpack.c.b16 %v3293, %v3289
            %v3442 = vpack.c.b16 %v3294, %v3290
            %v3443 = vpack.c.b16 %v3295, %v3291
            %v3444 = vpack.c.b16 %v3300, %v3296
            %v3445 = vpack.c.b16 %v3301, %v3297
            %v3446 = vpack.c.b16 %v3302, %v3298
            %v3447 = vpack.c.b16 %v3303, %v3299
            %v3448 = vpack.c.b16 %v3308, %v3304
            %v3449 = vpack.c.b16 %v3309, %v3305
            %v3450 = vpack.c.b16 %v3310, %v3306
            %v3451 = vpack.c.b16 %v3311, %v3307
            %v3452 = vpack.c.b16 %v3316, %v3312
            %v3453 = vpack.c.b16 %v3317, %v3313
            %v3454 = vpack.c.b16 %v3318, %v3314
            %v3455 = vpack.c.b16 %v3319, %v3315
            %v3456 = vpack.c.b16 %v3324, %v3320
            %v3457 = vpack.c.b16 %v3325, %v3321
            %v3458 = vpack.c.b16 %v3326, %v3322
            %v3459 = vpack.c.b16 %v3327, %v3323
            %v3460 = vpack.c.b16 %v3332, %v3328
            %v3461 = vpack.c.b16 %v3333, %v3329
            %v3462 = vpack.c.b16 %v3334, %v3330
            %v3463 = vpack.c.b16 %v3335, %v3331
            %3592 = vmatprep.subr.bf16.mxu0 %v3337
            %3593 = vmatpush1.bf16.msra.mxu0 %v3336
            %3594 = vmatprep.subr.bf16.mxu0 %v3341
            %3595 = vmatpush1.bf16.msra.mxu0 %v3340
            %3596 = vmatprep.subr.bf16.mxu0 %v3345
            %3597 = vmatpush1.bf16.msra.mxu0 %v3344
            %3598 = vmatprep.subr.bf16.mxu0 %v3349
            %3599 = vmatpush1.bf16.msra.mxu0 %v3348
            %3600 = vmatprep.subr.bf16.mxu0 %v3353
            %3601 = vmatpush1.bf16.msra.mxu0 %v3352
            %3602 = vmatprep.subr.bf16.mxu0 %v3357
            %3603 = vmatpush1.bf16.msra.mxu0 %v3356
            %3604 = vmatprep.subr.bf16.mxu0 %v3361
            %3605 = vmatpush1.bf16.msra.mxu0 %v3360
            %3606 = vmatprep.subr.bf16.mxu0 %v3365
            %3607 = vmatpush1.bf16.msra.mxu0 %v3364
            %3608 = vmatprep.subr.bf16.mxu0 %v3369
            %3609 = vmatpush1.bf16.msra.mxu0 %v3368
            %3610 = vmatprep.subr.bf16.mxu0 %v3373
            %3611 = vmatpush1.bf16.msra.mxu0 %v3372
            %3612 = vmatprep.subr.bf16.mxu0 %v3377
            %3613 = vmatpush1.bf16.msra.mxu0 %v3376
            %3614 = vmatprep.subr.bf16.mxu0 %v3381
            %3615 = vmatpush1.bf16.msra.mxu0 %v3380
            %3616 = vmatprep.subr.bf16.mxu0 %v3385
            %3617 = vmatpush1.bf16.msra.mxu0 %v3384
            %3618 = vmatprep.subr.bf16.mxu0 %v3389
            %3619 = vmatpush1.bf16.msra.mxu0 %v3388
            %3620 = vmatprep.subr.bf16.mxu0 %v3393
            %3621 = vmatpush1.bf16.msra.mxu0 %v3392
            %3622 = vmatprep.subr.bf16.mxu0 %v3397
            %3623 = vmatpush1.bf16.msra.mxu0 %v3396
            %3624 = vmatprep.mubr.bf16.mxu0 %v2889
            %3625 = vmatmul.mubr.bf16.gmra.mrb[0].mxu0 %v2888
            %v3626 = vpop.f32.mrb[0].mxu0
            %v3627 = vadd.f32 %v2775, %v3626
            %v3628 = vpop.f32.mrb[0].mxu0
            %v3629 = vadd.f32 %v2779, %v3628
            %v3630 = vpop.f32.mrb[0].mxu0
            %v3631 = vadd.f32 %v2775, %v3630
            %v3632 = vpop.f32.mrb[0].mxu0
            %v3633 = vadd.f32 %v2779, %v3632
            %3634 = vmatprep.mubr.bf16.mxu0 %v2893
            %3635 = vmatmul.mubr.bf16.gmra.mrb[0].mxu0 %v2892
            %v3636 = vpop.f32.mrb[0].mxu0
            %v3637 = vadd.f32 %v2775, %v3636
            %v3638 = vpop.f32.mrb[0].mxu0
            %v3639 = vadd.f32 %v2779, %v3638
            %v3640 = vpop.f32.mrb[0].mxu0
            %v3641 = vadd.f32 %v2775, %v3640
            %v3642 = vpop.f32.mrb[0].mxu0
            %v3643 = vadd.f32 %v2779, %v3642
            %3644 = vmatprep.mubr.bf16.mxu0 %v2897
            %3645 = vmatmul.mubr.bf16.gmra.mrb[0].mxu0 %v2896
            %v3646 = vpop.f32.mrb[0].mxu0
            %v3647 = vadd.f32 %v2775, %v3646
            %v3648 = vpop.f32.mrb[0].mxu0
            %v3649 = vadd.f32 %v2779, %v3648
            %v3650 = vpop.f32.mrb[0].mxu0
            %v3651 = vadd.f32 %v2775, %v3650
            %v3652 = vpop.f32.mrb[0].mxu0
            %v3653 = vadd.f32 %v2779, %v3652
            %3654 = vmatprep.mubr.bf16.mxu0 %v2901
            %3655 = vmatmul.mubr.bf16.gmra.mrb[0].mxu0 %v2900
            %v3656 = vpop.f32.mrb[0].mxu0
            %v3657 = vadd.f32 %v2775, %v3656
            %v3658 = vpop.f32.mrb[0].mxu0
            %v3659 = vadd.f32 %v2779, %v3658
            %v3660 = vpop.f32.mrb[0].mxu0
            %v3661 = vadd.f32 %v2775, %v3660
            %v3662 = vpop.f32.mrb[0].mxu0
            %v3663 = vadd.f32 %v2779, %v3662
            %3664 = vmatprep.mubr.bf16.mxu0 %v2905
            %3665 = vmatmul.mubr.bf16.gmra.mrb[0].mxu0 %v2904
            %v3666 = vpop.f32.mrb[0].mxu0
            %v3667 = vadd.f32 %v2775, %v3666
            %v3668 = vpop.f32.mrb[0].mxu0
            %v3669 = vadd.f32 %v2779, %v3668
            %v3670 = vpop.f32.mrb[0].mxu0
            %v3671 = vadd.f32 %v2775, %v3670
            %v3672 = vpop.f32.mrb[0].mxu0
            %v3673 = vadd.f32 %v2779, %v3672
            %3674 = vmatprep.mubr.bf16.mxu0 %v2909
            %3675 = vmatmul.mubr.bf16.gmra.mrb[0].mxu0 %v2908
            %v3676 = vpop.f32.mrb[0].mxu0
            %v3677 = vadd.f32 %v2775, %v3676
            %v3678 = vpop.f32.mrb[0].mxu0
            %v3679 = vadd.f32 %v2779, %v3678
            %v3680 = vpop.f32.mrb[0].mxu0
            %v3681 = vadd.f32 %v2775, %v3680
            %v3682 = vpop.f32.mrb[0].mxu0
            %v3683 = vadd.f32 %v2779, %v3682
            %3684 = vmatprep.mubr.bf16.mxu0 %v2913
            %3685 = vmatmul.mubr.bf16.gmra.mrb[0].mxu0 %v2912
            %v3686 = vpop.f32.mrb[0].mxu0
            %v3687 = vadd.f32 %v2775, %v3686
            %v3688 = vpop.f32.mrb[0].mxu0
            %v3689 = vadd.f32 %v2779, %v3688
            %v3690 = vpop.f32.mrb[0].mxu0
            %v3691 = vadd.f32 %v2775, %v3690
            %v3692 = vpop.f32.mrb[0].mxu0
            %v3693 = vadd.f32 %v2779, %v3692
            %3694 = vmatprep.mubr.bf16.mxu0 %v2917
            %3695 = vmatmul.mubr.bf16.gmra.mrb[0].mxu0 %v2916
            %v3696 = vpop.f32.mrb[0].mxu0
            %v3697 = vadd.f32 %v2775, %v3696
            %v3698 = vpop.f32.mrb[0].mxu0
            %v3699 = vadd.f32 %v2779, %v3698
            %v3700 = vpop.f32.mrb[0].mxu0
            %v3701 = vadd.f32 %v2775, %v3700
            %v3702 = vpop.f32.mrb[0].mxu0
            %v3703 = vadd.f32 %v2779, %v3702
            %3704 = vdwg.mxu0
            %3705 = vmatprep.subr.bf16.mxu0 %v3401
            %3706 = vmatpush1.bf16.msra.mxu0 %v3400
            %3707 = vmatprep.subr.bf16.mxu0 %v3405
            %3708 = vmatpush1.bf16.msra.mxu0 %v3404
            %3709 = vmatprep.subr.bf16.mxu0 %v3409
            %3710 = vmatpush1.bf16.msra.mxu0 %v3408
            %3711 = vmatprep.subr.bf16.mxu0 %v3413
            %3712 = vmatpush1.bf16.msra.mxu0 %v3412
            %3713 = vmatprep.subr.bf16.mxu0 %v3417
            %3714 = vmatpush1.bf16.msra.mxu0 %v3416
            %3715 = vmatprep.subr.bf16.mxu0 %v3421
            %3716 = vmatpush1.bf16.msra.mxu0 %v3420
            %3717 = vmatprep.subr.bf16.mxu0 %v3425
            %3718 = vmatpush1.bf16.msra.mxu0 %v3424
            %3719 = vmatprep.subr.bf16.mxu0 %v3429
            %3720 = vmatpush1.bf16.msra.mxu0 %v3428
            %3721 = vmatprep.subr.bf16.mxu0 %v3433
            %3722 = vmatpush1.bf16.msra.mxu0 %v3432
            %3723 = vmatprep.subr.bf16.mxu0 %v3437
            %3724 = vmatpush1.bf16.msra.mxu0 %v3436
            %3725 = vmatprep.subr.bf16.mxu0 %v3441
            %3726 = vmatpush1.bf16.msra.mxu0 %v3440
            %3727 = vmatprep.subr.bf16.mxu0 %v3445
            %3728 = vmatpush1.bf16.msra.mxu0 %v3444
            %3729 = vmatprep.subr.bf16.mxu0 %v3449
            %3730 = vmatpush1.bf16.msra.mxu0 %v3448
            %3731 = vmatprep.subr.bf16.mxu0 %v3453
            %3732 = vmatpush1.bf16.msra.mxu0 %v3452
            %3733 = vmatprep.subr.bf16.mxu0 %v3457
            %3734 = vmatpush1.bf16.msra.mxu0 %v3456
            %3735 = vmatprep.subr.bf16.mxu0 %v3461
            %3736 = vmatpush1.bf16.msra.mxu0 %v3460
            %3737 = vmatprep.mubr.bf16.mxu0 %v2891
            %3738 = vmatmul.mubr.bf16.gmra.mrb[0].mxu0 %v2890
            %v3739 = vpop.f32.mrb[0].mxu0
            %v3740 = vadd.f32 %v3627, %v3739
            %v3741 = vpop.f32.mrb[0].mxu0
            %v3742 = vadd.f32 %v3629, %v3741
            %v3743 = vpop.f32.mrb[0].mxu0
            %v3744 = vadd.f32 %v3631, %v3743
            %v3745 = vpop.f32.mrb[0].mxu0
            %v3746 = vadd.f32 %v3633, %v3745
            %3747 = vmatprep.mubr.bf16.mxu0 %v2895
            %3748 = vmatmul.mubr.bf16.gmra.mrb[0].mxu0 %v2894
            %v3749 = vpop.f32.mrb[0].mxu0
            %v3750 = vadd.f32 %v3637, %v3749
            %v3751 = vpop.f32.mrb[0].mxu0
            %v3752 = vadd.f32 %v3639, %v3751
            %v3753 = vpop.f32.mrb[0].mxu0
            %v3754 = vadd.f32 %v3641, %v3753
            %v3755 = vpop.f32.mrb[0].mxu0
            %v3756 = vadd.f32 %v3643, %v3755
            %3757 = vmatprep.mubr.bf16.mxu0 %v2899
            %3758 = vmatmul.mubr.bf16.gmra.mrb[0].mxu0 %v2898
            %v3759 = vpop.f32.mrb[0].mxu0
            %v3760 = vadd.f32 %v3647, %v3759
            %v3761 = vpop.f32.mrb[0].mxu0
            %v3762 = vadd.f32 %v3649, %v3761
            %v3763 = vpop.f32.mrb[0].mxu0
            %v3764 = vadd.f32 %v3651, %v3763
            %v3765 = vpop.f32.mrb[0].mxu0
            %v3766 = vadd.f32 %v3653, %v3765
            %3767 = vmatprep.mubr.bf16.mxu0 %v2903
            %3768 = vmatmul.mubr.bf16.gmra.mrb[0].mxu0 %v2902
            %v3769 = vpop.f32.mrb[0].mxu0
            %v3770 = vadd.f32 %v3657, %v3769
            %v3771 = vpop.f32.mrb[0].mxu0
            %v3772 = vadd.f32 %v3659, %v3771
            %v3773 = vpop.f32.mrb[0].mxu0
            %v3774 = vadd.f32 %v3661, %v3773
            %v3775 = vpop.f32.mrb[0].mxu0
            %v3776 = vadd.f32 %v3663, %v3775
            %3777 = vmatprep.mubr.bf16.mxu0 %v2907
            %3778 = vmatmul.mubr.bf16.gmra.mrb[0].mxu0 %v2906
            %v3779 = vpop.f32.mrb[0].mxu0
            %v3780 = vadd.f32 %v3667, %v3779
            %v3781 = vpop.f32.mrb[0].mxu0
            %v3782 = vadd.f32 %v3669, %v3781
            %v3783 = vpop.f32.mrb[0].mxu0
            %v3784 = vadd.f32 %v3671, %v3783
            %v3785 = vpop.f32.mrb[0].mxu0
            %v3786 = vadd.f32 %v3673, %v3785
            %3787 = vmatprep.mubr.bf16.mxu0 %v2911
            %3788 = vmatmul.mubr.bf16.gmra.mrb[0].mxu0 %v2910
            %v3789 = vpop.f32.mrb[0].mxu0
            %v3790 = vadd.f32 %v3677, %v3789
            %v3791 = vpop.f32.mrb[0].mxu0
            %v3792 = vadd.f32 %v3679, %v3791
            %v3793 = vpop.f32.mrb[0].mxu0
            %v3794 = vadd.f32 %v3681, %v3793
            %v3795 = vpop.f32.mrb[0].mxu0
            %v3796 = vadd.f32 %v3683, %v3795
            %3797 = vmatprep.mubr.bf16.mxu0 %v2915
            %3798 = vmatmul.mubr.bf16.gmra.mrb[0].mxu0 %v2914
            %v3799 = vpop.f32.mrb[0].mxu0
            %v3800 = vadd.f32 %v3687, %v3799
            %v3801 = vpop.f32.mrb[0].mxu0
            %v3802 = vadd.f32 %v3689, %v3801
            %v3803 = vpop.f32.mrb[0].mxu0
            %v3804 = vadd.f32 %v3691, %v3803
            %v3805 = vpop.f32.mrb[0].mxu0
            %v3806 = vadd.f32 %v3693, %v3805
            %3807 = vmatprep.mubr.bf16.mxu0 %v2919
            %3808 = vmatmul.mubr.bf16.gmra.mrb[0].mxu0 %v2918
            %v3809 = vpop.f32.mrb[0].mxu0
            %v3810 = vadd.f32 %v3697, %v3809
            %v3811 = vpop.f32.mrb[0].mxu0
            %v3812 = vadd.f32 %v3699, %v3811
            %v3813 = vpop.f32.mrb[0].mxu0
            %v3814 = vadd.f32 %v3701, %v3813
            %v3815 = vpop.f32.mrb[0].mxu0
            %v3816 = vadd.f32 %v3703, %v3815
            %3817 = vdwg.mxu0
            %3818 = vmatprep.subr.bf16.mxu0 %v3339
            %3819 = vmatpush1.bf16.msra.mxu0 %v3338
            %3820 = vmatprep.subr.bf16.mxu0 %v3343
            %3821 = vmatpush1.bf16.msra.mxu0 %v3342
            %3822 = vmatprep.subr.bf16.mxu0 %v3347
            %3823 = vmatpush1.bf16.msra.mxu0 %v3346
            %3824 = vmatprep.subr.bf16.mxu0 %v3351
            %3825 = vmatpush1.bf16.msra.mxu0 %v3350
            %3826 = vmatprep.subr.bf16.mxu0 %v3355
            %3827 = vmatpush1.bf16.msra.mxu0 %v3354
            %3828 = vmatprep.subr.bf16.mxu0 %v3359
            %3829 = vmatpush1.bf16.msra.mxu0 %v3358
            %3830 = vmatprep.subr.bf16.mxu0 %v3363
            %3831 = vmatpush1.bf16.msra.mxu0 %v3362
            %3832 = vmatprep.subr.bf16.mxu0 %v3367
            %3833 = vmatpush1.bf16.msra.mxu0 %v3366
            %3834 = vmatprep.subr.bf16.mxu0 %v3371
            %3835 = vmatpush1.bf16.msra.mxu0 %v3370
            %3836 = vmatprep.subr.bf16.mxu0 %v3375
            %3837 = vmatpush1.bf16.msra.mxu0 %v3374
            %3838 = vmatprep.subr.bf16.mxu0 %v3379
            %3839 = vmatpush1.bf16.msra.mxu0 %v3378
            %3840 = vmatprep.subr.bf16.mxu0 %v3383
            %3841 = vmatpush1.bf16.msra.mxu0 %v3382
            %3842 = vmatprep.subr.bf16.mxu0 %v3387
            %3843 = vmatpush1.bf16.msra.mxu0 %v3386
            %3844 = vmatprep.subr.bf16.mxu0 %v3391
            %3845 = vmatpush1.bf16.msra.mxu0 %v3390
            %3846 = vmatprep.subr.bf16.mxu0 %v3395
            %3847 = vmatpush1.bf16.msra.mxu0 %v3394
            %3848 = vmatprep.subr.bf16.mxu0 %v3399
            %3849 = vmatpush1.bf16.msra.mxu0 %v3398
            %3850 = vmatprep.mubr.bf16.mxu0 %v2889
            %3851 = vmatmul.mubr.bf16.gmra.mrb[0].mxu0 %v2888
            %v3852 = vpop.f32.mrb[0].mxu0
            %v3853 = vadd.f32 %v2783, %v3852
            %v3854 = vpop.f32.mrb[0].mxu0
            %v3855 = vadd.f32 %v2787, %v3854
            %v3856 = vpop.f32.mrb[0].mxu0
            %v3857 = vadd.f32 %v2783, %v3856
            %v3858 = vpop.f32.mrb[0].mxu0
            %v3859 = vadd.f32 %v2787, %v3858
            %3860 = vmatprep.mubr.bf16.mxu0 %v2893
            %3861 = vmatmul.mubr.bf16.gmra.mrb[0].mxu0 %v2892
            %v3862 = vpop.f32.mrb[0].mxu0
            %v3863 = vadd.f32 %v2783, %v3862
            %v3864 = vpop.f32.mrb[0].mxu0
            %v3865 = vadd.f32 %v2787, %v3864
            %v3866 = vpop.f32.mrb[0].mxu0
            %v3867 = vadd.f32 %v2783, %v3866
            %v3868 = vpop.f32.mrb[0].mxu0
            %v3869 = vadd.f32 %v2787, %v3868
            %3870 = vmatprep.mubr.bf16.mxu0 %v2897
            %3871 = vmatmul.mubr.bf16.gmra.mrb[0].mxu0 %v2896
            %v3872 = vpop.f32.mrb[0].mxu0
            %v3873 = vadd.f32 %v2783, %v3872
            %v3874 = vpop.f32.mrb[0].mxu0
            %v3875 = vadd.f32 %v2787, %v3874
            %v3876 = vpop.f32.mrb[0].mxu0
            %v3877 = vadd.f32 %v2783, %v3876
            %v3878 = vpop.f32.mrb[0].mxu0
            %v3879 = vadd.f32 %v2787, %v3878
            %3880 = vmatprep.mubr.bf16.mxu0 %v2901
            %3881 = vmatmul.mubr.bf16.gmra.mrb[0].mxu0 %v2900
            %v3882 = vpop.f32.mrb[0].mxu0
            %v3883 = vadd.f32 %v2783, %v3882
            %v3884 = vpop.f32.mrb[0].mxu0
            %v3885 = vadd.f32 %v2787, %v3884
            %v3886 = vpop.f32.mrb[0].mxu0
            %v3887 = vadd.f32 %v2783, %v3886
            %v3888 = vpop.f32.mrb[0].mxu0
            %v3889 = vadd.f32 %v2787, %v3888
            %3890 = vmatprep.mubr.bf16.mxu0 %v2905
            %3891 = vmatmul.mubr.bf16.gmra.mrb[0].mxu0 %v2904
            %v3892 = vpop.f32.mrb[0].mxu0
            %v3893 = vadd.f32 %v2783, %v3892
            %v3894 = vpop.f32.mrb[0].mxu0
            %v3895 = vadd.f32 %v2787, %v3894
            %v3896 = vpop.f32.mrb[0].mxu0
            %v3897 = vadd.f32 %v2783, %v3896
            %v3898 = vpop.f32.mrb[0].mxu0
            %v3899 = vadd.f32 %v2787, %v3898
            %3900 = vmatprep.mubr.bf16.mxu0 %v2909
            %3901 = vmatmul.mubr.bf16.gmra.mrb[0].mxu0 %v2908
            %v3902 = vpop.f32.mrb[0].mxu0
            %v3903 = vadd.f32 %v2783, %v3902
            %v3904 = vpop.f32.mrb[0].mxu0
            %v3905 = vadd.f32 %v2787, %v3904
            %v3906 = vpop.f32.mrb[0].mxu0
            %v3907 = vadd.f32 %v2783, %v3906
            %v3908 = vpop.f32.mrb[0].mxu0
            %v3909 = vadd.f32 %v2787, %v3908
            %3910 = vmatprep.mubr.bf16.mxu0 %v2913
            %3911 = vmatmul.mubr.bf16.gmra.mrb[0].mxu0 %v2912
            %v3912 = vpop.f32.mrb[0].mxu0
            %v3913 = vadd.f32 %v2783, %v3912
            %v3914 = vpop.f32.mrb[0].mxu0
            %v3915 = vadd.f32 %v2787, %v3914
            %v3916 = vpop.f32.mrb[0].mxu0
            %v3917 = vadd.f32 %v2783, %v3916
            %v3918 = vpop.f32.mrb[0].mxu0
            %v3919 = vadd.f32 %v2787, %v3918
            %3920 = vmatprep.mubr.bf16.mxu0 %v2917
            %3921 = vmatmul.mubr.bf16.gmra.mrb[0].mxu0 %v2916
            %v3922 = vpop.f32.mrb[0].mxu0
            %v3923 = vadd.f32 %v2783, %v3922
            %v3924 = vpop.f32.mrb[0].mxu0
            %v3925 = vadd.f32 %v2787, %v3924
            %v3926 = vpop.f32.mrb[0].mxu0
            %v3927 = vadd.f32 %v2783, %v3926
            %v3928 = vpop.f32.mrb[0].mxu0
            %v3929 = vadd.f32 %v2787, %v3928
            %3930 = vdwg.mxu0
            %3931 = vmatprep.subr.bf16.mxu0 %v3403
            %3932 = vmatpush1.bf16.msra.mxu0 %v3402
            %3933 = vmatprep.subr.bf16.mxu0 %v3407
            %3934 = vmatpush1.bf16.msra.mxu0 %v3406
            %3935 = vmatprep.subr.bf16.mxu0 %v3411
            %3936 = vmatpush1.bf16.msra.mxu0 %v3410
            %3937 = vmatprep.subr.bf16.mxu0 %v3415
            %3938 = vmatpush1.bf16.msra.mxu0 %v3414
            %3939 = vmatprep.subr.bf16.mxu0 %v3419
            %3940 = vmatpush1.bf16.msra.mxu0 %v3418
            %3941 = vmatprep.subr.bf16.mxu0 %v3423
            %3942 = vmatpush1.bf16.msra.mxu0 %v3422
            %3943 = vmatprep.subr.bf16.mxu0 %v3427
            %3944 = vmatpush1.bf16.msra.mxu0 %v3426
            %3945 = vmatprep.subr.bf16.mxu0 %v3431
            %3946 = vmatpush1.bf16.msra.mxu0 %v3430
            %3947 = vmatprep.subr.bf16.mxu0 %v3435
            %3948 = vmatpush1.bf16.msra.mxu0 %v3434
            %3949 = vmatprep.subr.bf16.mxu0 %v3439
            %3950 = vmatpush1.bf16.msra.mxu0 %v3438
            %3951 = vmatprep.subr.bf16.mxu0 %v3443
            %3952 = vmatpush1.bf16.msra.mxu0 %v3442
            %3953 = vmatprep.subr.bf16.mxu0 %v3447
            %3954 = vmatpush1.bf16.msra.mxu0 %v3446
            %3955 = vmatprep.subr.bf16.mxu0 %v3451
            %3956 = vmatpush1.bf16.msra.mxu0 %v3450
            %3957 = vmatprep.subr.bf16.mxu0 %v3455
            %3958 = vmatpush1.bf16.msra.mxu0 %v3454
            %3959 = vmatprep.subr.bf16.mxu0 %v3459
            %3960 = vmatpush1.bf16.msra.mxu0 %v3458
            %3961 = vmatprep.subr.bf16.mxu0 %v3463
            %3962 = vmatpush1.bf16.msra.mxu0 %v3462
            %3963 = vmatprep.mubr.bf16.mxu0 %v2891
            %3964 = vmatmul.mubr.bf16.gmra.mrb[0].mxu0 %v2890
            %v3965 = vpop.f32.mrb[0].mxu0
            %v3966 = vadd.f32 %v3853, %v3965
            %v3967 = vpop.f32.mrb[0].mxu0
            %v3968 = vadd.f32 %v3855, %v3967
            %v3969 = vpop.f32.mrb[0].mxu0
            %v3970 = vadd.f32 %v3857, %v3969
            %v3971 = vpop.f32.mrb[0].mxu0
            %v3972 = vadd.f32 %v3859, %v3971
            %3973 = vmatprep.mubr.bf16.mxu0 %v2895
            %3974 = vmatmul.mubr.bf16.gmra.mrb[0].mxu0 %v2894
            %v3975 = vpop.f32.mrb[0].mxu0
            %v3976 = vadd.f32 %v3863, %v3975
            %v3977 = vpop.f32.mrb[0].mxu0
            %v3978 = vadd.f32 %v3865, %v3977
            %v3979 = vpop.f32.mrb[0].mxu0
            %v3980 = vadd.f32 %v3867, %v3979
            %v3981 = vpop.f32.mrb[0].mxu0
            %v3982 = vadd.f32 %v3869, %v3981
            %3983 = vmatprep.mubr.bf16.mxu0 %v2899
            %3984 = vmatmul.mubr.bf16.gmra.mrb[0].mxu0 %v2898
            %v3985 = vpop.f32.mrb[0].mxu0
            %v3986 = vadd.f32 %v3873, %v3985
            %v3987 = vpop.f32.mrb[0].mxu0
            %v3988 = vadd.f32 %v3875, %v3987
            %v3989 = vpop.f32.mrb[0].mxu0
            %v3990 = vadd.f32 %v3877, %v3989
            %v3991 = vpop.f32.mrb[0].mxu0
            %v3992 = vadd.f32 %v3879, %v3991
            %3993 = vmatprep.mubr.bf16.mxu0 %v2903
            %3994 = vmatmul.mubr.bf16.gmra.mrb[0].mxu0 %v2902
            %v3995 = vpop.f32.mrb[0].mxu0
            %v3996 = vadd.f32 %v3883, %v3995
            %v3997 = vpop.f32.mrb[0].mxu0
            %v3998 = vadd.f32 %v3885, %v3997
            %v3999 = vpop.f32.mrb[0].mxu0
            %v4000 = vadd.f32 %v3887, %v3999
            %v4001 = vpop.f32.mrb[0].mxu0
            %v4002 = vadd.f32 %v3889, %v4001
            %4003 = vmatprep.mubr.bf16.mxu0 %v2907
            %4004 = vmatmul.mubr.bf16.gmra.mrb[0].mxu0 %v2906
            %v4005 = vpop.f32.mrb[0].mxu0
            %v4006 = vadd.f32 %v3893, %v4005
            %v4007 = vpop.f32.mrb[0].mxu0
            %v4008 = vadd.f32 %v3895, %v4007
            %v4009 = vpop.f32.mrb[0].mxu0
            %v4010 = vadd.f32 %v3897, %v4009
            %v4011 = vpop.f32.mrb[0].mxu0
            %v4012 = vadd.f32 %v3899, %v4011
            %4013 = vmatprep.mubr.bf16.mxu0 %v2911
            %4014 = vmatmul.mubr.bf16.gmra.mrb[0].mxu0 %v2910
            %v4015 = vpop.f32.mrb[0].mxu0
            %v4016 = vadd.f32 %v3903, %v4015
            %v4017 = vpop.f32.mrb[0].mxu0
            %v4018 = vadd.f32 %v3905, %v4017
            %v4019 = vpop.f32.mrb[0].mxu0
            %v4020 = vadd.f32 %v3907, %v4019
            %v4021 = vpop.f32.mrb[0].mxu0
            %v4022 = vadd.f32 %v3909, %v4021
            %4023 = vmatprep.mubr.bf16.mxu0 %v2915
            %4024 = vmatmul.mubr.bf16.gmra.mrb[0].mxu0 %v2914
            %v4025 = vpop.f32.mrb[0].mxu0
            %v4026 = vadd.f32 %v3913, %v4025
            %v4027 = vpop.f32.mrb[0].mxu0
            %v4028 = vadd.f32 %v3915, %v4027
            %v4029 = vpop.f32.mrb[0].mxu0
            %v4030 = vadd.f32 %v3917, %v4029
            %v4031 = vpop.f32.mrb[0].mxu0
            %v4032 = vadd.f32 %v3919, %v4031
            %4033 = vmatprep.mubr.bf16.mxu0 %v2919
            %4034 = vmatmul.mubr.bf16.gmra.mrb[0].mxu0 %v2918
            %v4035 = vpop.f32.mrb[0].mxu0
            %v4036 = vadd.f32 %v3923, %v4035
            %v4037 = vpop.f32.mrb[0].mxu0
            %v4038 = vadd.f32 %v3925, %v4037
            %v4039 = vpop.f32.mrb[0].mxu0
            %v4040 = vadd.f32 %v3927, %v4039
            %v4041 = vpop.f32.mrb[0].mxu0
            %v4042 = vadd.f32 %v3929, %v4041
            %4043 = vdwg.mxu0
            %v4044 = vpack.c.bf16 %v3744, %v3740
            %v4045 = vpack.c.bf16 %v3746, %v3742
            %v4046 = vpack.c.bf16 %v3970, %v3966
            %v4047 = vpack.c.bf16 %v3972, %v3968
            %v4048 = vpack.c.bf16 %v3754, %v3750
            %v4049 = vpack.c.bf16 %v3756, %v3752
            %v4050 = vpack.c.bf16 %v3980, %v3976
            %v4051 = vpack.c.bf16 %v3982, %v3978
            %v4052 = vpack.c.bf16 %v3764, %v3760
            %v4053 = vpack.c.bf16 %v3766, %v3762
            %v4054 = vpack.c.bf16 %v3990, %v3986
            %v4055 = vpack.c.bf16 %v3992, %v3988
            %v4056 = vpack.c.bf16 %v3774, %v3770
            %v4057 = vpack.c.bf16 %v3776, %v3772
            %v4058 = vpack.c.bf16 %v4000, %v3996
            %v4059 = vpack.c.bf16 %v4002, %v3998
            %v4060 = vpack.c.bf16 %v3784, %v3780
            %v4061 = vpack.c.bf16 %v3786, %v3782
            %v4062 = vpack.c.bf16 %v4010, %v4006
            %v4063 = vpack.c.bf16 %v4012, %v4008
            %v4064 = vpack.c.bf16 %v3794, %v3790
            %v4065 = vpack.c.bf16 %v3796, %v3792
            %v4066 = vpack.c.bf16 %v4020, %v4016
            %v4067 = vpack.c.bf16 %v4022, %v4018
            %v4068 = vpack.c.bf16 %v3804, %v3800
            %v4069 = vpack.c.bf16 %v3806, %v3802
            %v4070 = vpack.c.bf16 %v4030, %v4026
            %v4071 = vpack.c.bf16 %v4032, %v4028
            %v4072 = vpack.c.bf16 %v3814, %v3810
            %v4073 = vpack.c.bf16 %v3816, %v3812
            %v4074 = vpack.c.bf16 %v4040, %v4036
            %v4075 = vpack.c.bf16 %v4042, %v4038
            %v4108 = vunpack.c.l.b16 %v4044
            %v4109 = vunpack.c.l.b16 %v4045
            %v4110 = vunpack.c.l.b16 %v4046
            %v4111 = vunpack.c.l.b16 %v4047
            %v4112 = vunpack.c.h.b16 %v4044
            %v4113 = vunpack.c.h.b16 %v4045
            %v4114 = vunpack.c.h.b16 %v4046
            %v4115 = vunpack.c.h.b16 %v4047
            %v4116 = vunpack.c.l.b16 %v4048
            %v4117 = vunpack.c.l.b16 %v4049
            %v4118 = vunpack.c.l.b16 %v4050
            %v4119 = vunpack.c.l.b16 %v4051
            %v4120 = vunpack.c.h.b16 %v4048
            %v4121 = vunpack.c.h.b16 %v4049
            %v4122 = vunpack.c.h.b16 %v4050
            %v4123 = vunpack.c.h.b16 %v4051
            %v4124 = vunpack.c.l.b16 %v4052
            %v4125 = vunpack.c.l.b16 %v4053
            %v4126 = vunpack.c.l.b16 %v4054
            %v4127 = vunpack.c.l.b16 %v4055
            %v4128 = vunpack.c.h.b16 %v4052
            %v4129 = vunpack.c.h.b16 %v4053
            %v4130 = vunpack.c.h.b16 %v4054
            %v4131 = vunpack.c.h.b16 %v4055
            %v4132 = vunpack.c.l.b16 %v4056
            %v4133 = vunpack.c.l.b16 %v4057
            %v4134 = vunpack.c.l.b16 %v4058
            %v4135 = vunpack.c.l.b16 %v4059
            %v4136 = vunpack.c.h.b16 %v4056
            %v4137 = vunpack.c.h.b16 %v4057
            %v4138 = vunpack.c.h.b16 %v4058
            %v4139 = vunpack.c.h.b16 %v4059
            %v4140 = vunpack.c.l.b16 %v4060
            %v4141 = vunpack.c.l.b16 %v4061
            %v4142 = vunpack.c.l.b16 %v4062
            %v4143 = vunpack.c.l.b16 %v4063
            %v4144 = vunpack.c.h.b16 %v4060
            %v4145 = vunpack.c.h.b16 %v4061
            %v4146 = vunpack.c.h.b16 %v4062
            %v4147 = vunpack.c.h.b16 %v4063
            %v4148 = vunpack.c.l.b16 %v4064
            %v4149 = vunpack.c.l.b16 %v4065
            %v4150 = vunpack.c.l.b16 %v4066
            %v4151 = vunpack.c.l.b16 %v4067
            %v4152 = vunpack.c.h.b16 %v4064
            %v4153 = vunpack.c.h.b16 %v4065
            %v4154 = vunpack.c.h.b16 %v4066
            %v4155 = vunpack.c.h.b16 %v4067
            %v4156 = vunpack.c.l.b16 %v4068
            %v4157 = vunpack.c.l.b16 %v4069
            %v4158 = vunpack.c.l.b16 %v4070
            %v4159 = vunpack.c.l.b16 %v4071
            %v4160 = vunpack.c.h.b16 %v4068
            %v4161 = vunpack.c.h.b16 %v4069
            %v4162 = vunpack.c.h.b16 %v4070
            %v4163 = vunpack.c.h.b16 %v4071
            %v4164 = vunpack.c.l.b16 %v4072
            %v4165 = vunpack.c.l.b16 %v4073
            %v4166 = vunpack.c.l.b16 %v4074
            %v4167 = vunpack.c.l.b16 %v4075
            %v4168 = vunpack.c.h.b16 %v4072
            %v4169 = vunpack.c.h.b16 %v4073
            %v4170 = vunpack.c.h.b16 %v4074
            %v4171 = vunpack.c.h.b16 %v4075
            %v4172 = vpack.c.b16 %v4109, %v4108
            %v4173 = vpack.c.b16 %v4111, %v4110
            %v4174 = vpack.c.b16 %v4113, %v4112
            %v4175 = vpack.c.b16 %v4115, %v4114
            %v4176 = vpack.c.b16 %v4117, %v4116
            %v4177 = vpack.c.b16 %v4119, %v4118
            %v4178 = vpack.c.b16 %v4121, %v4120
            %v4179 = vpack.c.b16 %v4123, %v4122
            %v4180 = vpack.c.b16 %v4125, %v4124
            %v4181 = vpack.c.b16 %v4127, %v4126
            %v4182 = vpack.c.b16 %v4129, %v4128
            %v4183 = vpack.c.b16 %v4131, %v4130
            %v4184 = vpack.c.b16 %v4133, %v4132
            %v4185 = vpack.c.b16 %v4135, %v4134
            %v4186 = vpack.c.b16 %v4137, %v4136
            %v4187 = vpack.c.b16 %v4139, %v4138
            %v4188 = vpack.c.b16 %v4141, %v4140
            %v4189 = vpack.c.b16 %v4143, %v4142
            %v4190 = vpack.c.b16 %v4145, %v4144
            %v4191 = vpack.c.b16 %v4147, %v4146
            %v4192 = vpack.c.b16 %v4149, %v4148
            %v4193 = vpack.c.b16 %v4151, %v4150
            %v4194 = vpack.c.b16 %v4153, %v4152
            %v4195 = vpack.c.b16 %v4155, %v4154
            %v4196 = vpack.c.b16 %v4157, %v4156
            %v4197 = vpack.c.b16 %v4159, %v4158
            %v4198 = vpack.c.b16 %v4161, %v4160
            %v4199 = vpack.c.b16 %v4163, %v4162
            %v4200 = vpack.c.b16 %v4165, %v4164
            %v4201 = vpack.c.b16 %v4167, %v4166
            %v4202 = vpack.c.b16 %v4169, %v4168
            %v4203 = vpack.c.b16 %v4171, %v4170
            %4236 = vst [vmem:[%s534] sm:$0xff] %v4172
            %4237 = vst [vmem:[%s534 + $0x8] sm:$0xff] %v4173
            %4238 = vst [vmem:[%s534 + $0x10] sm:$0xff] %v4174
            %4239 = vst [vmem:[%s534 + $0x18] sm:$0xff] %v4175
            %4240 = vst [vmem:[%s534 + $0x20] sm:$0xff] %v4176
            %4241 = vst [vmem:[%s534 + $0x28] sm:$0xff] %v4177
            %4242 = vst [vmem:[%s534 + $0x30] sm:$0xff] %v4178
            %4243 = vst [vmem:[%s534 + $0x38] sm:$0xff] %v4179
            %4244 = vst [vmem:[%s534 + $0x40] sm:$0xff] %v4180
            %4245 = vst [vmem:[%s534 + $0x48] sm:$0xff] %v4181
            %4246 = vst [vmem:[%s534 + $0x50] sm:$0xff] %v4182
            %4247 = vst [vmem:[%s534 + $0x58] sm:$0xff] %v4183
            %4248 = vst [vmem:[%s534 + $0x60] sm:$0xff] %v4184
            %4249 = vst [vmem:[%s534 + $0x68] sm:$0xff] %v4185
            %4250 = vst [vmem:[%s534 + $0x70] sm:$0xff] %v4186
            %4251 = vst [vmem:[%s534 + $0x78] sm:$0xff] %v4187
            %4252 = vst [vmem:[%s534 + $0x80] sm:$0xff] %v4188
            %4253 = vst [vmem:[%s534 + $0x88] sm:$0xff] %v4189
            %4254 = vst [vmem:[%s534 + $0x90] sm:$0xff] %v4190
            %4255 = vst [vmem:[%s534 + $0x98] sm:$0xff] %v4191
            %4256 = vst [vmem:[%s534 + $0xa0] sm:$0xff] %v4192
            %4257 = vst [vmem:[%s534 + $0xa8] sm:$0xff] %v4193
            %4258 = vst [vmem:[%s534 + $0xb0] sm:$0xff] %v4194
            %4259 = vst [vmem:[%s534 + $0xb8] sm:$0xff] %v4195
            %4260 = vst [vmem:[%s534 + $0xc0] sm:$0xff] %v4196
            %4261 = vst [vmem:[%s534 + $0xc8] sm:$0xff] %v4197
            %4262 = vst [vmem:[%s534 + $0xd0] sm:$0xff] %v4198
            %4263 = vst [vmem:[%s534 + $0xd8] sm:$0xff] %v4199
            %4264 = vst [vmem:[%s534 + $0xe0] sm:$0xff] %v4200
            %4265 = vst [vmem:[%s534 + $0xe8] sm:$0xff] %v4201
            %4266 = vst [vmem:[%s534 + $0xf0] sm:$0xff] %v4202
            %4267 = vst [vmem:[%s534 + $0xf8] sm:$0xff] %v4203
          $region163: #{tpu_custom_call.1} parent=130 // pred_fallthru
            _
        $region131: #{tpu_custom_call.1} parent=114 // pred_fallthru
          _
        %s4268 = sand.u32 %s223, 1
        %s4269 = scalar_lea.sflag [#allocation8], %s4268
        %s4270 = sand.u32 %s223, 1
        %s4271 = smul.addr %s4270, 256
        %s4272 = scalar_lea.vmem [#allocation7], %s4271
        %s4273 = sand.u32 %s251, 1
        %s4274 = scalar_lea.sflag [#allocation10], %s4273
        %s4275 = sand.u32 %s251, 1
        %s4276 = smul.addr %s4275, 256
        %s4277 = scalar_lea.vmem [#allocation9], %s4276
        // Predicated region
        $region164: #{tpu_custom_call.1} parent=114 // pred_check
          %p4278 = pneg %p233
        $region165: #{tpu_custom_call.1} parent=114 // pred_check_branch
          %4280 = sbr.rel (%p4278) target = $region167
        $region166: #{tpu_custom_call.1} parent=114 // pred_region
          %s4281 = smul.u32 16, %s32
          %s4283 = ssub.s32 4096, 4096
          %4284 = vsyncadd %s4269, %s4283
          %s4285 = smul.addr %s4281, 4
          %s4286 = smul.addr %s31, 64
          %s4287 = sadd.s32 %s4285, %s4286
          %s4288 = smul.addr %s4287, 64
          %s4289 = scalar_lea.hbm %s6, %s4288
          %s4290 = sshll.u32 %s4272, 4
          %s4291 = int_to_ptr.vmem [resolvable:$true] %s4290
          %4296 = dma.vmem_to_hbm [thread:$0]  %s4291, 4096, %s4289, %s4269, 256, 256, 16
        $region167: #{tpu_custom_call.1} parent=114 // pred_fallthru
          _
        // Predicated region
        $region168: #{tpu_custom_call.1} parent=114 // pred_check
          %p4297 = pneg %p261
        $region169: #{tpu_custom_call.1} parent=114 // pred_check_branch
          %4299 = sbr.rel (%p4297) target = $region171
        $region170: #{tpu_custom_call.1} parent=114 // pred_region
          %s4300 = smul.u32 16, %s32
          %s4302 = ssub.s32 4096, 4096
          %4303 = vsyncadd %s4274, %s4302
          %s4304 = smul.addr %s4300, 4
          %s4305 = smul.addr %s31, 64
          %s4306 = sadd.s32 %s4304, %s4305
          %s4307 = smul.addr %s4306, 64
          %s4308 = scalar_lea.hbm %s7, %s4307
          %s4309 = sshll.u32 %s4277, 4
          %s4310 = int_to_ptr.vmem [resolvable:$true] %s4309
          %4315 = dma.vmem_to_hbm [thread:$0]  %s4310, 4096, %s4308, %s4274, 256, 256, 16
        $region171: #{tpu_custom_call.1} parent=114 // pred_fallthru
          _
      $region115: #{tpu_custom_call.1} parent=5 // pred_fallthru
        _
      %p4316 = scmp.le.s32.totalorder 2, %s20
      // Predicated region
      $region172: #{tpu_custom_call.1} parent=5 // pred_check
        %p4317 = pneg %p4316
      $region173: #{tpu_custom_call.1} parent=5 // pred_check_branch
        %4319 = sbr.rel (%p4317) target = $region175
      $region174: #{tpu_custom_call.1} parent=5 // pred_region
        %s4320 = ssub.s32 %s20, 2
        // Predicated region
        $region176: #{tpu_custom_call.1} parent=174 // pred_check
          %p4321 = pneg %p239
        $region177: #{tpu_custom_call.1} parent=174 // pred_check_branch
          %4323 = sbr.rel (%p4321) target = $region179
        $region178: #{tpu_custom_call.1} parent=174 // pred_region
          %s4324 = sand.u32 %s224, 1
          %s4325 = scalar_lea.sflag [#allocation8], %s4324
          %s4326 = sand.u32 %s224, 1
          %s4327 = smul.addr %s4326, 256
          %s4328 = scalar_lea.vmem [#allocation7], %s4327
          %4329 = dma.done %s4325, 4096
        $region179: #{tpu_custom_call.1} parent=174 // pred_fallthru
          _
        // Predicated region
        $region180: #{tpu_custom_call.1} parent=174 // pred_check
          %p4330 = pneg %p267
        $region181: #{tpu_custom_call.1} parent=174 // pred_check_branch
          %4332 = sbr.rel (%p4330) target = $region183
        $region182: #{tpu_custom_call.1} parent=174 // pred_region
          %s4333 = sand.u32 %s252, 1
          %s4334 = scalar_lea.sflag [#allocation10], %s4333
          %s4335 = sand.u32 %s252, 1
          %s4336 = smul.addr %s4335, 256
          %s4337 = scalar_lea.vmem [#allocation9], %s4336
          %4338 = dma.done %s4334, 4096
        $region183: #{tpu_custom_call.1} parent=174 // pred_fallthru
          _
      $region175: #{tpu_custom_call.1} parent=5 // pred_fallthru
        _
    $region6: #{tpu_custom_call.1} parent=1 // loop_footer
      %s24 = sadd.s32 1, %s20
    $region7: #{tpu_custom_call.1} parent=1 // loop_footer_branch
      %19 = sbr.rel target = $region3
    $region8: #{tpu_custom_call.1} parent=1 // loop_exit
      _
    %4339 = vsyncpa [#allocation8], 1
    %s4340 = scalar_lea.sflag [#allocation8], 1
    %4341 = vsyncpa %s4340, 1
    %4342 = vsyncpa [#allocation10], 1
    %s4343 = scalar_lea.sflag [#allocation10], 1
    %4344 = vsyncpa %s4343, 1

</llo_original>
